<compile_context>
chip_gen: v5e
topology: v5e:2x2
jax: 0.10.0
libtpu: 0.0.40
codegen_flags: <defaults>
</compile_context>

<pallas_src>
import math

import jax
import jax.numpy as jnp
from jax.experimental import pallas as pl
from jax.experimental.pallas import tpu as pltpu

# ---- cfg consistent with the module ----
S = 8          # seq_len per item
D = 32         # cfg.dim
H = 4          # cfg.n_heads
W = D // H     # width of each head (8)
LANES = 128    # items mapped onto the 128-lane axis per grid step
B = 128        # demo batch size (must be a multiple of LANES)


def mhsa_kernel(x_ref, wqkv_ref, bqkv_ref, wo_ref, bo_ref, out_ref, ctx_ref):
    """One (D, S*LANES) slab: LANES items, batch on the lane axis."""
    tbl = x_ref.shape[2] // S            # lanes per sequence position (=128)

    xf = x_ref[0]                        # (D, S*tbl); column index = s*tbl + b

    # Packed QKV projection: one MXU matmul, N = S*tbl = 1024 lanes (dense).
    qkv = jnp.dot(wqkv_ref[...], xf,
                  preferred_element_type=jnp.float32) + bqkv_ref[...]  # (3D, S*tbl)
    q2 = qkv[0 * D:1 * D]                # (D, S*tbl); 1/sqrt(W) already folded in
    k2 = qkv[1 * D:2 * D]                # sublane slices at multiples of 32: free
    v2 = qkv[2 * D:3 * D]

    def col(t, j):                       # 128-aligned lane-group slice: no relayout
        return t[:, j * tbl:(j + 1) * tbl]

    # Attention core on the VPU, batch on lanes.  The causal mask is applied
    # exactly by the j <= i loop bounds (masked positions never enter the
    # softmax or the context sum), matching the -inf reference exactly.
    for i in range(S):                   # static unroll: 8 query positions
        q_i = col(q2, i)                                             # (D, tbl)

        s_list = []
        for j in range(i + 1):
            prod = q_i * col(k2, j)                                  # (D, tbl)
            # per-head reduction over the W=8 sublanes of each head group
            s_list.append(jnp.sum(prod.reshape(H, W, tbl), axis=1))  # (H, tbl)

        m = s_list[0]
        for s_ij in s_list[1:]:
            m = jnp.maximum(m, s_ij)
        p_list = [jnp.exp(s_ij - m) for s_ij in s_list]
        den = p_list[0]
        for p_ij in p_list[1:]:
            den = den + p_ij
        # EUP approximate reciprocal: intentional ~1e-3-level approximation.
        inv = pl.reciprocal(den, approx=True)                        # (H, tbl)

        ctx_i = jnp.zeros((D, tbl), jnp.float32)
        for j in range(i + 1):
            pj = p_list[j] * inv                                     # (H, tbl)
            pj_b = jnp.broadcast_to(pj[:, None, :], (H, W, tbl)).reshape(D, tbl)
            ctx_i = ctx_i + pj_b * col(v2, j)
        ctx_ref[:, i * tbl:(i + 1) * tbl] = ctx_i                    # (D, tbl)

    # merge_last + output Linear: one MXU matmul over all positions/items.
    out_t = jnp.dot(wo_ref[...], ctx_ref[...],
                    preferred_element_type=jnp.float32) + bo_ref[...]  # (D, S*tbl)
    out_ref[0] = out_t.astype(out_ref.dtype)


def mhsa_forward(x, params):
    """MultiHeadedSelfAttention.forward.  Weights are stored (in, out)."""
    bsz, s, d = x.shape
    assert s == S and d == D
    assert bsz % LANES == 0, "batch must be a multiple of 128 (lane width)"
    g = bsz // LANES

    # Layout plumbing (cheap XLA ops outside the kernel): batch -> lanes,
    # features -> sublanes; column index inside a slab is s*LANES + b.
    x_t = (x.reshape(g, LANES, S, D)
            .transpose(0, 3, 2, 1)             # (g, D, S, LANES)
            .reshape(g, D, S * LANES))

    # Pack weights once (runs under jit, outside the kernel); fold 1/sqrt(W)
    # into the q projection so the kernel never multiplies by the scale.
    scale = 1.0 / math.sqrt(W)
    wqkv_t = jnp.concatenate([params["wq"].T * scale,
                              params["wk"].T,
                              params["wv"].T], axis=0)       # (3D, D)
    bqkv = jnp.concatenate([params["bq"] * scale,
                            params["bk"],
                            params["bv"]])[:, None]          # (3D, 1)
    wo_t = params["wo"].T                                    # (D, D)
    bo = params["bo"][:, None]                               # (D, 1)

    out_f = pl.pallas_call(
        mhsa_kernel,
        out_shape=jax.ShapeDtypeStruct((g, D, S * LANES), x.dtype),
        grid_spec=pltpu.PrefetchScalarGridSpec(
            num_scalar_prefetch=0,
            grid=(g,),
            in_specs=[
                pl.BlockSpec((1, D, S * LANES), lambda i: (i, 0, 0)),
                # Constant block index -> weights/biases stay VMEM-resident.
                pl.BlockSpec((3 * D, D), lambda i: (0, 0)),
                pl.BlockSpec((3 * D, 1), lambda i: (0, 0)),
                pl.BlockSpec((D, D), lambda i: (0, 0)),
                pl.BlockSpec((D, 1), lambda i: (0, 0)),
            ],
            out_specs=pl.BlockSpec((1, D, S * LANES), lambda i: (i, 0, 0)),
            scratch_shapes=[pltpu.VMEM((D, S * LANES), jnp.float32)],
        ),
        compiler_params=pltpu.CompilerParams(
            # One 128-item step per grid point; splits across TensorCores on
            # 2-TC chips (v7x) once bsz >= 256.
            dimension_semantics=("parallel",),
        ),
    )(x_t, wqkv_t, bqkv, wo_t, bo)

    return (out_f.reshape(g, D, S, LANES)
                 .transpose(0, 3, 2, 1)
                 .reshape(bsz, S, D))


def mhsa_reference(x, p):
    """Pure-JAX reference mirroring the PyTorch forward."""
    bsz = x.shape[0]
    q = x @ p["wq"] + p["bq"]
    k = x @ p["wk"] + p["bk"]
    v = x @ p["wv"] + p["bv"]

    def split(t):
        return t.reshape(bsz, S, H, W).transpose(0, 2, 1, 3)   # (B, H, S, W)

    qh, kh, vh = split(q), split(k), split(v)
    sc = jnp.einsum("bhiw,bhjw->bhij", qh, kh) / jnp.sqrt(jnp.float32(W))
    mask = jnp.triu(jnp.ones((S, S), dtype=bool), k=1)
    sc = jnp.where(mask[None, None], -jnp.inf, sc)
    sc = jax.nn.softmax(sc, axis=-1)
    ctx = jnp.einsum("bhij,bhjw->bhiw", sc, vh).transpose(0, 2, 1, 3).reshape(bsz, S, D)
    return ctx @ p["wo"] + p["bo"]


def make_params(key):
    """Deterministic synthetic params (nn.Linear weights pre-transposed to (in, out))."""
    ks = jax.random.split(key, 8)
    scale = 0.02

    def lin(k, fan_in, fan_out):
        return scale * jax.random.normal(k, (fan_in, fan_out), jnp.float32)

    def bias(k, n):
        return scale * jax.random.normal(k, (n,), jnp.float32)

    return {
        "wq": lin(ks[0], D, D), "bq": bias(ks[1], D),
        "wk": lin(ks[2], D, D), "bk": bias(ks[3], D),
        "wv": lin(ks[4], D, D), "bv": bias(ks[5], D),
        "wo": lin(ks[6], D, D), "bo": bias(ks[7], D),
    }


if __name__ == "__main__":
    key = jax.random.PRNGKey(0)
    pkey, xkey = jax.random.split(key)
    params = make_params(pkey)
    x = jax.random.normal(xkey, (B, S, D), jnp.float32)

    fwd = jax.jit(mhsa_forward)
    out = jax.block_until_ready(fwd(x, params))

    ref = mhsa_reference(x, params)
    assert out.shape == (B, S, D)
    max_err = float(jnp.max(jnp.abs(out - ref)))
    assert jnp.allclose(out, ref, atol=3e-4, rtol=3e-3), max_err
    print("KERNEL_OK")
</pallas_src>

<mosaic_0001>
module attributes {stable_mosaic.version = 11 : i64} {
  func.func @mhsa_kernel(%arg0: i32, %arg1: memref<1x32x1024xf32, #tpu.memory_space<vmem>>, %arg2: memref<96x32xf32, #tpu.memory_space<vmem>>, %arg3: memref<96x1xf32, #tpu.memory_space<vmem>>, %arg4: memref<32x32xf32, #tpu.memory_space<vmem>>, %arg5: memref<32x1xf32, #tpu.memory_space<vmem>>, %arg6: memref<1x32x1024xf32, #tpu.memory_space<vmem>>, %arg7: memref<32x1024xf32, #tpu.memory_space<vmem>>) attributes {dimension_semantics = [#tpu.dimension_semantics<parallel>], iteration_bounds = array<i64: 1>, scalar_prefetch = 0 : i64, scratch_operands = 1 : i64, tpu.core_type = #tpu.core_type<tc>, window_params = [{transform_indices = @transform_0, window_bounds = array<i64: 1, 32, 1024>}, {pipeline_mode = #tpu.pipeline_mode<synchronous>, transform_indices = @transform_1, window_bounds = array<i64: 96, 32>}, {pipeline_mode = #tpu.pipeline_mode<synchronous>, transform_indices = @transform_2, window_bounds = array<i64: 96, 1>}, {pipeline_mode = #tpu.pipeline_mode<synchronous>, transform_indices = @transform_3, window_bounds = array<i64: 32, 32>}, {pipeline_mode = #tpu.pipeline_mode<synchronous>, transform_indices = @transform_4, window_bounds = array<i64: 32, 1>}, {transform_indices = @transform_5, window_bounds = array<i64: 1, 32, 1024>}]} {
    %c0 = arith.constant 0 : index
    %c0_0 = arith.constant 0 : index
    %c0_1 = arith.constant 0 : index
    %0 = vector.load %arg1[%c0, %c0_0, %c0_1] : memref<1x32x1024xf32, #tpu.memory_space<vmem>>, vector<1x32x1024xf32>
    %1 = vector.shape_cast %0 : vector<1x32x1024xf32> to vector<32x1024xf32>
    %c0_2 = arith.constant 0 : index
    %c0_3 = arith.constant 0 : index
    %2 = vector.load %arg2[%c0_2, %c0_3] : memref<96x32xf32, #tpu.memory_space<vmem>>, vector<96x32xf32>
    %cst = arith.constant dense<0.000000e+00> : vector<96x1024xf32>
    %3 = tpu.matmul %2, %1, %cst {dimension_numbers = #tpu.dot_dimension_numbers<[1], [0], [0], [1], [0, 0, 1, 1], [], []>} : vector<96x32xf32>, vector<32x1024xf32>, vector<96x1024xf32> -> vector<96x1024xf32>
    %c0_4 = arith.constant 0 : index
    %c0_5 = arith.constant 0 : index
    %4 = vector.load %arg3[%c0_4, %c0_5] : memref<96x1xf32, #tpu.memory_space<vmem>>, vector<96x1xf32>
    %5 = vector.broadcast %4 : vector<96x1xf32> to vector<96x1024xf32>
    %6 = arith.addf %3, %5 : vector<96x1024xf32>
    %7 = vector.extract_strided_slice %6 {offsets = [0, 0], sizes = [32, 1024], strides = [1, 1]} : vector<96x1024xf32> to vector<32x1024xf32>
    %8 = vector.extract_strided_slice %6 {offsets = [32, 0], sizes = [32, 1024], strides = [1, 1]} : vector<96x1024xf32> to vector<32x1024xf32>
    %9 = vector.extract_strided_slice %6 {offsets = [64, 0], sizes = [32, 1024], strides = [1, 1]} : vector<96x1024xf32> to vector<32x1024xf32>
    %10 = vector.extract_strided_slice %7 {offsets = [0, 0], sizes = [32, 128], strides = [1, 1]} : vector<32x1024xf32> to vector<32x128xf32>
    %11 = vector.extract_strided_slice %8 {offsets = [0, 0], sizes = [32, 128], strides = [1, 1]} : vector<32x1024xf32> to vector<32x128xf32>
    %12 = arith.mulf %10, %11 : vector<32x128xf32>
    %13 = vector.shape_cast %12 : vector<32x128xf32> to vector<4x8x128xf32>
    %cst_6 = arith.constant dense<0.000000e+00> : vector<4x128xf32>
    %14 = vector.multi_reduction <add>, %13, %cst_6 [1] : vector<4x8x128xf32> to vector<4x128xf32>
    %15 = arith.subf %14, %14 : vector<4x128xf32>
    %16 = math.exp %15 : vector<4x128xf32>
    %17 = tpu.reciprocal %16 {approx = true} : vector<4x128xf32> -> vector<4x128xf32>
    %cst_7 = arith.constant 0.000000e+00 : f32
    %18 = vector.broadcast %cst_7 : f32 to vector<32x128xf32>
    %19 = arith.mulf %16, %17 : vector<4x128xf32>
    %20 = vector.shape_cast %19 : vector<4x128xf32> to vector<4x1x128xf32>
    %21 = vector.shape_cast %20 : vector<4x1x128xf32> to vector<4x1x128xf32>
    %22 = vector.broadcast %21 : vector<4x1x128xf32> to vector<4x8x128xf32>
    %23 = vector.shape_cast %22 : vector<4x8x128xf32> to vector<32x128xf32>
    %24 = vector.extract_strided_slice %9 {offsets = [0, 0], sizes = [32, 128], strides = [1, 1]} : vector<32x1024xf32> to vector<32x128xf32>
    %25 = arith.mulf %23, %24 : vector<32x128xf32>
    %26 = arith.addf %18, %25 : vector<32x128xf32>
    %c0_8 = arith.constant 0 : index
    %c0_9 = arith.constant 0 : index
    %27 = vector.load %arg7[%c0_8, %c0_9] : memref<32x1024xf32, #tpu.memory_space<vmem>>, vector<32x128xf32>
    tpu.vector_store %arg7[%c0_8, %c0_9], %26 {strides = array<i32>} : memref<32x1024xf32, #tpu.memory_space<vmem>>, vector<32x128xf32>,
    %28 = vector.extract_strided_slice %7 {offsets = [0, 128], sizes = [32, 128], strides = [1, 1]} : vector<32x1024xf32> to vector<32x128xf32>
    %29 = vector.extract_strided_slice %8 {offsets = [0, 0], sizes = [32, 128], strides = [1, 1]} : vector<32x1024xf32> to vector<32x128xf32>
    %30 = arith.mulf %28, %29 : vector<32x128xf32>
    %31 = vector.shape_cast %30 : vector<32x128xf32> to vector<4x8x128xf32>
    %cst_10 = arith.constant dense<0.000000e+00> : vector<4x128xf32>
    %32 = vector.multi_reduction <add>, %31, %cst_10 [1] : vector<4x8x128xf32> to vector<4x128xf32>
    %33 = vector.extract_strided_slice %8 {offsets = [0, 128], sizes = [32, 128], strides = [1, 1]} : vector<32x1024xf32> to vector<32x128xf32>
    %34 = arith.mulf %28, %33 : vector<32x128xf32>
    %35 = vector.shape_cast %34 : vector<32x128xf32> to vector<4x8x128xf32>
    %cst_11 = arith.constant dense<0.000000e+00> : vector<4x128xf32>
    %36 = vector.multi_reduction <add>, %35, %cst_11 [1] : vector<4x8x128xf32> to vector<4x128xf32>
    %37 = arith.maximumf %32, %36 : vector<4x128xf32>
    %38 = arith.subf %32, %37 : vector<4x128xf32>
    %39 = math.exp %38 : vector<4x128xf32>
    %40 = arith.subf %36, %37 : vector<4x128xf32>
    %41 = math.exp %40 : vector<4x128xf32>
    %42 = arith.addf %39, %41 : vector<4x128xf32>
    %43 = tpu.reciprocal %42 {approx = true} : vector<4x128xf32> -> vector<4x128xf32>
    %cst_12 = arith.constant 0.000000e+00 : f32
    %44 = vector.broadcast %cst_12 : f32 to vector<32x128xf32>
    %45 = arith.mulf %39, %43 : vector<4x128xf32>
    %46 = vector.shape_cast %45 : vector<4x128xf32> to vector<4x1x128xf32>
    %47 = vector.shape_cast %46 : vector<4x1x128xf32> to vector<4x1x128xf32>
    %48 = vector.broadcast %47 : vector<4x1x128xf32> to vector<4x8x128xf32>
    %49 = vector.shape_cast %48 : vector<4x8x128xf32> to vector<32x128xf32>
    %50 = vector.extract_strided_slice %9 {offsets = [0, 0], sizes = [32, 128], strides = [1, 1]} : vector<32x1024xf32> to vector<32x128xf32>
    %51 = arith.mulf %49, %50 : vector<32x128xf32>
    %52 = arith.addf %44, %51 : vector<32x128xf32>
    %53 = arith.mulf %41, %43 : vector<4x128xf32>
    %54 = vector.shape_cast %53 : vector<4x128xf32> to vector<4x1x128xf32>
    %55 = vector.shape_cast %54 : vector<4x1x128xf32> to vector<4x1x128xf32>
    %56 = vector.broadcast %55 : vector<4x1x128xf32> to vector<4x8x128xf32>
    %57 = vector.shape_cast %56 : vector<4x8x128xf32> to vector<32x128xf32>
    %58 = vector.extract_strided_slice %9 {offsets = [0, 128], sizes = [32, 128], strides = [1, 1]} : vector<32x1024xf32> to vector<32x128xf32>
    %59 = arith.mulf %57, %58 : vector<32x128xf32>
    %60 = arith.addf %52, %59 : vector<32x128xf32>
    %c0_13 = arith.constant 0 : index
    %c128 = arith.constant 128 : index
    %61 = vector.load %arg7[%c0_13, %c128] : memref<32x1024xf32, #tpu.memory_space<vmem>>, vector<32x128xf32>
    tpu.vector_store %arg7[%c0_13, %c128], %60 {strides = array<i32>} : memref<32x1024xf32, #tpu.memory_space<vmem>>, vector<32x128xf32>,
    %62 = vector.extract_strided_slice %7 {offsets = [0, 256], sizes = [32, 128], strides = [1, 1]} : vector<32x1024xf32> to vector<32x128xf32>
    %63 = vector.extract_strided_slice %8 {offsets = [0, 0], sizes = [32, 128], strides = [1, 1]} : vector<32x1024xf32> to vector<32x128xf32>
    %64 = arith.mulf %62, %63 : vector<32x128xf32>
    %65 = vector.shape_cast %64 : vector<32x128xf32> to vector<4x8x128xf32>
    %cst_14 = arith.constant dense<0.000000e+00> : vector<4x128xf32>
    %66 = vector.multi_reduction <add>, %65, %cst_14 [1] : vector<4x8x128xf32> to vector<4x128xf32>
    %67 = vector.extract_strided_slice %8 {offsets = [0, 128], sizes = [32, 128], strides = [1, 1]} : vector<32x1024xf32> to vector<32x128xf32>
    %68 = arith.mulf %62, %67 : vector<32x128xf32>
    %69 = vector.shape_cast %68 : vector<32x128xf32> to vector<4x8x128xf32>
    %cst_15 = arith.constant dense<0.000000e+00> : vector<4x128xf32>
    %70 = vector.multi_reduction <add>, %69, %cst_15 [1] : vector<4x8x128xf32> to vector<4x128xf32>
    %71 = vector.extract_strided_slice %8 {offsets = [0, 256], sizes = [32, 128], strides = [1, 1]} : vector<32x1024xf32> to vector<32x128xf32>
    %72 = arith.mulf %62, %71 : vector<32x128xf32>
    %73 = vector.shape_cast %72 : vector<32x128xf32> to vector<4x8x128xf32>
    %cst_16 = arith.constant dense<0.000000e+00> : vector<4x128xf32>
    %74 = vector.multi_reduction <add>, %73, %cst_16 [1] : vector<4x8x128xf32> to vector<4x128xf32>
    %75 = arith.maximumf %66, %70 : vector<4x128xf32>
    %76 = arith.maximumf %75, %74 : vector<4x128xf32>
    %77 = arith.subf %66, %76 : vector<4x128xf32>
    %78 = math.exp %77 : vector<4x128xf32>
    %79 = arith.subf %70, %76 : vector<4x128xf32>
    %80 = math.exp %79 : vector<4x128xf32>
    %81 = arith.subf %74, %76 : vector<4x128xf32>
    %82 = math.exp %81 : vector<4x128xf32>
    %83 = arith.addf %78, %80 : vector<4x128xf32>
    %84 = arith.addf %83, %82 : vector<4x128xf32>
    %85 = tpu.reciprocal %84 {approx = true} : vector<4x128xf32> -> vector<4x128xf32>
    %cst_17 = arith.constant 0.000000e+00 : f32
    %86 = vector.broadcast %cst_17 : f32 to vector<32x128xf32>
    %87 = arith.mulf %78, %85 : vector<4x128xf32>
    %88 = vector.shape_cast %87 : vector<4x128xf32> to vector<4x1x128xf32>
    %89 = vector.shape_cast %88 : vector<4x1x128xf32> to vector<4x1x128xf32>
    %90 = vector.broadcast %89 : vector<4x1x128xf32> to vector<4x8x128xf32>
    %91 = vector.shape_cast %90 : vector<4x8x128xf32> to vector<32x128xf32>
    %92 = vector.extract_strided_slice %9 {offsets = [0, 0], sizes = [32, 128], strides = [1, 1]} : vector<32x1024xf32> to vector<32x128xf32>
    %93 = arith.mulf %91, %92 : vector<32x128xf32>
    %94 = arith.addf %86, %93 : vector<32x128xf32>
    %95 = arith.mulf %80, %85 : vector<4x128xf32>
    %96 = vector.shape_cast %95 : vector<4x128xf32> to vector<4x1x128xf32>
    %97 = vector.shape_cast %96 : vector<4x1x128xf32> to vector<4x1x128xf32>
    %98 = vector.broadcast %97 : vector<4x1x128xf32> to vector<4x8x128xf32>
    %99 = vector.shape_cast %98 : vector<4x8x128xf32> to vector<32x128xf32>
    %100 = vector.extract_strided_slice %9 {offsets = [0, 128], sizes = [32, 128], strides = [1, 1]} : vector<32x1024xf32> to vector<32x128xf32>
    %101 = arith.mulf %99, %100 : vector<32x128xf32>
    %102 = arith.addf %94, %101 : vector<32x128xf32>
    %103 = arith.mulf %82, %85 : vector<4x128xf32>
    %104 = vector.shape_cast %103 : vector<4x128xf32> to vector<4x1x128xf32>
    %105 = vector.shape_cast %104 : vector<4x1x128xf32> to vector<4x1x128xf32>
    %106 = vector.broadcast %105 : vector<4x1x128xf32> to vector<4x8x128xf32>
    %107 = vector.shape_cast %106 : vector<4x8x128xf32> to vector<32x128xf32>
    %108 = vector.extract_strided_slice %9 {offsets = [0, 256], sizes = [32, 128], strides = [1, 1]} : vector<32x1024xf32> to vector<32x128xf32>
    %109 = arith.mulf %107, %108 : vector<32x128xf32>
    %110 = arith.addf %102, %109 : vector<32x128xf32>
    %c0_18 = arith.constant 0 : index
    %c256 = arith.constant 256 : index
    %111 = vector.load %arg7[%c0_18, %c256] : memref<32x1024xf32, #tpu.memory_space<vmem>>, vector<32x128xf32>
    tpu.vector_store %arg7[%c0_18, %c256], %110 {strides = array<i32>} : memref<32x1024xf32, #tpu.memory_space<vmem>>, vector<32x128xf32>,
    %112 = vector.extract_strided_slice %7 {offsets = [0, 384], sizes = [32, 128], strides = [1, 1]} : vector<32x1024xf32> to vector<32x128xf32>
    %113 = vector.extract_strided_slice %8 {offsets = [0, 0], sizes = [32, 128], strides = [1, 1]} : vector<32x1024xf32> to vector<32x128xf32>
    %114 = arith.mulf %112, %113 : vector<32x128xf32>
    %115 = vector.shape_cast %114 : vector<32x128xf32> to vector<4x8x128xf32>
    %cst_19 = arith.constant dense<0.000000e+00> : vector<4x128xf32>
    %116 = vector.multi_reduction <add>, %115, %cst_19 [1] : vector<4x8x128xf32> to vector<4x128xf32>
    %117 = vector.extract_strided_slice %8 {offsets = [0, 128], sizes = [32, 128], strides = [1, 1]} : vector<32x1024xf32> to vector<32x128xf32>
    %118 = arith.mulf %112, %117 : vector<32x128xf32>
    %119 = vector.shape_cast %118 : vector<32x128xf32> to vector<4x8x128xf32>
    %cst_20 = arith.constant dense<0.000000e+00> : vector<4x128xf32>
    %120 = vector.multi_reduction <add>, %119, %cst_20 [1] : vector<4x8x128xf32> to vector<4x128xf32>
    %121 = vector.extract_strided_slice %8 {offsets = [0, 256], sizes = [32, 128], strides = [1, 1]} : vector<32x1024xf32> to vector<32x128xf32>
    %122 = arith.mulf %112, %121 : vector<32x128xf32>
    %123 = vector.shape_cast %122 : vector<32x128xf32> to vector<4x8x128xf32>
    %cst_21 = arith.constant dense<0.000000e+00> : vector<4x128xf32>
    %124 = vector.multi_reduction <add>, %123, %cst_21 [1] : vector<4x8x128xf32> to vector<4x128xf32>
    %125 = vector.extract_strided_slice %8 {offsets = [0, 384], sizes = [32, 128], strides = [1, 1]} : vector<32x1024xf32> to vector<32x128xf32>
    %126 = arith.mulf %112, %125 : vector<32x128xf32>
    %127 = vector.shape_cast %126 : vector<32x128xf32> to vector<4x8x128xf32>
    %cst_22 = arith.constant dense<0.000000e+00> : vector<4x128xf32>
    %128 = vector.multi_reduction <add>, %127, %cst_22 [1] : vector<4x8x128xf32> to vector<4x128xf32>
    %129 = arith.maximumf %116, %120 : vector<4x128xf32>
    %130 = arith.maximumf %129, %124 : vector<4x128xf32>
    %131 = arith.maximumf %130, %128 : vector<4x128xf32>
    %132 = arith.subf %116, %131 : vector<4x128xf32>
    %133 = math.exp %132 : vector<4x128xf32>
    %134 = arith.subf %120, %131 : vector<4x128xf32>
    %135 = math.exp %134 : vector<4x128xf32>
    %136 = arith.subf %124, %131 : vector<4x128xf32>
    %137 = math.exp %136 : vector<4x128xf32>
    %138 = arith.subf %128, %131 : vector<4x128xf32>
    %139 = math.exp %138 : vector<4x128xf32>
    %140 = arith.addf %133, %135 : vector<4x128xf32>
    %141 = arith.addf %140, %137 : vector<4x128xf32>
    %142 = arith.addf %141, %139 : vector<4x128xf32>
    %143 = tpu.reciprocal %142 {approx = true} : vector<4x128xf32> -> vector<4x128xf32>
    %cst_23 = arith.constant 0.000000e+00 : f32
    %144 = vector.broadcast %cst_23 : f32 to vector<32x128xf32>
    %145 = arith.mulf %133, %143 : vector<4x128xf32>
    %146 = vector.shape_cast %145 : vector<4x128xf32> to vector<4x1x128xf32>
    %147 = vector.shape_cast %146 : vector<4x1x128xf32> to vector<4x1x128xf32>
    %148 = vector.broadcast %147 : vector<4x1x128xf32> to vector<4x8x128xf32>
    %149 = vector.shape_cast %148 : vector<4x8x128xf32> to vector<32x128xf32>
    %150 = vector.extract_strided_slice %9 {offsets = [0, 0], sizes = [32, 128], strides = [1, 1]} : vector<32x1024xf32> to vector<32x128xf32>
    %151 = arith.mulf %149, %150 : vector<32x128xf32>
    %152 = arith.addf %144, %151 : vector<32x128xf32>
    %153 = arith.mulf %135, %143 : vector<4x128xf32>
    %154 = vector.shape_cast %153 : vector<4x128xf32> to vector<4x1x128xf32>
    %155 = vector.shape_cast %154 : vector<4x1x128xf32> to vector<4x1x128xf32>
    %156 = vector.broadcast %155 : vector<4x1x128xf32> to vector<4x8x128xf32>
    %157 = vector.shape_cast %156 : vector<4x8x128xf32> to vector<32x128xf32>
    %158 = vector.extract_strided_slice %9 {offsets = [0, 128], sizes = [32, 128], strides = [1, 1]} : vector<32x1024xf32> to vector<32x128xf32>
    %159 = arith.mulf %157, %158 : vector<32x128xf32>
    %160 = arith.addf %152, %159 : vector<32x128xf32>
    %161 = arith.mulf %137, %143 : vector<4x128xf32>
    %162 = vector.shape_cast %161 : vector<4x128xf32> to vector<4x1x128xf32>
    %163 = vector.shape_cast %162 : vector<4x1x128xf32> to vector<4x1x128xf32>
    %164 = vector.broadcast %163 : vector<4x1x128xf32> to vector<4x8x128xf32>
    %165 = vector.shape_cast %164 : vector<4x8x128xf32> to vector<32x128xf32>
    %166 = vector.extract_strided_slice %9 {offsets = [0, 256], sizes = [32, 128], strides = [1, 1]} : vector<32x1024xf32> to vector<32x128xf32>
    %167 = arith.mulf %165, %166 : vector<32x128xf32>
    %168 = arith.addf %160, %167 : vector<32x128xf32>
    %169 = arith.mulf %139, %143 : vector<4x128xf32>
    %170 = vector.shape_cast %169 : vector<4x128xf32> to vector<4x1x128xf32>
    %171 = vector.shape_cast %170 : vector<4x1x128xf32> to vector<4x1x128xf32>
    %172 = vector.broadcast %171 : vector<4x1x128xf32> to vector<4x8x128xf32>
    %173 = vector.shape_cast %172 : vector<4x8x128xf32> to vector<32x128xf32>
    %174 = vector.extract_strided_slice %9 {offsets = [0, 384], sizes = [32, 128], strides = [1, 1]} : vector<32x1024xf32> to vector<32x128xf32>
    %175 = arith.mulf %173, %174 : vector<32x128xf32>
    %176 = arith.addf %168, %175 : vector<32x128xf32>
    %c0_24 = arith.constant 0 : index
    %c384 = arith.constant 384 : index
    %177 = vector.load %arg7[%c0_24, %c384] : memref<32x1024xf32, #tpu.memory_space<vmem>>, vector<32x128xf32>
    tpu.vector_store %arg7[%c0_24, %c384], %176 {strides = array<i32>} : memref<32x1024xf32, #tpu.memory_space<vmem>>, vector<32x128xf32>,
    %178 = vector.extract_strided_slice %7 {offsets = [0, 512], sizes = [32, 128], strides = [1, 1]} : vector<32x1024xf32> to vector<32x128xf32>
    %179 = vector.extract_strided_slice %8 {offsets = [0, 0], sizes = [32, 128], strides = [1, 1]} : vector<32x1024xf32> to vector<32x128xf32>
    %180 = arith.mulf %178, %179 : vector<32x128xf32>
    %181 = vector.shape_cast %180 : vector<32x128xf32> to vector<4x8x128xf32>
    %cst_25 = arith.constant dense<0.000000e+00> : vector<4x128xf32>
    %182 = vector.multi_reduction <add>, %181, %cst_25 [1] : vector<4x8x128xf32> to vector<4x128xf32>
    %183 = vector.extract_strided_slice %8 {offsets = [0, 128], sizes = [32, 128], strides = [1, 1]} : vector<32x1024xf32> to vector<32x128xf32>
    %184 = arith.mulf %178, %183 : vector<32x128xf32>
    %185 = vector.shape_cast %184 : vector<32x128xf32> to vector<4x8x128xf32>
    %cst_26 = arith.constant dense<0.000000e+00> : vector<4x128xf32>
    %186 = vector.multi_reduction <add>, %185, %cst_26 [1] : vector<4x8x128xf32> to vector<4x128xf32>
    %187 = vector.extract_strided_slice %8 {offsets = [0, 256], sizes = [32, 128], strides = [1, 1]} : vector<32x1024xf32> to vector<32x128xf32>
    %188 = arith.mulf %178, %187 : vector<32x128xf32>
    %189 = vector.shape_cast %188 : vector<32x128xf32> to vector<4x8x128xf32>
    %cst_27 = arith.constant dense<0.000000e+00> : vector<4x128xf32>
    %190 = vector.multi_reduction <add>, %189, %cst_27 [1] : vector<4x8x128xf32> to vector<4x128xf32>
    %191 = vector.extract_strided_slice %8 {offsets = [0, 384], sizes = [32, 128], strides = [1, 1]} : vector<32x1024xf32> to vector<32x128xf32>
    %192 = arith.mulf %178, %191 : vector<32x128xf32>
    %193 = vector.shape_cast %192 : vector<32x128xf32> to vector<4x8x128xf32>
    %cst_28 = arith.constant dense<0.000000e+00> : vector<4x128xf32>
    %194 = vector.multi_reduction <add>, %193, %cst_28 [1] : vector<4x8x128xf32> to vector<4x128xf32>
    %195 = vector.extract_strided_slice %8 {offsets = [0, 512], sizes = [32, 128], strides = [1, 1]} : vector<32x1024xf32> to vector<32x128xf32>
    %196 = arith.mulf %178, %195 : vector<32x128xf32>
    %197 = vector.shape_cast %196 : vector<32x128xf32> to vector<4x8x128xf32>
    %cst_29 = arith.constant dense<0.000000e+00> : vector<4x128xf32>
    %198 = vector.multi_reduction <add>, %197, %cst_29 [1] : vector<4x8x128xf32> to vector<4x128xf32>
    %199 = arith.maximumf %182, %186 : vector<4x128xf32>
    %200 = arith.maximumf %199, %190 : vector<4x128xf32>
    %201 = arith.maximumf %200, %194 : vector<4x128xf32>
    %202 = arith.maximumf %201, %198 : vector<4x128xf32>
    %203 = arith.subf %182, %202 : vector<4x128xf32>
    %204 = math.exp %203 : vector<4x128xf32>
    %205 = arith.subf %186, %202 : vector<4x128xf32>
    %206 = math.exp %205 : vector<4x128xf32>
    %207 = arith.subf %190, %202 : vector<4x128xf32>
    %208 = math.exp %207 : vector<4x128xf32>
    %209 = arith.subf %194, %202 : vector<4x128xf32>
    %210 = math.exp %209 : vector<4x128xf32>
    %211 = arith.subf %198, %202 : vector<4x128xf32>
    %212 = math.exp %211 : vector<4x128xf32>
    %213 = arith.addf %204, %206 : vector<4x128xf32>
    %214 = arith.addf %213, %208 : vector<4x128xf32>
    %215 = arith.addf %214, %210 : vector<4x128xf32>
    %216 = arith.addf %215, %212 : vector<4x128xf32>
    %217 = tpu.reciprocal %216 {approx = true} : vector<4x128xf32> -> vector<4x128xf32>
    %cst_30 = arith.constant 0.000000e+00 : f32
    %218 = vector.broadcast %cst_30 : f32 to vector<32x128xf32>
    %219 = arith.mulf %204, %217 : vector<4x128xf32>
    %220 = vector.shape_cast %219 : vector<4x128xf32> to vector<4x1x128xf32>
    %221 = vector.shape_cast %220 : vector<4x1x128xf32> to vector<4x1x128xf32>
    %222 = vector.broadcast %221 : vector<4x1x128xf32> to vector<4x8x128xf32>
    %223 = vector.shape_cast %222 : vector<4x8x128xf32> to vector<32x128xf32>
    %224 = vector.extract_strided_slice %9 {offsets = [0, 0], sizes = [32, 128], strides = [1, 1]} : vector<32x1024xf32> to vector<32x128xf32>
    %225 = arith.mulf %223, %224 : vector<32x128xf32>
    %226 = arith.addf %218, %225 : vector<32x128xf32>
    %227 = arith.mulf %206, %217 : vector<4x128xf32>
    %228 = vector.shape_cast %227 : vector<4x128xf32> to vector<4x1x128xf32>
    %229 = vector.shape_cast %228 : vector<4x1x128xf32> to vector<4x1x128xf32>
    %230 = vector.broadcast %229 : vector<4x1x128xf32> to vector<4x8x128xf32>
    %231 = vector.shape_cast %230 : vector<4x8x128xf32> to vector<32x128xf32>
    %232 = vector.extract_strided_slice %9 {offsets = [0, 128], sizes = [32, 128], strides = [1, 1]} : vector<32x1024xf32> to vector<32x128xf32>
    %233 = arith.mulf %231, %232 : vector<32x128xf32>
    %234 = arith.addf %226, %233 : vector<32x128xf32>
    %235 = arith.mulf %208, %217 : vector<4x128xf32>
    %236 = vector.shape_cast %235 : vector<4x128xf32> to vector<4x1x128xf32>
    %237 = vector.shape_cast %236 : vector<4x1x128xf32> to vector<4x1x128xf32>
    %238 = vector.broadcast %237 : vector<4x1x128xf32> to vector<4x8x128xf32>
    %239 = vector.shape_cast %238 : vector<4x8x128xf32> to vector<32x128xf32>
    %240 = vector.extract_strided_slice %9 {offsets = [0, 256], sizes = [32, 128], strides = [1, 1]} : vector<32x1024xf32> to vector<32x128xf32>
    %241 = arith.mulf %239, %240 : vector<32x128xf32>
    %242 = arith.addf %234, %241 : vector<32x128xf32>
    %243 = arith.mulf %210, %217 : vector<4x128xf32>
    %244 = vector.shape_cast %243 : vector<4x128xf32> to vector<4x1x128xf32>
    %245 = vector.shape_cast %244 : vector<4x1x128xf32> to vector<4x1x128xf32>
    %246 = vector.broadcast %245 : vector<4x1x128xf32> to vector<4x8x128xf32>
    %247 = vector.shape_cast %246 : vector<4x8x128xf32> to vector<32x128xf32>
    %248 = vector.extract_strided_slice %9 {offsets = [0, 384], sizes = [32, 128], strides = [1, 1]} : vector<32x1024xf32> to vector<32x128xf32>
    %249 = arith.mulf %247, %248 : vector<32x128xf32>
    %250 = arith.addf %242, %249 : vector<32x128xf32>
    %251 = arith.mulf %212, %217 : vector<4x128xf32>
    %252 = vector.shape_cast %251 : vector<4x128xf32> to vector<4x1x128xf32>
    %253 = vector.shape_cast %252 : vector<4x1x128xf32> to vector<4x1x128xf32>
    %254 = vector.broadcast %253 : vector<4x1x128xf32> to vector<4x8x128xf32>
    %255 = vector.shape_cast %254 : vector<4x8x128xf32> to vector<32x128xf32>
    %256 = vector.extract_strided_slice %9 {offsets = [0, 512], sizes = [32, 128], strides = [1, 1]} : vector<32x1024xf32> to vector<32x128xf32>
    %257 = arith.mulf %255, %256 : vector<32x128xf32>
    %258 = arith.addf %250, %257 : vector<32x128xf32>
    %c0_31 = arith.constant 0 : index
    %c512 = arith.constant 512 : index
    %259 = vector.load %arg7[%c0_31, %c512] : memref<32x1024xf32, #tpu.memory_space<vmem>>, vector<32x128xf32>
    tpu.vector_store %arg7[%c0_31, %c512], %258 {strides = array<i32>} : memref<32x1024xf32, #tpu.memory_space<vmem>>, vector<32x128xf32>,
    %260 = vector.extract_strided_slice %7 {offsets = [0, 640], sizes = [32, 128], strides = [1, 1]} : vector<32x1024xf32> to vector<32x128xf32>
    %261 = vector.extract_strided_slice %8 {offsets = [0, 0], sizes = [32, 128], strides = [1, 1]} : vector<32x1024xf32> to vector<32x128xf32>
    %262 = arith.mulf %260, %261 : vector<32x128xf32>
    %263 = vector.shape_cast %262 : vector<32x128xf32> to vector<4x8x128xf32>
    %cst_32 = arith.constant dense<0.000000e+00> : vector<4x128xf32>
    %264 = vector.multi_reduction <add>, %263, %cst_32 [1] : vector<4x8x128xf32> to vector<4x128xf32>
    %265 = vector.extract_strided_slice %8 {offsets = [0, 128], sizes = [32, 128], strides = [1, 1]} : vector<32x1024xf32> to vector<32x128xf32>
    %266 = arith.mulf %260, %265 : vector<32x128xf32>
    %267 = vector.shape_cast %266 : vector<32x128xf32> to vector<4x8x128xf32>
    %cst_33 = arith.constant dense<0.000000e+00> : vector<4x128xf32>
    %268 = vector.multi_reduction <add>, %267, %cst_33 [1] : vector<4x8x128xf32> to vector<4x128xf32>
    %269 = vector.extract_strided_slice %8 {offsets = [0, 256], sizes = [32, 128], strides = [1, 1]} : vector<32x1024xf32> to vector<32x128xf32>
    %270 = arith.mulf %260, %269 : vector<32x128xf32>
    %271 = vector.shape_cast %270 : vector<32x128xf32> to vector<4x8x128xf32>
    %cst_34 = arith.constant dense<0.000000e+00> : vector<4x128xf32>
    %272 = vector.multi_reduction <add>, %271, %cst_34 [1] : vector<4x8x128xf32> to vector<4x128xf32>
    %273 = vector.extract_strided_slice %8 {offsets = [0, 384], sizes = [32, 128], strides = [1, 1]} : vector<32x1024xf32> to vector<32x128xf32>
    %274 = arith.mulf %260, %273 : vector<32x128xf32>
    %275 = vector.shape_cast %274 : vector<32x128xf32> to vector<4x8x128xf32>
    %cst_35 = arith.constant dense<0.000000e+00> : vector<4x128xf32>
    %276 = vector.multi_reduction <add>, %275, %cst_35 [1] : vector<4x8x128xf32> to vector<4x128xf32>
    %277 = vector.extract_strided_slice %8 {offsets = [0, 512], sizes = [32, 128], strides = [1, 1]} : vector<32x1024xf32> to vector<32x128xf32>
    %278 = arith.mulf %260, %277 : vector<32x128xf32>
    %279 = vector.shape_cast %278 : vector<32x128xf32> to vector<4x8x128xf32>
    %cst_36 = arith.constant dense<0.000000e+00> : vector<4x128xf32>
    %280 = vector.multi_reduction <add>, %279, %cst_36 [1] : vector<4x8x128xf32> to vector<4x128xf32>
    %281 = vector.extract_strided_slice %8 {offsets = [0, 640], sizes = [32, 128], strides = [1, 1]} : vector<32x1024xf32> to vector<32x128xf32>
    %282 = arith.mulf %260, %281 : vector<32x128xf32>
    %283 = vector.shape_cast %282 : vector<32x128xf32> to vector<4x8x128xf32>
    %cst_37 = arith.constant dense<0.000000e+00> : vector<4x128xf32>
    %284 = vector.multi_reduction <add>, %283, %cst_37 [1] : vector<4x8x128xf32> to vector<4x128xf32>
    %285 = arith.maximumf %264, %268 : vector<4x128xf32>
    %286 = arith.maximumf %285, %272 : vector<4x128xf32>
    %287 = arith.maximumf %286, %276 : vector<4x128xf32>
    %288 = arith.maximumf %287, %280 : vector<4x128xf32>
    %289 = arith.maximumf %288, %284 : vector<4x128xf32>
    %290 = arith.subf %264, %289 : vector<4x128xf32>
    %291 = math.exp %290 : vector<4x128xf32>
    %292 = arith.subf %268, %289 : vector<4x128xf32>
    %293 = math.exp %292 : vector<4x128xf32>
    %294 = arith.subf %272, %289 : vector<4x128xf32>
    %295 = math.exp %294 : vector<4x128xf32>
    %296 = arith.subf %276, %289 : vector<4x128xf32>
    %297 = math.exp %296 : vector<4x128xf32>
    %298 = arith.subf %280, %289 : vector<4x128xf32>
    %299 = math.exp %298 : vector<4x128xf32>
    %300 = arith.subf %284, %289 : vector<4x128xf32>
    %301 = math.exp %300 : vector<4x128xf32>
    %302 = arith.addf %291, %293 : vector<4x128xf32>
    %303 = arith.addf %302, %295 : vector<4x128xf32>
    %304 = arith.addf %303, %297 : vector<4x128xf32>
    %305 = arith.addf %304, %299 : vector<4x128xf32>
    %306 = arith.addf %305, %301 : vector<4x128xf32>
    %307 = tpu.reciprocal %306 {approx = true} : vector<4x128xf32> -> vector<4x128xf32>
    %cst_38 = arith.constant 0.000000e+00 : f32
    %308 = vector.broadcast %cst_38 : f32 to vector<32x128xf32>
    %309 = arith.mulf %291, %307 : vector<4x128xf32>
    %310 = vector.shape_cast %309 : vector<4x128xf32> to vector<4x1x128xf32>
    %311 = vector.shape_cast %310 : vector<4x1x128xf32> to vector<4x1x128xf32>
    %312 = vector.broadcast %311 : vector<4x1x128xf32> to vector<4x8x128xf32>
    %313 = vector.shape_cast %312 : vector<4x8x128xf32> to vector<32x128xf32>
    %314 = vector.extract_strided_slice %9 {offsets = [0, 0], sizes = [32, 128], strides = [1, 1]} : vector<32x1024xf32> to vector<32x128xf32>
    %315 = arith.mulf %313, %314 : vector<32x128xf32>
    %316 = arith.addf %308, %315 : vector<32x128xf32>
    %317 = arith.mulf %293, %307 : vector<4x128xf32>
    %318 = vector.shape_cast %317 : vector<4x128xf32> to vector<4x1x128xf32>
    %319 = vector.shape_cast %318 : vector<4x1x128xf32> to vector<4x1x128xf32>
    %320 = vector.broadcast %319 : vector<4x1x128xf32> to vector<4x8x128xf32>
    %321 = vector.shape_cast %320 : vector<4x8x128xf32> to vector<32x128xf32>
    %322 = vector.extract_strided_slice %9 {offsets = [0, 128], sizes = [32, 128], strides = [1, 1]} : vector<32x1024xf32> to vector<32x128xf32>
    %323 = arith.mulf %321, %322 : vector<32x128xf32>
    %324 = arith.addf %316, %323 : vector<32x128xf32>
    %325 = arith.mulf %295, %307 : vector<4x128xf32>
    %326 = vector.shape_cast %325 : vector<4x128xf32> to vector<4x1x128xf32>
    %327 = vector.shape_cast %326 : vector<4x1x128xf32> to vector<4x1x128xf32>
    %328 = vector.broadcast %327 : vector<4x1x128xf32> to vector<4x8x128xf32>
    %329 = vector.shape_cast %328 : vector<4x8x128xf32> to vector<32x128xf32>
    %330 = vector.extract_strided_slice %9 {offsets = [0, 256], sizes = [32, 128], strides = [1, 1]} : vector<32x1024xf32> to vector<32x128xf32>
    %331 = arith.mulf %329, %330 : vector<32x128xf32>
    %332 = arith.addf %324, %331 : vector<32x128xf32>
    %333 = arith.mulf %297, %307 : vector<4x128xf32>
    %334 = vector.shape_cast %333 : vector<4x128xf32> to vector<4x1x128xf32>
    %335 = vector.shape_cast %334 : vector<4x1x128xf32> to vector<4x1x128xf32>
    %336 = vector.broadcast %335 : vector<4x1x128xf32> to vector<4x8x128xf32>
    %337 = vector.shape_cast %336 : vector<4x8x128xf32> to vector<32x128xf32>
    %338 = vector.extract_strided_slice %9 {offsets = [0, 384], sizes = [32, 128], strides = [1, 1]} : vector<32x1024xf32> to vector<32x128xf32>
    %339 = arith.mulf %337, %338 : vector<32x128xf32>
    %340 = arith.addf %332, %339 : vector<32x128xf32>
    %341 = arith.mulf %299, %307 : vector<4x128xf32>
    %342 = vector.shape_cast %341 : vector<4x128xf32> to vector<4x1x128xf32>
    %343 = vector.shape_cast %342 : vector<4x1x128xf32> to vector<4x1x128xf32>
    %344 = vector.broadcast %343 : vector<4x1x128xf32> to vector<4x8x128xf32>
    %345 = vector.shape_cast %344 : vector<4x8x128xf32> to vector<32x128xf32>
    %346 = vector.extract_strided_slice %9 {offsets = [0, 512], sizes = [32, 128], strides = [1, 1]} : vector<32x1024xf32> to vector<32x128xf32>
    %347 = arith.mulf %345, %346 : vector<32x128xf32>
    %348 = arith.addf %340, %347 : vector<32x128xf32>
    %349 = arith.mulf %301, %307 : vector<4x128xf32>
    %350 = vector.shape_cast %349 : vector<4x128xf32> to vector<4x1x128xf32>
    %351 = vector.shape_cast %350 : vector<4x1x128xf32> to vector<4x1x128xf32>
    %352 = vector.broadcast %351 : vector<4x1x128xf32> to vector<4x8x128xf32>
    %353 = vector.shape_cast %352 : vector<4x8x128xf32> to vector<32x128xf32>
    %354 = vector.extract_strided_slice %9 {offsets = [0, 640], sizes = [32, 128], strides = [1, 1]} : vector<32x1024xf32> to vector<32x128xf32>
    %355 = arith.mulf %353, %354 : vector<32x128xf32>
    %356 = arith.addf %348, %355 : vector<32x128xf32>
    %c0_39 = arith.constant 0 : index
    %c640 = arith.constant 640 : index
    %357 = vector.load %arg7[%c0_39, %c640] : memref<32x1024xf32, #tpu.memory_space<vmem>>, vector<32x128xf32>
    tpu.vector_store %arg7[%c0_39, %c640], %356 {strides = array<i32>} : memref<32x1024xf32, #tpu.memory_space<vmem>>, vector<32x128xf32>,
    %358 = vector.extract_strided_slice %7 {offsets = [0, 768], sizes = [32, 128], strides = [1, 1]} : vector<32x1024xf32> to vector<32x128xf32>
    %359 = vector.extract_strided_slice %8 {offsets = [0, 0], sizes = [32, 128], strides = [1, 1]} : vector<32x1024xf32> to vector<32x128xf32>
    %360 = arith.mulf %358, %359 : vector<32x128xf32>
    %361 = vector.shape_cast %360 : vector<32x128xf32> to vector<4x8x128xf32>
    %cst_40 = arith.constant dense<0.000000e+00> : vector<4x128xf32>
    %362 = vector.multi_reduction <add>, %361, %cst_40 [1] : vector<4x8x128xf32> to vector<4x128xf32>
    %363 = vector.extract_strided_slice %8 {offsets = [0, 128], sizes = [32, 128], strides = [1, 1]} : vector<32x1024xf32> to vector<32x128xf32>
    %364 = arith.mulf %358, %363 : vector<32x128xf32>
    %365 = vector.shape_cast %364 : vector<32x128xf32> to vector<4x8x128xf32>
    %cst_41 = arith.constant dense<0.000000e+00> : vector<4x128xf32>
    %366 = vector.multi_reduction <add>, %365, %cst_41 [1] : vector<4x8x128xf32> to vector<4x128xf32>
    %367 = vector.extract_strided_slice %8 {offsets = [0, 256], sizes = [32, 128], strides = [1, 1]} : vector<32x1024xf32> to vector<32x128xf32>
    %368 = arith.mulf %358, %367 : vector<32x128xf32>
    %369 = vector.shape_cast %368 : vector<32x128xf32> to vector<4x8x128xf32>
    %cst_42 = arith.constant dense<0.000000e+00> : vector<4x128xf32>
    %370 = vector.multi_reduction <add>, %369, %cst_42 [1] : vector<4x8x128xf32> to vector<4x128xf32>
    %371 = vector.extract_strided_slice %8 {offsets = [0, 384], sizes = [32, 128], strides = [1, 1]} : vector<32x1024xf32> to vector<32x128xf32>
    %372 = arith.mulf %358, %371 : vector<32x128xf32>
    %373 = vector.shape_cast %372 : vector<32x128xf32> to vector<4x8x128xf32>
    %cst_43 = arith.constant dense<0.000000e+00> : vector<4x128xf32>
    %374 = vector.multi_reduction <add>, %373, %cst_43 [1] : vector<4x8x128xf32> to vector<4x128xf32>
    %375 = vector.extract_strided_slice %8 {offsets = [0, 512], sizes = [32, 128], strides = [1, 1]} : vector<32x1024xf32> to vector<32x128xf32>
    %376 = arith.mulf %358, %375 : vector<32x128xf32>
    %377 = vector.shape_cast %376 : vector<32x128xf32> to vector<4x8x128xf32>
    %cst_44 = arith.constant dense<0.000000e+00> : vector<4x128xf32>
    %378 = vector.multi_reduction <add>, %377, %cst_44 [1] : vector<4x8x128xf32> to vector<4x128xf32>
    %379 = vector.extract_strided_slice %8 {offsets = [0, 640], sizes = [32, 128], strides = [1, 1]} : vector<32x1024xf32> to vector<32x128xf32>
    %380 = arith.mulf %358, %379 : vector<32x128xf32>
    %381 = vector.shape_cast %380 : vector<32x128xf32> to vector<4x8x128xf32>
    %cst_45 = arith.constant dense<0.000000e+00> : vector<4x128xf32>
    %382 = vector.multi_reduction <add>, %381, %cst_45 [1] : vector<4x8x128xf32> to vector<4x128xf32>
    %383 = vector.extract_strided_slice %8 {offsets = [0, 768], sizes = [32, 128], strides = [1, 1]} : vector<32x1024xf32> to vector<32x128xf32>
    %384 = arith.mulf %358, %383 : vector<32x128xf32>
    %385 = vector.shape_cast %384 : vector<32x128xf32> to vector<4x8x128xf32>
    %cst_46 = arith.constant dense<0.000000e+00> : vector<4x128xf32>
    %386 = vector.multi_reduction <add>, %385, %cst_46 [1] : vector<4x8x128xf32> to vector<4x128xf32>
    %387 = arith.maximumf %362, %366 : vector<4x128xf32>
    %388 = arith.maximumf %387, %370 : vector<4x128xf32>
    %389 = arith.maximumf %388, %374 : vector<4x128xf32>
    %390 = arith.maximumf %389, %378 : vector<4x128xf32>
    %391 = arith.maximumf %390, %382 : vector<4x128xf32>
    %392 = arith.maximumf %391, %386 : vector<4x128xf32>
    %393 = arith.subf %362, %392 : vector<4x128xf32>
    %394 = math.exp %393 : vector<4x128xf32>
    %395 = arith.subf %366, %392 : vector<4x128xf32>
    %396 = math.exp %395 : vector<4x128xf32>
    %397 = arith.subf %370, %392 : vector<4x128xf32>
    %398 = math.exp %397 : vector<4x128xf32>
    %399 = arith.subf %374, %392 : vector<4x128xf32>
    %400 = math.exp %399 : vector<4x128xf32>
    %401 = arith.subf %378, %392 : vector<4x128xf32>
    %402 = math.exp %401 : vector<4x128xf32>
    %403 = arith.subf %382, %392 : vector<4x128xf32>
    %404 = math.exp %403 : vector<4x128xf32>
    %405 = arith.subf %386, %392 : vector<4x128xf32>
    %406 = math.exp %405 : vector<4x128xf32>
    %407 = arith.addf %394, %396 : vector<4x128xf32>
    %408 = arith.addf %407, %398 : vector<4x128xf32>
    %409 = arith.addf %408, %400 : vector<4x128xf32>
    %410 = arith.addf %409, %402 : vector<4x128xf32>
    %411 = arith.addf %410, %404 : vector<4x128xf32>
    %412 = arith.addf %411, %406 : vector<4x128xf32>
    %413 = tpu.reciprocal %412 {approx = true} : vector<4x128xf32> -> vector<4x128xf32>
    %cst_47 = arith.constant 0.000000e+00 : f32
    %414 = vector.broadcast %cst_47 : f32 to vector<32x128xf32>
    %415 = arith.mulf %394, %413 : vector<4x128xf32>
    %416 = vector.shape_cast %415 : vector<4x128xf32> to vector<4x1x128xf32>
    %417 = vector.shape_cast %416 : vector<4x1x128xf32> to vector<4x1x128xf32>
    %418 = vector.broadcast %417 : vector<4x1x128xf32> to vector<4x8x128xf32>
    %419 = vector.shape_cast %418 : vector<4x8x128xf32> to vector<32x128xf32>
    %420 = vector.extract_strided_slice %9 {offsets = [0, 0], sizes = [32, 128], strides = [1, 1]} : vector<32x1024xf32> to vector<32x128xf32>
    %421 = arith.mulf %419, %420 : vector<32x128xf32>
    %422 = arith.addf %414, %421 : vector<32x128xf32>
    %423 = arith.mulf %396, %413 : vector<4x128xf32>
    %424 = vector.shape_cast %423 : vector<4x128xf32> to vector<4x1x128xf32>
    %425 = vector.shape_cast %424 : vector<4x1x128xf32> to vector<4x1x128xf32>
    %426 = vector.broadcast %425 : vector<4x1x128xf32> to vector<4x8x128xf32>
    %427 = vector.shape_cast %426 : vector<4x8x128xf32> to vector<32x128xf32>
    %428 = vector.extract_strided_slice %9 {offsets = [0, 128], sizes = [32, 128], strides = [1, 1]} : vector<32x1024xf32> to vector<32x128xf32>
    %429 = arith.mulf %427, %428 : vector<32x128xf32>
    %430 = arith.addf %422, %429 : vector<32x128xf32>
    %431 = arith.mulf %398, %413 : vector<4x128xf32>
    %432 = vector.shape_cast %431 : vector<4x128xf32> to vector<4x1x128xf32>
    %433 = vector.shape_cast %432 : vector<4x1x128xf32> to vector<4x1x128xf32>
    %434 = vector.broadcast %433 : vector<4x1x128xf32> to vector<4x8x128xf32>
    %435 = vector.shape_cast %434 : vector<4x8x128xf32> to vector<32x128xf32>
    %436 = vector.extract_strided_slice %9 {offsets = [0, 256], sizes = [32, 128], strides = [1, 1]} : vector<32x1024xf32> to vector<32x128xf32>
    %437 = arith.mulf %435, %436 : vector<32x128xf32>
    %438 = arith.addf %430, %437 : vector<32x128xf32>
    %439 = arith.mulf %400, %413 : vector<4x128xf32>
    %440 = vector.shape_cast %439 : vector<4x128xf32> to vector<4x1x128xf32>
    %441 = vector.shape_cast %440 : vector<4x1x128xf32> to vector<4x1x128xf32>
    %442 = vector.broadcast %441 : vector<4x1x128xf32> to vector<4x8x128xf32>
    %443 = vector.shape_cast %442 : vector<4x8x128xf32> to vector<32x128xf32>
    %444 = vector.extract_strided_slice %9 {offsets = [0, 384], sizes = [32, 128], strides = [1, 1]} : vector<32x1024xf32> to vector<32x128xf32>
    %445 = arith.mulf %443, %444 : vector<32x128xf32>
    %446 = arith.addf %438, %445 : vector<32x128xf32>
    %447 = arith.mulf %402, %413 : vector<4x128xf32>
    %448 = vector.shape_cast %447 : vector<4x128xf32> to vector<4x1x128xf32>
    %449 = vector.shape_cast %448 : vector<4x1x128xf32> to vector<4x1x128xf32>
    %450 = vector.broadcast %449 : vector<4x1x128xf32> to vector<4x8x128xf32>
    %451 = vector.shape_cast %450 : vector<4x8x128xf32> to vector<32x128xf32>
    %452 = vector.extract_strided_slice %9 {offsets = [0, 512], sizes = [32, 128], strides = [1, 1]} : vector<32x1024xf32> to vector<32x128xf32>
    %453 = arith.mulf %451, %452 : vector<32x128xf32>
    %454 = arith.addf %446, %453 : vector<32x128xf32>
    %455 = arith.mulf %404, %413 : vector<4x128xf32>
    %456 = vector.shape_cast %455 : vector<4x128xf32> to vector<4x1x128xf32>
    %457 = vector.shape_cast %456 : vector<4x1x128xf32> to vector<4x1x128xf32>
    %458 = vector.broadcast %457 : vector<4x1x128xf32> to vector<4x8x128xf32>
    %459 = vector.shape_cast %458 : vector<4x8x128xf32> to vector<32x128xf32>
    %460 = vector.extract_strided_slice %9 {offsets = [0, 640], sizes = [32, 128], strides = [1, 1]} : vector<32x1024xf32> to vector<32x128xf32>
    %461 = arith.mulf %459, %460 : vector<32x128xf32>
    %462 = arith.addf %454, %461 : vector<32x128xf32>
    %463 = arith.mulf %406, %413 : vector<4x128xf32>
    %464 = vector.shape_cast %463 : vector<4x128xf32> to vector<4x1x128xf32>
    %465 = vector.shape_cast %464 : vector<4x1x128xf32> to vector<4x1x128xf32>
    %466 = vector.broadcast %465 : vector<4x1x128xf32> to vector<4x8x128xf32>
    %467 = vector.shape_cast %466 : vector<4x8x128xf32> to vector<32x128xf32>
    %468 = vector.extract_strided_slice %9 {offsets = [0, 768], sizes = [32, 128], strides = [1, 1]} : vector<32x1024xf32> to vector<32x128xf32>
    %469 = arith.mulf %467, %468 : vector<32x128xf32>
    %470 = arith.addf %462, %469 : vector<32x128xf32>
    %c0_48 = arith.constant 0 : index
    %c768 = arith.constant 768 : index
    %471 = vector.load %arg7[%c0_48, %c768] : memref<32x1024xf32, #tpu.memory_space<vmem>>, vector<32x128xf32>
    tpu.vector_store %arg7[%c0_48, %c768], %470 {strides = array<i32>} : memref<32x1024xf32, #tpu.memory_space<vmem>>, vector<32x128xf32>,
    %472 = vector.extract_strided_slice %7 {offsets = [0, 896], sizes = [32, 128], strides = [1, 1]} : vector<32x1024xf32> to vector<32x128xf32>
    %473 = vector.extract_strided_slice %8 {offsets = [0, 0], sizes = [32, 128], strides = [1, 1]} : vector<32x1024xf32> to vector<32x128xf32>
    %474 = arith.mulf %472, %473 : vector<32x128xf32>
    %475 = vector.shape_cast %474 : vector<32x128xf32> to vector<4x8x128xf32>
    %cst_49 = arith.constant dense<0.000000e+00> : vector<4x128xf32>
    %476 = vector.multi_reduction <add>, %475, %cst_49 [1] : vector<4x8x128xf32> to vector<4x128xf32>
    %477 = vector.extract_strided_slice %8 {offsets = [0, 128], sizes = [32, 128], strides = [1, 1]} : vector<32x1024xf32> to vector<32x128xf32>
    %478 = arith.mulf %472, %477 : vector<32x128xf32>
    %479 = vector.shape_cast %478 : vector<32x128xf32> to vector<4x8x128xf32>
    %cst_50 = arith.constant dense<0.000000e+00> : vector<4x128xf32>
    %480 = vector.multi_reduction <add>, %479, %cst_50 [1] : vector<4x8x128xf32> to vector<4x128xf32>
    %481 = vector.extract_strided_slice %8 {offsets = [0, 256], sizes = [32, 128], strides = [1, 1]} : vector<32x1024xf32> to vector<32x128xf32>
    %482 = arith.mulf %472, %481 : vector<32x128xf32>
    %483 = vector.shape_cast %482 : vector<32x128xf32> to vector<4x8x128xf32>
    %cst_51 = arith.constant dense<0.000000e+00> : vector<4x128xf32>
    %484 = vector.multi_reduction <add>, %483, %cst_51 [1] : vector<4x8x128xf32> to vector<4x128xf32>
    %485 = vector.extract_strided_slice %8 {offsets = [0, 384], sizes = [32, 128], strides = [1, 1]} : vector<32x1024xf32> to vector<32x128xf32>
    %486 = arith.mulf %472, %485 : vector<32x128xf32>
    %487 = vector.shape_cast %486 : vector<32x128xf32> to vector<4x8x128xf32>
    %cst_52 = arith.constant dense<0.000000e+00> : vector<4x128xf32>
    %488 = vector.multi_reduction <add>, %487, %cst_52 [1] : vector<4x8x128xf32> to vector<4x128xf32>
    %489 = vector.extract_strided_slice %8 {offsets = [0, 512], sizes = [32, 128], strides = [1, 1]} : vector<32x1024xf32> to vector<32x128xf32>
    %490 = arith.mulf %472, %489 : vector<32x128xf32>
    %491 = vector.shape_cast %490 : vector<32x128xf32> to vector<4x8x128xf32>
    %cst_53 = arith.constant dense<0.000000e+00> : vector<4x128xf32>
    %492 = vector.multi_reduction <add>, %491, %cst_53 [1] : vector<4x8x128xf32> to vector<4x128xf32>
    %493 = vector.extract_strided_slice %8 {offsets = [0, 640], sizes = [32, 128], strides = [1, 1]} : vector<32x1024xf32> to vector<32x128xf32>
    %494 = arith.mulf %472, %493 : vector<32x128xf32>
    %495 = vector.shape_cast %494 : vector<32x128xf32> to vector<4x8x128xf32>
    %cst_54 = arith.constant dense<0.000000e+00> : vector<4x128xf32>
    %496 = vector.multi_reduction <add>, %495, %cst_54 [1] : vector<4x8x128xf32> to vector<4x128xf32>
    %497 = vector.extract_strided_slice %8 {offsets = [0, 768], sizes = [32, 128], strides = [1, 1]} : vector<32x1024xf32> to vector<32x128xf32>
    %498 = arith.mulf %472, %497 : vector<32x128xf32>
    %499 = vector.shape_cast %498 : vector<32x128xf32> to vector<4x8x128xf32>
    %cst_55 = arith.constant dense<0.000000e+00> : vector<4x128xf32>
    %500 = vector.multi_reduction <add>, %499, %cst_55 [1] : vector<4x8x128xf32> to vector<4x128xf32>
    %501 = vector.extract_strided_slice %8 {offsets = [0, 896], sizes = [32, 128], strides = [1, 1]} : vector<32x1024xf32> to vector<32x128xf32>
    %502 = arith.mulf %472, %501 : vector<32x128xf32>
    %503 = vector.shape_cast %502 : vector<32x128xf32> to vector<4x8x128xf32>
    %cst_56 = arith.constant dense<0.000000e+00> : vector<4x128xf32>
    %504 = vector.multi_reduction <add>, %503, %cst_56 [1] : vector<4x8x128xf32> to vector<4x128xf32>
    %505 = arith.maximumf %476, %480 : vector<4x128xf32>
    %506 = arith.maximumf %505, %484 : vector<4x128xf32>
    %507 = arith.maximumf %506, %488 : vector<4x128xf32>
    %508 = arith.maximumf %507, %492 : vector<4x128xf32>
    %509 = arith.maximumf %508, %496 : vector<4x128xf32>
    %510 = arith.maximumf %509, %500 : vector<4x128xf32>
    %511 = arith.maximumf %510, %504 : vector<4x128xf32>
    %512 = arith.subf %476, %511 : vector<4x128xf32>
    %513 = math.exp %512 : vector<4x128xf32>
    %514 = arith.subf %480, %511 : vector<4x128xf32>
    %515 = math.exp %514 : vector<4x128xf32>
    %516 = arith.subf %484, %511 : vector<4x128xf32>
    %517 = math.exp %516 : vector<4x128xf32>
    %518 = arith.subf %488, %511 : vector<4x128xf32>
    %519 = math.exp %518 : vector<4x128xf32>
    %520 = arith.subf %492, %511 : vector<4x128xf32>
    %521 = math.exp %520 : vector<4x128xf32>
    %522 = arith.subf %496, %511 : vector<4x128xf32>
    %523 = math.exp %522 : vector<4x128xf32>
    %524 = arith.subf %500, %511 : vector<4x128xf32>
    %525 = math.exp %524 : vector<4x128xf32>
    %526 = arith.subf %504, %511 : vector<4x128xf32>
    %527 = math.exp %526 : vector<4x128xf32>
    %528 = arith.addf %513, %515 : vector<4x128xf32>
    %529 = arith.addf %528, %517 : vector<4x128xf32>
    %530 = arith.addf %529, %519 : vector<4x128xf32>
    %531 = arith.addf %530, %521 : vector<4x128xf32>
    %532 = arith.addf %531, %523 : vector<4x128xf32>
    %533 = arith.addf %532, %525 : vector<4x128xf32>
    %534 = arith.addf %533, %527 : vector<4x128xf32>
    %535 = tpu.reciprocal %534 {approx = true} : vector<4x128xf32> -> vector<4x128xf32>
    %cst_57 = arith.constant 0.000000e+00 : f32
    %536 = vector.broadcast %cst_57 : f32 to vector<32x128xf32>
    %537 = arith.mulf %513, %535 : vector<4x128xf32>
    %538 = vector.shape_cast %537 : vector<4x128xf32> to vector<4x1x128xf32>
    %539 = vector.shape_cast %538 : vector<4x1x128xf32> to vector<4x1x128xf32>
    %540 = vector.broadcast %539 : vector<4x1x128xf32> to vector<4x8x128xf32>
    %541 = vector.shape_cast %540 : vector<4x8x128xf32> to vector<32x128xf32>
    %542 = vector.extract_strided_slice %9 {offsets = [0, 0], sizes = [32, 128], strides = [1, 1]} : vector<32x1024xf32> to vector<32x128xf32>
    %543 = arith.mulf %541, %542 : vector<32x128xf32>
    %544 = arith.addf %536, %543 : vector<32x128xf32>
    %545 = arith.mulf %515, %535 : vector<4x128xf32>
    %546 = vector.shape_cast %545 : vector<4x128xf32> to vector<4x1x128xf32>
    %547 = vector.shape_cast %546 : vector<4x1x128xf32> to vector<4x1x128xf32>
    %548 = vector.broadcast %547 : vector<4x1x128xf32> to vector<4x8x128xf32>
    %549 = vector.shape_cast %548 : vector<4x8x128xf32> to vector<32x128xf32>
    %550 = vector.extract_strided_slice %9 {offsets = [0, 128], sizes = [32, 128], strides = [1, 1]} : vector<32x1024xf32> to vector<32x128xf32>
    %551 = arith.mulf %549, %550 : vector<32x128xf32>
    %552 = arith.addf %544, %551 : vector<32x128xf32>
    %553 = arith.mulf %517, %535 : vector<4x128xf32>
    %554 = vector.shape_cast %553 : vector<4x128xf32> to vector<4x1x128xf32>
    %555 = vector.shape_cast %554 : vector<4x1x128xf32> to vector<4x1x128xf32>
    %556 = vector.broadcast %555 : vector<4x1x128xf32> to vector<4x8x128xf32>
    %557 = vector.shape_cast %556 : vector<4x8x128xf32> to vector<32x128xf32>
    %558 = vector.extract_strided_slice %9 {offsets = [0, 256], sizes = [32, 128], strides = [1, 1]} : vector<32x1024xf32> to vector<32x128xf32>
    %559 = arith.mulf %557, %558 : vector<32x128xf32>
    %560 = arith.addf %552, %559 : vector<32x128xf32>
    %561 = arith.mulf %519, %535 : vector<4x128xf32>
    %562 = vector.shape_cast %561 : vector<4x128xf32> to vector<4x1x128xf32>
    %563 = vector.shape_cast %562 : vector<4x1x128xf32> to vector<4x1x128xf32>
    %564 = vector.broadcast %563 : vector<4x1x128xf32> to vector<4x8x128xf32>
    %565 = vector.shape_cast %564 : vector<4x8x128xf32> to vector<32x128xf32>
    %566 = vector.extract_strided_slice %9 {offsets = [0, 384], sizes = [32, 128], strides = [1, 1]} : vector<32x1024xf32> to vector<32x128xf32>
    %567 = arith.mulf %565, %566 : vector<32x128xf32>
    %568 = arith.addf %560, %567 : vector<32x128xf32>
    %569 = arith.mulf %521, %535 : vector<4x128xf32>
    %570 = vector.shape_cast %569 : vector<4x128xf32> to vector<4x1x128xf32>
    %571 = vector.shape_cast %570 : vector<4x1x128xf32> to vector<4x1x128xf32>
    %572 = vector.broadcast %571 : vector<4x1x128xf32> to vector<4x8x128xf32>
    %573 = vector.shape_cast %572 : vector<4x8x128xf32> to vector<32x128xf32>
    %574 = vector.extract_strided_slice %9 {offsets = [0, 512], sizes = [32, 128], strides = [1, 1]} : vector<32x1024xf32> to vector<32x128xf32>
    %575 = arith.mulf %573, %574 : vector<32x128xf32>
    %576 = arith.addf %568, %575 : vector<32x128xf32>
    %577 = arith.mulf %523, %535 : vector<4x128xf32>
    %578 = vector.shape_cast %577 : vector<4x128xf32> to vector<4x1x128xf32>
    %579 = vector.shape_cast %578 : vector<4x1x128xf32> to vector<4x1x128xf32>
    %580 = vector.broadcast %579 : vector<4x1x128xf32> to vector<4x8x128xf32>
    %581 = vector.shape_cast %580 : vector<4x8x128xf32> to vector<32x128xf32>
    %582 = vector.extract_strided_slice %9 {offsets = [0, 640], sizes = [32, 128], strides = [1, 1]} : vector<32x1024xf32> to vector<32x128xf32>
    %583 = arith.mulf %581, %582 : vector<32x128xf32>
    %584 = arith.addf %576, %583 : vector<32x128xf32>
    %585 = arith.mulf %525, %535 : vector<4x128xf32>
    %586 = vector.shape_cast %585 : vector<4x128xf32> to vector<4x1x128xf32>
    %587 = vector.shape_cast %586 : vector<4x1x128xf32> to vector<4x1x128xf32>
    %588 = vector.broadcast %587 : vector<4x1x128xf32> to vector<4x8x128xf32>
    %589 = vector.shape_cast %588 : vector<4x8x128xf32> to vector<32x128xf32>
    %590 = vector.extract_strided_slice %9 {offsets = [0, 768], sizes = [32, 128], strides = [1, 1]} : vector<32x1024xf32> to vector<32x128xf32>
    %591 = arith.mulf %589, %590 : vector<32x128xf32>
    %592 = arith.addf %584, %591 : vector<32x128xf32>
    %593 = arith.mulf %527, %535 : vector<4x128xf32>
    %594 = vector.shape_cast %593 : vector<4x128xf32> to vector<4x1x128xf32>
    %595 = vector.shape_cast %594 : vector<4x1x128xf32> to vector<4x1x128xf32>
    %596 = vector.broadcast %595 : vector<4x1x128xf32> to vector<4x8x128xf32>
    %597 = vector.shape_cast %596 : vector<4x8x128xf32> to vector<32x128xf32>
    %598 = vector.extract_strided_slice %9 {offsets = [0, 896], sizes = [32, 128], strides = [1, 1]} : vector<32x1024xf32> to vector<32x128xf32>
    %599 = arith.mulf %597, %598 : vector<32x128xf32>
    %600 = arith.addf %592, %599 : vector<32x128xf32>
    %c0_58 = arith.constant 0 : index
    %c896 = arith.constant 896 : index
    %601 = vector.load %arg7[%c0_58, %c896] : memref<32x1024xf32, #tpu.memory_space<vmem>>, vector<32x128xf32>
    tpu.vector_store %arg7[%c0_58, %c896], %600 {strides = array<i32>} : memref<32x1024xf32, #tpu.memory_space<vmem>>, vector<32x128xf32>,
    %c0_59 = arith.constant 0 : index
    %c0_60 = arith.constant 0 : index
    %602 = vector.load %arg4[%c0_59, %c0_60] : memref<32x32xf32, #tpu.memory_space<vmem>>, vector<32x32xf32>
    %c0_61 = arith.constant 0 : index
    %c0_62 = arith.constant 0 : index
    %603 = vector.load %arg7[%c0_61, %c0_62] : memref<32x1024xf32, #tpu.memory_space<vmem>>, vector<32x1024xf32>
    %cst_63 = arith.constant dense<0.000000e+00> : vector<32x1024xf32>
    %604 = tpu.matmul %602, %603, %cst_63 {dimension_numbers = #tpu.dot_dimension_numbers<[1], [0], [0], [1], [0, 0, 1, 1], [], []>} : vector<32x32xf32>, vector<32x1024xf32>, vector<32x1024xf32> -> vector<32x1024xf32>
    %c0_64 = arith.constant 0 : index
    %c0_65 = arith.constant 0 : index
    %605 = vector.load %arg5[%c0_64, %c0_65] : memref<32x1xf32, #tpu.memory_space<vmem>>, vector<32x1xf32>
    %606 = vector.broadcast %605 : vector<32x1xf32> to vector<32x1024xf32>
    %607 = arith.addf %604, %606 : vector<32x1024xf32>
    %c0_66 = arith.constant 0 : index
    %c0_67 = arith.constant 0 : index
    %c0_68 = arith.constant 0 : index
    %608 = vector.load %arg6[%c0_66, %c0_67, %c0_68] : memref<1x32x1024xf32, #tpu.memory_space<vmem>>, vector<1x32x1024xf32>
    %609 = vector.shape_cast %608 : vector<1x32x1024xf32> to vector<32x1024xf32>
    %610 = vector.shape_cast %607 : vector<32x1024xf32> to vector<1x32x1024xf32>
    tpu.vector_store %arg6[%c0_66, %c0_67, %c0_68], %610 {strides = array<i32>} : memref<1x32x1024xf32, #tpu.memory_space<vmem>>, vector<1x32x1024xf32>,
    return
  }
  func.func @transform_0(%arg0: i32) -> (i32, i32, i32) {
    %c0_i32 = arith.constant 0 : i32
    %c0_i32_0 = arith.constant 0 : i32
    %c0_i32_1 = arith.constant 0 : i32
    return %arg0, %c0_i32, %c0_i32_0 : i32, i32, i32
  }
  func.func @transform_1(%arg0: i32) -> (i32, i32) {
    %c0_i32 = arith.constant 0 : i32
    %c0_i32_0 = arith.constant 0 : i32
    %c0_i32_1 = arith.constant 0 : i32
    return %c0_i32, %c0_i32_0 : i32, i32
  }
  func.func @transform_2(%arg0: i32) -> (i32, i32) {
    %c0_i32 = arith.constant 0 : i32
    %c0_i32_0 = arith.constant 0 : i32
    %c0_i32_1 = arith.constant 0 : i32
    return %c0_i32, %c0_i32_0 : i32, i32
  }
  func.func @transform_3(%arg0: i32) -> (i32, i32) {
    %c0_i32 = arith.constant 0 : i32
    %c0_i32_0 = arith.constant 0 : i32
    %c0_i32_1 = arith.constant 0 : i32
    return %c0_i32, %c0_i32_0 : i32, i32
  }
  func.func @transform_4(%arg0: i32) -> (i32, i32) {
    %c0_i32 = arith.constant 0 : i32
    %c0_i32_0 = arith.constant 0 : i32
    %c0_i32_1 = arith.constant 0 : i32
    return %c0_i32, %c0_i32_0 : i32, i32
  }
  func.func @transform_5(%arg0: i32) -> (i32, i32, i32) {
    %c0_i32 = arith.constant 0 : i32
    %c0_i32_0 = arith.constant 0 : i32
    %c0_i32_1 = arith.constant 0 : i32
    return %arg0, %c0_i32, %c0_i32_0 : i32, i32, i32
  }
}

</mosaic_0001>

<llo_original>
// kernel: mhsa_forward.1
$region0: #{mhsa_forward.1}
  #allocation0 [shape = 'u32[]', space=smem, size = 0x4, offset = 0x4, fixed_abs, tag = 'smem constant byte address 0x4 - core index']
  #allocation1 [shape = 'u32[72,128]{1,0:T(1,128)}', space=vmem, size = 0x9000, scoped, tag = 'internal scratch']
  #allocation2 [shape = 'f32[32,1024]{1,0:T(8,128)}', space=vmem, size = 0x20000, scoped, tag = 'scratch operand']
  %s0 = inlined_call_operand.vmem [shape: f32[1,32,1024], index: 0, kind: input, shape index: {}]
  %s1 = inlined_call_operand.vmem [shape: f32[96,32], index: 1, kind: input, shape index: {}]
  %s2 = inlined_call_operand.vmem [shape: f32[96,1], index: 2, kind: input, shape index: {}]
  %s3 = inlined_call_operand.vmem [shape: f32[32,32], index: 3, kind: input, shape index: {}]
  %s4 = inlined_call_operand.vmem [shape: f32[32,1], index: 4, kind: input, shape index: {}]
  %s5 = inlined_call_operand.vmem [shape: f32[1,32,1024], index: 5, kind: output, shape index: {}]
  %s6 = sld [smem:[#allocation0]]
  $region30: #{mhsa_forward.1} parent=0
    _
  %s8 = ssub.s32 1, %s6
  %s9 = scalar_select 0, %s8, %s6
  // Predicated region
  $region2: #{mhsa_forward.1} parent=0 // pred_check
    _
  $region3: #{mhsa_forward.1} parent=0 // pred_check_branch
    %11 = sbr.rel (0) target = $region5
  $region4: #{mhsa_forward.1} parent=0 // pred_region
    _
  $region5: #{mhsa_forward.1} parent=0 // pred_fallthru
    _
  // Predicated region
  $region6: #{mhsa_forward.1} parent=0 // pred_check
    _
  $region7: #{mhsa_forward.1} parent=0 // pred_check_branch
    %13 = sbr.rel (0) target = $region9
  $region8: #{mhsa_forward.1} parent=0 // pred_region
    _
  $region9: #{mhsa_forward.1} parent=0 // pred_fallthru
    _
  // Predicated region
  $region10: #{mhsa_forward.1} parent=0 // pred_check
    _
  $region11: #{mhsa_forward.1} parent=0 // pred_check_branch
    %15 = sbr.rel (0) target = $region13
  $region12: #{mhsa_forward.1} parent=0 // pred_region
    _
  $region13: #{mhsa_forward.1} parent=0 // pred_fallthru
    _
  // Predicated region
  $region14: #{mhsa_forward.1} parent=0 // pred_check
    _
  $region15: #{mhsa_forward.1} parent=0 // pred_check_branch
    %17 = sbr.rel (0) target = $region17
  $region16: #{mhsa_forward.1} parent=0 // pred_region
    _
  $region17: #{mhsa_forward.1} parent=0 // pred_fallthru
    _
  // Predicated region
  $region18: #{mhsa_forward.1} parent=0 // pred_check
    _
  $region19: #{mhsa_forward.1} parent=0 // pred_check_branch
    %19 = sbr.rel (0) target = $region21
  $region20: #{mhsa_forward.1} parent=0 // pred_region
    _
  $region21: #{mhsa_forward.1} parent=0 // pred_fallthru
    _
  %v20 = vld [vmem:[%s0] sm:$0xff]
  %v21 = vld [vmem:[%s0 + $0x8] sm:$0xff]
  %v22 = vld [vmem:[%s0 + $0x10] sm:$0xff]
  %v23 = vld [vmem:[%s0 + $0x18] sm:$0xff]
  %v24 = vld [vmem:[%s0 + $0x20] sm:$0xff]
  %v25 = vld [vmem:[%s0 + $0x28] sm:$0xff]
  %v26 = vld [vmem:[%s0 + $0x30] sm:$0xff]
  %v27 = vld [vmem:[%s0 + $0x38] sm:$0xff]
  %v28 = vld [vmem:[%s0 + $0x40] sm:$0xff]
  %v29 = vld [vmem:[%s0 + $0x48] sm:$0xff]
  %v30 = vld [vmem:[%s0 + $0x50] sm:$0xff]
  %v31 = vld [vmem:[%s0 + $0x58] sm:$0xff]
  %v32 = vld [vmem:[%s0 + $0x60] sm:$0xff]
  %v33 = vld [vmem:[%s0 + $0x68] sm:$0xff]
  %v34 = vld [vmem:[%s0 + $0x70] sm:$0xff]
  %v35 = vld [vmem:[%s0 + $0x78] sm:$0xff]
  %v36 = vld [vmem:[%s0 + $0x80] sm:$0xff]
  %v37 = vld [vmem:[%s0 + $0x88] sm:$0xff]
  %v38 = vld [vmem:[%s0 + $0x90] sm:$0xff]
  %v39 = vld [vmem:[%s0 + $0x98] sm:$0xff]
  %v40 = vld [vmem:[%s0 + $0xa0] sm:$0xff]
  %v41 = vld [vmem:[%s0 + $0xa8] sm:$0xff]
  %v42 = vld [vmem:[%s0 + $0xb0] sm:$0xff]
  %v43 = vld [vmem:[%s0 + $0xb8] sm:$0xff]
  %v44 = vld [vmem:[%s0 + $0xc0] sm:$0xff]
  %v45 = vld [vmem:[%s0 + $0xc8] sm:$0xff]
  %v46 = vld [vmem:[%s0 + $0xd0] sm:$0xff]
  %v47 = vld [vmem:[%s0 + $0xd8] sm:$0xff]
  %v48 = vld [vmem:[%s0 + $0xe0] sm:$0xff]
  %v49 = vld [vmem:[%s0 + $0xe8] sm:$0xff]
  %v50 = vld [vmem:[%s0 + $0xf0] sm:$0xff]
  %v51 = vld [vmem:[%s0 + $0xf8] sm:$0xff]
  %v52 = vld [vmem:[%s1] sm:$0xff]
  %v53 = vld [vmem:[%s1 + $0x8] sm:$0xff]
  %v54 = vld [vmem:[%s1 + $0x10] sm:$0xff]
  %v55 = vld [vmem:[%s1 + $0x18] sm:$0xff]
  %v56 = vld [vmem:[%s1 + $0x20] sm:$0xff]
  %v57 = vld [vmem:[%s1 + $0x28] sm:$0xff]
  %v58 = vld [vmem:[%s1 + $0x30] sm:$0xff]
  %v59 = vld [vmem:[%s1 + $0x38] sm:$0xff]
  %v60 = vld [vmem:[%s1 + $0x40] sm:$0xff]
  %v61 = vld [vmem:[%s1 + $0x48] sm:$0xff]
  %v62 = vld [vmem:[%s1 + $0x50] sm:$0xff]
  %v63 = vld [vmem:[%s1 + $0x58] sm:$0xff]
  %v64 = vld [vmem:[%s2] sm:$0xff]
  %v65 = vld [vmem:[%s2 + $0x8] sm:$0xff]
  %v66 = vld [vmem:[%s2 + $0x10] sm:$0xff]
  %v67 = vld [vmem:[%s2 + $0x18] sm:$0xff]
  %v68 = vld [vmem:[%s2 + $0x20] sm:$0xff]
  %v69 = vld [vmem:[%s2 + $0x28] sm:$0xff]
  %v70 = vld [vmem:[%s2 + $0x30] sm:$0xff]
  %v71 = vld [vmem:[%s2 + $0x38] sm:$0xff]
  %v72 = vld [vmem:[%s2 + $0x40] sm:$0xff]
  %v73 = vld [vmem:[%s2 + $0x48] sm:$0xff]
  %v74 = vld [vmem:[%s2 + $0x50] sm:$0xff]
  %v75 = vld [vmem:[%s2 + $0x58] sm:$0xff]
  %77 = vset.pattern.permute.xlu0 0
  %78 = vperm.xlu0 %77, %v64
  %v79 = vpop.permute.xlu0 %78
  %82 = vset.pattern.permute.xlu0 0
  %83 = vperm.xlu0 %82, %v65
  %v84 = vpop.permute.xlu0 %83
  %87 = vset.pattern.permute.xlu0 0
  %88 = vperm.xlu0 %87, %v66
  %v89 = vpop.permute.xlu0 %88
  %92 = vset.pattern.permute.xlu0 0
  %93 = vperm.xlu0 %92, %v67
  %v94 = vpop.permute.xlu0 %93
  %97 = vset.pattern.permute.xlu0 0
  %98 = vperm.xlu0 %97, %v68
  %v99 = vpop.permute.xlu0 %98
  %102 = vset.pattern.permute.xlu0 0
  %103 = vperm.xlu0 %102, %v69
  %v104 = vpop.permute.xlu0 %103
  %107 = vset.pattern.permute.xlu0 0
  %108 = vperm.xlu0 %107, %v70
  %v109 = vpop.permute.xlu0 %108
  %112 = vset.pattern.permute.xlu0 0
  %113 = vperm.xlu0 %112, %v71
  %v114 = vpop.permute.xlu0 %113
  %117 = vset.pattern.permute.xlu0 0
  %118 = vperm.xlu0 %117, %v72
  %v119 = vpop.permute.xlu0 %118
  %122 = vset.pattern.permute.xlu0 0
  %123 = vperm.xlu0 %122, %v73
  %v124 = vpop.permute.xlu0 %123
  %127 = vset.pattern.permute.xlu0 0
  %128 = vperm.xlu0 %127, %v74
  %v129 = vpop.permute.xlu0 %128
  %132 = vset.pattern.permute.xlu0 0
  %133 = vperm.xlu0 %132, %v75
  %v134 = vpop.permute.xlu0 %133
  %vm136 = vcmask 261120
  %v138 = vsel %vm136, %v52, 0
  %v141 = vsel %vm136, %v53, 0
  %v144 = vsel %vm136, %v54, 0
  %v147 = vsel %vm136, %v55, 0
  %v150 = vsel %vm136, %v56, 0
  %v153 = vsel %vm136, %v57, 0
  %v156 = vsel %vm136, %v58, 0
  %v159 = vsel %vm136, %v59, 0
  %v162 = vsel %vm136, %v60, 0
  %v165 = vsel %vm136, %v61, 0
  %v168 = vsel %vm136, %v62, 0
  %v171 = vsel %vm136, %v63, 0
  %173 = vmatpush.msra.mxu0 0.0
  %174 = vmatpush.msra.mxu0 0.0
  %175 = vmatpush.msra.mxu0 0.0
  %176 = vmatpush.msra.mxu0 0.0
  %177 = vmatpush.msra.mxu0 0.0
  %178 = vmatpush.msra.mxu0 0.0
  %179 = vmatpush.msra.mxu0 0.0
  %180 = vmatpush.msra.mxu0 0.0
  %181 = vmatpush.msra.mxu0 0.0
  %182 = vmatpush.msra.mxu0 0.0
  %183 = vmatpush.msra.mxu0 0.0
  %184 = vmatpush.msra.mxu0 0.0
  %185 = vmatpush.msra.mxu0 %v44
  %186 = vmatpush.msra.mxu0 %v36
  %187 = vmatpush.msra.mxu0 %v28
  %188 = vmatpush.msra.mxu0 %v20
  %189 = vmatmul.f32.gmra.mxu0 %v138
  %v190 = vpop.f32.mrf.mxu0
  %v191 = vadd.f32 %v79, %v190
  %192 = vmatmul.f32.gmra.mxu0 %v141
  %v193 = vpop.f32.mrf.mxu0
  %v194 = vadd.f32 %v84, %v193
  %195 = vmatmul.f32.gmra.mxu0 %v144
  %v196 = vpop.f32.mrf.mxu0
  %v197 = vadd.f32 %v89, %v196
  %198 = vmatmul.f32.gmra.mxu0 %v147
  %v199 = vpop.f32.mrf.mxu0
  %v200 = vadd.f32 %v94, %v199
  %201 = vmatmul.f32.gmra.mxu0 %v150
  %v202 = vpop.f32.mrf.mxu0
  %v203 = vadd.f32 %v99, %v202
  %204 = vmatmul.f32.gmra.mxu0 %v153
  %v205 = vpop.f32.mrf.mxu0
  %v206 = vadd.f32 %v104, %v205
  %207 = vmatmul.f32.gmra.mxu0 %v156
  %v208 = vpop.f32.mrf.mxu0
  %v209 = vadd.f32 %v109, %v208
  %210 = vmatmul.f32.gmra.mxu0 %v159
  %v211 = vpop.f32.mrf.mxu0
  %v212 = vadd.f32 %v114, %v211
  %213 = vmatmul.f32.gmra.mxu0 %v162
  %v214 = vpop.f32.mrf.mxu0
  %v215 = vadd.f32 %v119, %v214
  %216 = vmatmul.f32.gmra.mxu0 %v165
  %v217 = vpop.f32.mrf.mxu0
  %v218 = vadd.f32 %v124, %v217
  %219 = vmatmul.f32.gmra.mxu0 %v168
  %v220 = vpop.f32.mrf.mxu0
  %v221 = vadd.f32 %v129, %v220
  %222 = vmatmul.f32.gmra.mxu0 %v171
  %v223 = vpop.f32.mrf.mxu0
  %v224 = vadd.f32 %v134, %v223
  %225 = vdwg.mxu0
  %226 = vmatpush.msra.mxu0 0.0
  %227 = vmatpush.msra.mxu0 0.0
  %228 = vmatpush.msra.mxu0 0.0
  %229 = vmatpush.msra.mxu0 0.0
  %230 = vmatpush.msra.mxu0 0.0
  %231 = vmatpush.msra.mxu0 0.0
  %232 = vmatpush.msra.mxu0 0.0
  %233 = vmatpush.msra.mxu0 0.0
  %234 = vmatpush.msra.mxu0 0.0
  %235 = vmatpush.msra.mxu0 0.0
  %236 = vmatpush.msra.mxu0 0.0
  %237 = vmatpush.msra.mxu0 0.0
  %238 = vmatpush.msra.mxu0 %v45
  %239 = vmatpush.msra.mxu0 %v37
  %240 = vmatpush.msra.mxu0 %v29
  %241 = vmatpush.msra.mxu0 %v21
  %242 = vmatmul.f32.gmra.mxu0 %v138
  %v243 = vpop.f32.mrf.mxu0
  %v244 = vadd.f32 %v79, %v243
  %245 = vmatmul.f32.gmra.mxu0 %v141
  %v246 = vpop.f32.mrf.mxu0
  %v247 = vadd.f32 %v84, %v246
  %248 = vmatmul.f32.gmra.mxu0 %v144
  %v249 = vpop.f32.mrf.mxu0
  %v250 = vadd.f32 %v89, %v249
  %251 = vmatmul.f32.gmra.mxu0 %v147
  %v252 = vpop.f32.mrf.mxu0
  %v253 = vadd.f32 %v94, %v252
  %254 = vmatmul.f32.gmra.mxu0 %v150
  %v255 = vpop.f32.mrf.mxu0
  %v256 = vadd.f32 %v99, %v255
  %257 = vmatmul.f32.gmra.mxu0 %v153
  %v258 = vpop.f32.mrf.mxu0
  %v259 = vadd.f32 %v104, %v258
  %260 = vmatmul.f32.gmra.mxu0 %v156
  %v261 = vpop.f32.mrf.mxu0
  %v262 = vadd.f32 %v109, %v261
  %263 = vmatmul.f32.gmra.mxu0 %v159
  %v264 = vpop.f32.mrf.mxu0
  %v265 = vadd.f32 %v114, %v264
  %266 = vmatmul.f32.gmra.mxu0 %v162
  %v267 = vpop.f32.mrf.mxu0
  %v268 = vadd.f32 %v119, %v267
  %269 = vmatmul.f32.gmra.mxu0 %v165
  %v270 = vpop.f32.mrf.mxu0
  %v271 = vadd.f32 %v124, %v270
  %272 = vmatmul.f32.gmra.mxu0 %v168
  %v273 = vpop.f32.mrf.mxu0
  %v274 = vadd.f32 %v129, %v273
  %275 = vmatmul.f32.gmra.mxu0 %v171
  %v276 = vpop.f32.mrf.mxu0
  %v277 = vadd.f32 %v134, %v276
  %278 = vdwg.mxu0
  %279 = vmatpush.msra.mxu0 0.0
  %280 = vmatpush.msra.mxu0 0.0
  %281 = vmatpush.msra.mxu0 0.0
  %282 = vmatpush.msra.mxu0 0.0
  %283 = vmatpush.msra.mxu0 0.0
  %284 = vmatpush.msra.mxu0 0.0
  %285 = vmatpush.msra.mxu0 0.0
  %286 = vmatpush.msra.mxu0 0.0
  %287 = vmatpush.msra.mxu0 0.0
  %288 = vmatpush.msra.mxu0 0.0
  %289 = vmatpush.msra.mxu0 0.0
  %290 = vmatpush.msra.mxu0 0.0
  %291 = vmatpush.msra.mxu0 %v46
  %292 = vmatpush.msra.mxu0 %v38
  %293 = vmatpush.msra.mxu0 %v30
  %294 = vmatpush.msra.mxu0 %v22
  %295 = vmatmul.f32.gmra.mxu0 %v138
  %v296 = vpop.f32.mrf.mxu0
  %v297 = vadd.f32 %v79, %v296
  %298 = vmatmul.f32.gmra.mxu0 %v141
  %v299 = vpop.f32.mrf.mxu0
  %v300 = vadd.f32 %v84, %v299
  %301 = vmatmul.f32.gmra.mxu0 %v144
  %v302 = vpop.f32.mrf.mxu0
  %v303 = vadd.f32 %v89, %v302
  %304 = vmatmul.f32.gmra.mxu0 %v147
  %v305 = vpop.f32.mrf.mxu0
  %v306 = vadd.f32 %v94, %v305
  %307 = vmatmul.f32.gmra.mxu0 %v150
  %v308 = vpop.f32.mrf.mxu0
  %v309 = vadd.f32 %v99, %v308
  %310 = vmatmul.f32.gmra.mxu0 %v153
  %v311 = vpop.f32.mrf.mxu0
  %v312 = vadd.f32 %v104, %v311
  %313 = vmatmul.f32.gmra.mxu0 %v156
  %v314 = vpop.f32.mrf.mxu0
  %v315 = vadd.f32 %v109, %v314
  %316 = vmatmul.f32.gmra.mxu0 %v159
  %v317 = vpop.f32.mrf.mxu0
  %v318 = vadd.f32 %v114, %v317
  %319 = vmatmul.f32.gmra.mxu0 %v162
  %v320 = vpop.f32.mrf.mxu0
  %v321 = vadd.f32 %v119, %v320
  %322 = vmatmul.f32.gmra.mxu0 %v165
  %v323 = vpop.f32.mrf.mxu0
  %v324 = vadd.f32 %v124, %v323
  %325 = vmatmul.f32.gmra.mxu0 %v168
  %v326 = vpop.f32.mrf.mxu0
  %v327 = vadd.f32 %v129, %v326
  %328 = vmatmul.f32.gmra.mxu0 %v171
  %v329 = vpop.f32.mrf.mxu0
  %v330 = vadd.f32 %v134, %v329
  %331 = vdwg.mxu0
  %332 = vmatpush.msra.mxu0 0.0
  %333 = vmatpush.msra.mxu0 0.0
  %334 = vmatpush.msra.mxu0 0.0
  %335 = vmatpush.msra.mxu0 0.0
  %336 = vmatpush.msra.mxu0 0.0
  %337 = vmatpush.msra.mxu0 0.0
  %338 = vmatpush.msra.mxu0 0.0
  %339 = vmatpush.msra.mxu0 0.0
  %340 = vmatpush.msra.mxu0 0.0
  %341 = vmatpush.msra.mxu0 0.0
  %342 = vmatpush.msra.mxu0 0.0
  %343 = vmatpush.msra.mxu0 0.0
  %344 = vmatpush.msra.mxu0 %v47
  %345 = vmatpush.msra.mxu0 %v39
  %346 = vmatpush.msra.mxu0 %v31
  %347 = vmatpush.msra.mxu0 %v23
  %348 = vmatmul.f32.gmra.mxu0 %v138
  %v349 = vpop.f32.mrf.mxu0
  %v350 = vadd.f32 %v79, %v349
  %351 = vmatmul.f32.gmra.mxu0 %v141
  %v352 = vpop.f32.mrf.mxu0
  %v353 = vadd.f32 %v84, %v352
  %354 = vmatmul.f32.gmra.mxu0 %v144
  %v355 = vpop.f32.mrf.mxu0
  %v356 = vadd.f32 %v89, %v355
  %357 = vmatmul.f32.gmra.mxu0 %v147
  %v358 = vpop.f32.mrf.mxu0
  %v359 = vadd.f32 %v94, %v358
  %360 = vmatmul.f32.gmra.mxu0 %v150
  %v361 = vpop.f32.mrf.mxu0
  %v362 = vadd.f32 %v99, %v361
  %363 = vmatmul.f32.gmra.mxu0 %v153
  %v364 = vpop.f32.mrf.mxu0
  %v365 = vadd.f32 %v104, %v364
  %366 = vmatmul.f32.gmra.mxu0 %v156
  %v367 = vpop.f32.mrf.mxu0
  %v368 = vadd.f32 %v109, %v367
  %369 = vmatmul.f32.gmra.mxu0 %v159
  %v370 = vpop.f32.mrf.mxu0
  %v371 = vadd.f32 %v114, %v370
  %372 = vmatmul.f32.gmra.mxu0 %v162
  %v373 = vpop.f32.mrf.mxu0
  %v374 = vadd.f32 %v119, %v373
  %375 = vmatmul.f32.gmra.mxu0 %v165
  %v376 = vpop.f32.mrf.mxu0
  %v377 = vadd.f32 %v124, %v376
  %378 = vmatmul.f32.gmra.mxu0 %v168
  %v379 = vpop.f32.mrf.mxu0
  %v380 = vadd.f32 %v129, %v379
  %381 = vmatmul.f32.gmra.mxu0 %v171
  %v382 = vpop.f32.mrf.mxu0
  %v383 = vadd.f32 %v134, %v382
  %384 = vdwg.mxu0
  %385 = vmatpush.msra.mxu0 0.0
  %386 = vmatpush.msra.mxu0 0.0
  %387 = vmatpush.msra.mxu0 0.0
  %388 = vmatpush.msra.mxu0 0.0
  %389 = vmatpush.msra.mxu0 0.0
  %390 = vmatpush.msra.mxu0 0.0
  %391 = vmatpush.msra.mxu0 0.0
  %392 = vmatpush.msra.mxu0 0.0
  %393 = vmatpush.msra.mxu0 0.0
  %394 = vmatpush.msra.mxu0 0.0
  %395 = vmatpush.msra.mxu0 0.0
  %396 = vmatpush.msra.mxu0 0.0
  %397 = vmatpush.msra.mxu0 %v48
  %398 = vmatpush.msra.mxu0 %v40
  %399 = vmatpush.msra.mxu0 %v32
  %400 = vmatpush.msra.mxu0 %v24
  %401 = vmatmul.f32.gmra.mxu0 %v138
  %v402 = vpop.f32.mrf.mxu0
  %v403 = vadd.f32 %v79, %v402
  %404 = vmatmul.f32.gmra.mxu0 %v141
  %v405 = vpop.f32.mrf.mxu0
  %v406 = vadd.f32 %v84, %v405
  %407 = vmatmul.f32.gmra.mxu0 %v144
  %v408 = vpop.f32.mrf.mxu0
  %v409 = vadd.f32 %v89, %v408
  %410 = vmatmul.f32.gmra.mxu0 %v147
  %v411 = vpop.f32.mrf.mxu0
  %v412 = vadd.f32 %v94, %v411
  %413 = vmatmul.f32.gmra.mxu0 %v150
  %v414 = vpop.f32.mrf.mxu0
  %v415 = vadd.f32 %v99, %v414
  %416 = vmatmul.f32.gmra.mxu0 %v153
  %v417 = vpop.f32.mrf.mxu0
  %v418 = vadd.f32 %v104, %v417
  %419 = vmatmul.f32.gmra.mxu0 %v156
  %v420 = vpop.f32.mrf.mxu0
  %v421 = vadd.f32 %v109, %v420
  %422 = vmatmul.f32.gmra.mxu0 %v159
  %v423 = vpop.f32.mrf.mxu0
  %v424 = vadd.f32 %v114, %v423
  %425 = vmatmul.f32.gmra.mxu0 %v162
  %v426 = vpop.f32.mrf.mxu0
  %v427 = vadd.f32 %v119, %v426
  %428 = vmatmul.f32.gmra.mxu0 %v165
  %v429 = vpop.f32.mrf.mxu0
  %v430 = vadd.f32 %v124, %v429
  %431 = vmatmul.f32.gmra.mxu0 %v168
  %v432 = vpop.f32.mrf.mxu0
  %v433 = vadd.f32 %v129, %v432
  %434 = vmatmul.f32.gmra.mxu0 %v171
  %v435 = vpop.f32.mrf.mxu0
  %v436 = vadd.f32 %v134, %v435
  %437 = vdwg.mxu0
  %438 = vmatpush.msra.mxu0 0.0
  %439 = vmatpush.msra.mxu0 0.0
  %440 = vmatpush.msra.mxu0 0.0
  %441 = vmatpush.msra.mxu0 0.0
  %442 = vmatpush.msra.mxu0 0.0
  %443 = vmatpush.msra.mxu0 0.0
  %444 = vmatpush.msra.mxu0 0.0
  %445 = vmatpush.msra.mxu0 0.0
  %446 = vmatpush.msra.mxu0 0.0
  %447 = vmatpush.msra.mxu0 0.0
  %448 = vmatpush.msra.mxu0 0.0
  %449 = vmatpush.msra.mxu0 0.0
  %450 = vmatpush.msra.mxu0 %v49
  %451 = vmatpush.msra.mxu0 %v41
  %452 = vmatpush.msra.mxu0 %v33
  %453 = vmatpush.msra.mxu0 %v25
  %454 = vmatmul.f32.gmra.mxu0 %v138
  %v455 = vpop.f32.mrf.mxu0
  %v456 = vadd.f32 %v79, %v455
  %457 = vmatmul.f32.gmra.mxu0 %v141
  %v458 = vpop.f32.mrf.mxu0
  %v459 = vadd.f32 %v84, %v458
  %460 = vmatmul.f32.gmra.mxu0 %v144
  %v461 = vpop.f32.mrf.mxu0
  %v462 = vadd.f32 %v89, %v461
  %463 = vmatmul.f32.gmra.mxu0 %v147
  %v464 = vpop.f32.mrf.mxu0
  %v465 = vadd.f32 %v94, %v464
  %466 = vmatmul.f32.gmra.mxu0 %v150
  %v467 = vpop.f32.mrf.mxu0
  %v468 = vadd.f32 %v99, %v467
  %469 = vmatmul.f32.gmra.mxu0 %v153
  %v470 = vpop.f32.mrf.mxu0
  %v471 = vadd.f32 %v104, %v470
  %472 = vmatmul.f32.gmra.mxu0 %v156
  %v473 = vpop.f32.mrf.mxu0
  %v474 = vadd.f32 %v109, %v473
  %475 = vmatmul.f32.gmra.mxu0 %v159
  %v476 = vpop.f32.mrf.mxu0
  %v477 = vadd.f32 %v114, %v476
  %478 = vmatmul.f32.gmra.mxu0 %v162
  %v479 = vpop.f32.mrf.mxu0
  %v480 = vadd.f32 %v119, %v479
  %481 = vmatmul.f32.gmra.mxu0 %v165
  %v482 = vpop.f32.mrf.mxu0
  %v483 = vadd.f32 %v124, %v482
  %484 = vmatmul.f32.gmra.mxu0 %v168
  %v485 = vpop.f32.mrf.mxu0
  %v486 = vadd.f32 %v129, %v485
  %487 = vmatmul.f32.gmra.mxu0 %v171
  %v488 = vpop.f32.mrf.mxu0
  %v489 = vadd.f32 %v134, %v488
  %490 = vdwg.mxu0
  %491 = vmatpush.msra.mxu0 0.0
  %492 = vmatpush.msra.mxu0 0.0
  %493 = vmatpush.msra.mxu0 0.0
  %494 = vmatpush.msra.mxu0 0.0
  %495 = vmatpush.msra.mxu0 0.0
  %496 = vmatpush.msra.mxu0 0.0
  %497 = vmatpush.msra.mxu0 0.0
  %498 = vmatpush.msra.mxu0 0.0
  %499 = vmatpush.msra.mxu0 0.0
  %500 = vmatpush.msra.mxu0 0.0
  %501 = vmatpush.msra.mxu0 0.0
  %502 = vmatpush.msra.mxu0 0.0
  %503 = vmatpush.msra.mxu0 %v50
  %504 = vmatpush.msra.mxu0 %v42
  %505 = vmatpush.msra.mxu0 %v34
  %506 = vmatpush.msra.mxu0 %v26
  %507 = vmatmul.f32.gmra.mxu0 %v138
  %v508 = vpop.f32.mrf.mxu0
  %v509 = vadd.f32 %v79, %v508
  %510 = vmatmul.f32.gmra.mxu0 %v141
  %v511 = vpop.f32.mrf.mxu0
  %v512 = vadd.f32 %v84, %v511
  %513 = vmatmul.f32.gmra.mxu0 %v144
  %v514 = vpop.f32.mrf.mxu0
  %v515 = vadd.f32 %v89, %v514
  %516 = vmatmul.f32.gmra.mxu0 %v147
  %v517 = vpop.f32.mrf.mxu0
  %v518 = vadd.f32 %v94, %v517
  %519 = vmatmul.f32.gmra.mxu0 %v150
  %v520 = vpop.f32.mrf.mxu0
  %v521 = vadd.f32 %v99, %v520
  %522 = vmatmul.f32.gmra.mxu0 %v153
  %v523 = vpop.f32.mrf.mxu0
  %v524 = vadd.f32 %v104, %v523
  %525 = vmatmul.f32.gmra.mxu0 %v156
  %v526 = vpop.f32.mrf.mxu0
  %v527 = vadd.f32 %v109, %v526
  %528 = vmatmul.f32.gmra.mxu0 %v159
  %v529 = vpop.f32.mrf.mxu0
  %v530 = vadd.f32 %v114, %v529
  %531 = vmatmul.f32.gmra.mxu0 %v162
  %v532 = vpop.f32.mrf.mxu0
  %v533 = vadd.f32 %v119, %v532
  %534 = vmatmul.f32.gmra.mxu0 %v165
  %v535 = vpop.f32.mrf.mxu0
  %v536 = vadd.f32 %v124, %v535
  %537 = vmatmul.f32.gmra.mxu0 %v168
  %v538 = vpop.f32.mrf.mxu0
  %v539 = vadd.f32 %v129, %v538
  %540 = vmatmul.f32.gmra.mxu0 %v171
  %v541 = vpop.f32.mrf.mxu0
  %v542 = vadd.f32 %v134, %v541
  %543 = vdwg.mxu0
  %544 = vmatpush.msra.mxu0 0.0
  %545 = vmatpush.msra.mxu0 0.0
  %546 = vmatpush.msra.mxu0 0.0
  %547 = vmatpush.msra.mxu0 0.0
  %548 = vmatpush.msra.mxu0 0.0
  %549 = vmatpush.msra.mxu0 0.0
  %550 = vmatpush.msra.mxu0 0.0
  %551 = vmatpush.msra.mxu0 0.0
  %552 = vmatpush.msra.mxu0 0.0
  %553 = vmatpush.msra.mxu0 0.0
  %554 = vmatpush.msra.mxu0 0.0
  %555 = vmatpush.msra.mxu0 0.0
  %556 = vmatpush.msra.mxu0 %v51
  %557 = vmatpush.msra.mxu0 %v43
  %558 = vmatpush.msra.mxu0 %v35
  %559 = vmatpush.msra.mxu0 %v27
  %560 = vmatmul.f32.gmra.mxu0 %v138
  %v561 = vpop.f32.mrf.mxu0
  %v562 = vadd.f32 %v79, %v561
  %563 = vmatmul.f32.gmra.mxu0 %v141
  %v564 = vpop.f32.mrf.mxu0
  %v565 = vadd.f32 %v84, %v564
  %566 = vmatmul.f32.gmra.mxu0 %v144
  %v567 = vpop.f32.mrf.mxu0
  %v568 = vadd.f32 %v89, %v567
  %569 = vmatmul.f32.gmra.mxu0 %v147
  %v570 = vpop.f32.mrf.mxu0
  %v571 = vadd.f32 %v94, %v570
  %572 = vmatmul.f32.gmra.mxu0 %v150
  %v573 = vpop.f32.mrf.mxu0
  %v574 = vadd.f32 %v99, %v573
  %575 = vmatmul.f32.gmra.mxu0 %v153
  %v576 = vpop.f32.mrf.mxu0
  %v577 = vadd.f32 %v104, %v576
  %578 = vmatmul.f32.gmra.mxu0 %v156
  %v579 = vpop.f32.mrf.mxu0
  %v580 = vadd.f32 %v109, %v579
  %581 = vmatmul.f32.gmra.mxu0 %v159
  %v582 = vpop.f32.mrf.mxu0
  %v583 = vadd.f32 %v114, %v582
  %584 = vmatmul.f32.gmra.mxu0 %v162
  %v585 = vpop.f32.mrf.mxu0
  %v586 = vadd.f32 %v119, %v585
  %587 = vmatmul.f32.gmra.mxu0 %v165
  %v588 = vpop.f32.mrf.mxu0
  %v589 = vadd.f32 %v124, %v588
  %590 = vmatmul.f32.gmra.mxu0 %v168
  %v591 = vpop.f32.mrf.mxu0
  %v592 = vadd.f32 %v129, %v591
  %593 = vmatmul.f32.gmra.mxu0 %v171
  %v594 = vpop.f32.mrf.mxu0
  %v595 = vadd.f32 %v134, %v594
  %596 = vdwg.mxu0
  %v597 = vmul.f32 %v191, %v203
  %v598 = vmul.f32 %v194, %v206
  %v599 = vmul.f32 %v197, %v209
  %v600 = vmul.f32 %v200, %v212
  %v601 = vrot.slane %v597, 4
  %v602 = vadd.f32 %v597, %v601
  %v603 = vrot.slane %v602, 2
  %v604 = vadd.f32 %v602, %v603
  %v605 = vrot.slane %v604, 1
  %v606 = vadd.f32 %v604, %v605
  %v607 = vrot.slane %v598, 4
  %v608 = vadd.f32 %v598, %v607
  %v609 = vrot.slane %v608, 2
  %v610 = vadd.f32 %v608, %v609
  %v611 = vrot.slane %v610, 1
  %v612 = vadd.f32 %v610, %v611
  %v613 = vrot.slane %v599, 4
  %v614 = vadd.f32 %v599, %v613
  %v615 = vrot.slane %v614, 2
  %v616 = vadd.f32 %v614, %v615
  %v617 = vrot.slane %v616, 1
  %v618 = vadd.f32 %v616, %v617
  %v619 = vrot.slane %v600, 4
  %v620 = vadd.f32 %v600, %v619
  %v621 = vrot.slane %v620, 2
  %v622 = vadd.f32 %v620, %v621
  %v623 = vrot.slane %v622, 1
  %v624 = vadd.f32 %v622, %v623
  %v625 = vsub.f32 %v606, %v606
  %v626 = vsub.f32 %v612, %v612
  %v627 = vsub.f32 %v618, %v618
  %v628 = vsub.f32 %v624, %v624
  %v629 = vmul.f32 %v625, 1.442695
  %v630 = vpow.pop %v629
  %v631 = vmul.f32 %v626, 1.442695
  %v632 = vpow.pop %v631
  %v633 = vmul.f32 %v627, 1.442695
  %v634 = vpow.pop %v633
  %v635 = vmul.f32 %v628, 1.442695
  %v636 = vpow.pop %v635
  %v637 = vrcp.pop %v630
  %v638 = vrcp.pop %v632
  %v639 = vrcp.pop %v634
  %v640 = vrcp.pop %v636
  %v641 = vmul.f32 %v630, %v637
  %v642 = vmul.f32 %v632, %v638
  %v643 = vmul.f32 %v634, %v639
  %v644 = vmul.f32 %v636, %v640
  %v645 = vmul.f32 %v641, %v215
  %v646 = vmul.f32 %v642, %v218
  %v647 = vmul.f32 %v643, %v221
  %v648 = vmul.f32 %v644, %v224
  %v649 = vadd.f32 %v645, 0.0
  %v650 = vadd.f32 %v646, 0.0
  %v651 = vadd.f32 %v647, 0.0
  %v652 = vadd.f32 %v648, 0.0
  %653 = vst [vmem:[#allocation2] sm:$0xff] %v649
  %654 = vst [vmem:[#allocation2 + $0x40] sm:$0xff] %v650
  %655 = vst [vmem:[#allocation2 + $0x80] sm:$0xff] %v651
  %656 = vst [vmem:[#allocation2 + $0xc0] sm:$0xff] %v652
  %v657 = vmul.f32 %v244, %v203
  %v658 = vmul.f32 %v247, %v206
  %v659 = vmul.f32 %v250, %v209
  %v660 = vmul.f32 %v253, %v212
  %v661 = vrot.slane %v657, 4
  %v662 = vadd.f32 %v657, %v661
  %v663 = vrot.slane %v662, 2
  %v664 = vadd.f32 %v662, %v663
  %v665 = vrot.slane %v664, 1
  %v666 = vadd.f32 %v664, %v665
  %v667 = vrot.slane %v658, 4
  %v668 = vadd.f32 %v658, %v667
  %v669 = vrot.slane %v668, 2
  %v670 = vadd.f32 %v668, %v669
  %v671 = vrot.slane %v670, 1
  %v672 = vadd.f32 %v670, %v671
  %v673 = vrot.slane %v659, 4
  %v674 = vadd.f32 %v659, %v673
  %v675 = vrot.slane %v674, 2
  %v676 = vadd.f32 %v674, %v675
  %v677 = vrot.slane %v676, 1
  %v678 = vadd.f32 %v676, %v677
  %v679 = vrot.slane %v660, 4
  %v680 = vadd.f32 %v660, %v679
  %v681 = vrot.slane %v680, 2
  %v682 = vadd.f32 %v680, %v681
  %v683 = vrot.slane %v682, 1
  %v684 = vadd.f32 %v682, %v683
  %v685 = vmul.f32 %v244, %v256
  %v686 = vmul.f32 %v247, %v259
  %v687 = vmul.f32 %v250, %v262
  %v688 = vmul.f32 %v253, %v265
  %v689 = vrot.slane %v685, 4
  %v690 = vadd.f32 %v685, %v689
  %v691 = vrot.slane %v690, 2
  %v692 = vadd.f32 %v690, %v691
  %v693 = vrot.slane %v692, 1
  %v694 = vadd.f32 %v692, %v693
  %v695 = vrot.slane %v686, 4
  %v696 = vadd.f32 %v686, %v695
  %v697 = vrot.slane %v696, 2
  %v698 = vadd.f32 %v696, %v697
  %v699 = vrot.slane %v698, 1
  %v700 = vadd.f32 %v698, %v699
  %v701 = vrot.slane %v687, 4
  %v702 = vadd.f32 %v687, %v701
  %v703 = vrot.slane %v702, 2
  %v704 = vadd.f32 %v702, %v703
  %v705 = vrot.slane %v704, 1
  %v706 = vadd.f32 %v704, %v705
  %v707 = vrot.slane %v688, 4
  %v708 = vadd.f32 %v688, %v707
  %v709 = vrot.slane %v708, 2
  %v710 = vadd.f32 %v708, %v709
  %v711 = vrot.slane %v710, 1
  %v712 = vadd.f32 %v710, %v711
  %v713 = vmax.f32 %v666, %v694
  %v714 = vmax.f32 %v672, %v700
  %v715 = vmax.f32 %v678, %v706
  %v716 = vmax.f32 %v684, %v712
  %v717 = vsub.f32 %v666, %v713
  %v718 = vsub.f32 %v672, %v714
  %v719 = vsub.f32 %v678, %v715
  %v720 = vsub.f32 %v684, %v716
  %v721 = vmul.f32 %v717, 1.442695
  %v722 = vpow.pop %v721
  %v723 = vmul.f32 %v718, 1.442695
  %v724 = vpow.pop %v723
  %v725 = vmul.f32 %v719, 1.442695
  %v726 = vpow.pop %v725
  %v727 = vmul.f32 %v720, 1.442695
  %v728 = vpow.pop %v727
  %v729 = vsub.f32 %v694, %v713
  %v730 = vsub.f32 %v700, %v714
  %v731 = vsub.f32 %v706, %v715
  %v732 = vsub.f32 %v712, %v716
  %v733 = vmul.f32 %v729, 1.442695
  %v734 = vpow.pop %v733
  %v735 = vmul.f32 %v730, 1.442695
  %v736 = vpow.pop %v735
  %v737 = vmul.f32 %v731, 1.442695
  %v738 = vpow.pop %v737
  %v739 = vmul.f32 %v732, 1.442695
  %v740 = vpow.pop %v739
  %v741 = vadd.f32 %v722, %v734
  %v742 = vadd.f32 %v724, %v736
  %v743 = vadd.f32 %v726, %v738
  %v744 = vadd.f32 %v728, %v740
  %v745 = vrcp.pop %v741
  %v746 = vrcp.pop %v742
  %v747 = vrcp.pop %v743
  %v748 = vrcp.pop %v744
  %v749 = vmul.f32 %v722, %v745
  %v750 = vmul.f32 %v724, %v746
  %v751 = vmul.f32 %v726, %v747
  %v752 = vmul.f32 %v728, %v748
  %v753 = vmul.f32 %v749, %v215
  %v754 = vmul.f32 %v750, %v218
  %v755 = vmul.f32 %v751, %v221
  %v756 = vmul.f32 %v752, %v224
  %v757 = vadd.f32 %v753, 0.0
  %v758 = vadd.f32 %v754, 0.0
  %v759 = vadd.f32 %v755, 0.0
  %v760 = vadd.f32 %v756, 0.0
  %v761 = vmul.f32 %v734, %v745
  %v762 = vmul.f32 %v736, %v746
  %v763 = vmul.f32 %v738, %v747
  %v764 = vmul.f32 %v740, %v748
  %v765 = vmul.f32 %v761, %v268
  %v766 = vmul.f32 %v762, %v271
  %v767 = vmul.f32 %v763, %v274
  %v768 = vmul.f32 %v764, %v277
  %v769 = vadd.f32 %v757, %v765
  %v770 = vadd.f32 %v758, %v766
  %v771 = vadd.f32 %v759, %v767
  %v772 = vadd.f32 %v760, %v768
  %773 = vst [vmem:[#allocation2 + $0x8] sm:$0xff] %v769
  %774 = vst [vmem:[#allocation2 + $0x48] sm:$0xff] %v770
  %775 = vst [vmem:[#allocation2 + $0x88] sm:$0xff] %v771
  %776 = vst [vmem:[#allocation2 + $0xc8] sm:$0xff] %v772
  %v777 = vmul.f32 %v297, %v203
  %v778 = vmul.f32 %v300, %v206
  %v779 = vmul.f32 %v303, %v209
  %v780 = vmul.f32 %v306, %v212
  %v781 = vrot.slane %v777, 4
  %v782 = vadd.f32 %v777, %v781
  %v783 = vrot.slane %v782, 2
  %v784 = vadd.f32 %v782, %v783
  %v785 = vrot.slane %v784, 1
  %v786 = vadd.f32 %v784, %v785
  %v787 = vrot.slane %v778, 4
  %v788 = vadd.f32 %v778, %v787
  %v789 = vrot.slane %v788, 2
  %v790 = vadd.f32 %v788, %v789
  %v791 = vrot.slane %v790, 1
  %v792 = vadd.f32 %v790, %v791
  %v793 = vrot.slane %v779, 4
  %v794 = vadd.f32 %v779, %v793
  %v795 = vrot.slane %v794, 2
  %v796 = vadd.f32 %v794, %v795
  %v797 = vrot.slane %v796, 1
  %v798 = vadd.f32 %v796, %v797
  %v799 = vrot.slane %v780, 4
  %v800 = vadd.f32 %v780, %v799
  %v801 = vrot.slane %v800, 2
  %v802 = vadd.f32 %v800, %v801
  %v803 = vrot.slane %v802, 1
  %v804 = vadd.f32 %v802, %v803
  %v805 = vmul.f32 %v297, %v256
  %v806 = vmul.f32 %v300, %v259
  %v807 = vmul.f32 %v303, %v262
  %v808 = vmul.f32 %v306, %v265
  %v809 = vrot.slane %v805, 4
  %v810 = vadd.f32 %v805, %v809
  %v811 = vrot.slane %v810, 2
  %v812 = vadd.f32 %v810, %v811
  %v813 = vrot.slane %v812, 1
  %v814 = vadd.f32 %v812, %v813
  %v815 = vrot.slane %v806, 4
  %v816 = vadd.f32 %v806, %v815
  %v817 = vrot.slane %v816, 2
  %v818 = vadd.f32 %v816, %v817
  %v819 = vrot.slane %v818, 1
  %v820 = vadd.f32 %v818, %v819
  %v821 = vrot.slane %v807, 4
  %v822 = vadd.f32 %v807, %v821
  %v823 = vrot.slane %v822, 2
  %v824 = vadd.f32 %v822, %v823
  %v825 = vrot.slane %v824, 1
  %v826 = vadd.f32 %v824, %v825
  %v827 = vrot.slane %v808, 4
  %v828 = vadd.f32 %v808, %v827
  %v829 = vrot.slane %v828, 2
  %v830 = vadd.f32 %v828, %v829
  %v831 = vrot.slane %v830, 1
  %v832 = vadd.f32 %v830, %v831
  %v833 = vmul.f32 %v297, %v309
  %v834 = vmul.f32 %v300, %v312
  %v835 = vmul.f32 %v303, %v315
  %v836 = vmul.f32 %v306, %v318
  %v837 = vrot.slane %v833, 4
  %v838 = vadd.f32 %v833, %v837
  %v839 = vrot.slane %v838, 2
  %v840 = vadd.f32 %v838, %v839
  %v841 = vrot.slane %v840, 1
  %v842 = vadd.f32 %v840, %v841
  %v843 = vrot.slane %v834, 4
  %v844 = vadd.f32 %v834, %v843
  %v845 = vrot.slane %v844, 2
  %v846 = vadd.f32 %v844, %v845
  %v847 = vrot.slane %v846, 1
  %v848 = vadd.f32 %v846, %v847
  %v849 = vrot.slane %v835, 4
  %v850 = vadd.f32 %v835, %v849
  %v851 = vrot.slane %v850, 2
  %v852 = vadd.f32 %v850, %v851
  %v853 = vrot.slane %v852, 1
  %v854 = vadd.f32 %v852, %v853
  %v855 = vrot.slane %v836, 4
  %v856 = vadd.f32 %v836, %v855
  %v857 = vrot.slane %v856, 2
  %v858 = vadd.f32 %v856, %v857
  %v859 = vrot.slane %v858, 1
  %v860 = vadd.f32 %v858, %v859
  %v861 = vmax.f32 %v786, %v814
  %v862 = vmax.f32 %v792, %v820
  %v863 = vmax.f32 %v798, %v826
  %v864 = vmax.f32 %v804, %v832
  %v865 = vmax.f32 %v861, %v842
  %v866 = vmax.f32 %v862, %v848
  %v867 = vmax.f32 %v863, %v854
  %v868 = vmax.f32 %v864, %v860
  %v869 = vsub.f32 %v786, %v865
  %v870 = vsub.f32 %v792, %v866
  %v871 = vsub.f32 %v798, %v867
  %v872 = vsub.f32 %v804, %v868
  %v873 = vmul.f32 %v869, 1.442695
  %v874 = vpow.pop %v873
  %v875 = vmul.f32 %v870, 1.442695
  %v876 = vpow.pop %v875
  %v877 = vmul.f32 %v871, 1.442695
  %v878 = vpow.pop %v877
  %v879 = vmul.f32 %v872, 1.442695
  %v880 = vpow.pop %v879
  %v881 = vsub.f32 %v814, %v865
  %v882 = vsub.f32 %v820, %v866
  %v883 = vsub.f32 %v826, %v867
  %v884 = vsub.f32 %v832, %v868
  %v885 = vmul.f32 %v881, 1.442695
  %v886 = vpow.pop %v885
  %v887 = vmul.f32 %v882, 1.442695
  %v888 = vpow.pop %v887
  %v889 = vmul.f32 %v883, 1.442695
  %v890 = vpow.pop %v889
  %v891 = vmul.f32 %v884, 1.442695
  %v892 = vpow.pop %v891
  %v893 = vsub.f32 %v842, %v865
  %v894 = vsub.f32 %v848, %v866
  %v895 = vsub.f32 %v854, %v867
  %v896 = vsub.f32 %v860, %v868
  %v897 = vmul.f32 %v893, 1.442695
  %v898 = vpow.pop %v897
  %v899 = vmul.f32 %v894, 1.442695
  %v900 = vpow.pop %v899
  %v901 = vmul.f32 %v895, 1.442695
  %v902 = vpow.pop %v901
  %v903 = vmul.f32 %v896, 1.442695
  %v904 = vpow.pop %v903
  %v905 = vadd.f32 %v874, %v886
  %v906 = vadd.f32 %v876, %v888
  %v907 = vadd.f32 %v878, %v890
  %v908 = vadd.f32 %v880, %v892
  %v909 = vadd.f32 %v905, %v898
  %v910 = vadd.f32 %v906, %v900
  %v911 = vadd.f32 %v907, %v902
  %v912 = vadd.f32 %v908, %v904
  %v913 = vrcp.pop %v909
  %v914 = vrcp.pop %v910
  %v915 = vrcp.pop %v911
  %v916 = vrcp.pop %v912
  %v917 = vmul.f32 %v874, %v913
  %v918 = vmul.f32 %v876, %v914
  %v919 = vmul.f32 %v878, %v915
  %v920 = vmul.f32 %v880, %v916
  %v921 = vmul.f32 %v917, %v215
  %v922 = vmul.f32 %v918, %v218
  %v923 = vmul.f32 %v919, %v221
  %v924 = vmul.f32 %v920, %v224
  %v925 = vadd.f32 %v921, 0.0
  %v926 = vadd.f32 %v922, 0.0
  %v927 = vadd.f32 %v923, 0.0
  %v928 = vadd.f32 %v924, 0.0
  %v929 = vmul.f32 %v886, %v913
  %v930 = vmul.f32 %v888, %v914
  %v931 = vmul.f32 %v890, %v915
  %v932 = vmul.f32 %v892, %v916
  %v933 = vmul.f32 %v929, %v268
  %v934 = vmul.f32 %v930, %v271
  %v935 = vmul.f32 %v931, %v274
  %v936 = vmul.f32 %v932, %v277
  %v937 = vadd.f32 %v925, %v933
  %v938 = vadd.f32 %v926, %v934
  %v939 = vadd.f32 %v927, %v935
  %v940 = vadd.f32 %v928, %v936
  %v941 = vmul.f32 %v898, %v913
  %v942 = vmul.f32 %v900, %v914
  %v943 = vmul.f32 %v902, %v915
  %v944 = vmul.f32 %v904, %v916
  %v945 = vmul.f32 %v941, %v321
  %v946 = vmul.f32 %v942, %v324
  %v947 = vmul.f32 %v943, %v327
  %v948 = vmul.f32 %v944, %v330
  %v949 = vadd.f32 %v937, %v945
  %v950 = vadd.f32 %v938, %v946
  %v951 = vadd.f32 %v939, %v947
  %v952 = vadd.f32 %v940, %v948
  %953 = vst [vmem:[#allocation2 + $0x10] sm:$0xff] %v949
  %954 = vst [vmem:[#allocation2 + $0x50] sm:$0xff] %v950
  %955 = vst [vmem:[#allocation2 + $0x90] sm:$0xff] %v951
  %956 = vst [vmem:[#allocation2 + $0xd0] sm:$0xff] %v952
  %v957 = vmul.f32 %v350, %v203
  %v958 = vmul.f32 %v353, %v206
  %v959 = vmul.f32 %v356, %v209
  %v960 = vmul.f32 %v359, %v212
  %v961 = vrot.slane %v957, 4
  %v962 = vadd.f32 %v957, %v961
  %v963 = vrot.slane %v962, 2
  %v964 = vadd.f32 %v962, %v963
  %v965 = vrot.slane %v964, 1
  %v966 = vadd.f32 %v964, %v965
  %v967 = vrot.slane %v958, 4
  %v968 = vadd.f32 %v958, %v967
  %v969 = vrot.slane %v968, 2
  %v970 = vadd.f32 %v968, %v969
  %v971 = vrot.slane %v970, 1
  %v972 = vadd.f32 %v970, %v971
  %v973 = vrot.slane %v959, 4
  %v974 = vadd.f32 %v959, %v973
  %v975 = vrot.slane %v974, 2
  %v976 = vadd.f32 %v974, %v975
  %v977 = vrot.slane %v976, 1
  %v978 = vadd.f32 %v976, %v977
  %v979 = vrot.slane %v960, 4
  %v980 = vadd.f32 %v960, %v979
  %v981 = vrot.slane %v980, 2
  %v982 = vadd.f32 %v980, %v981
  %v983 = vrot.slane %v982, 1
  %v984 = vadd.f32 %v982, %v983
  %v985 = vmul.f32 %v350, %v256
  %v986 = vmul.f32 %v353, %v259
  %v987 = vmul.f32 %v356, %v262
  %v988 = vmul.f32 %v359, %v265
  %v989 = vrot.slane %v985, 4
  %v990 = vadd.f32 %v985, %v989
  %v991 = vrot.slane %v990, 2
  %v992 = vadd.f32 %v990, %v991
  %v993 = vrot.slane %v992, 1
  %v994 = vadd.f32 %v992, %v993
  %v995 = vrot.slane %v986, 4
  %v996 = vadd.f32 %v986, %v995
  %v997 = vrot.slane %v996, 2
  %v998 = vadd.f32 %v996, %v997
  %v999 = vrot.slane %v998, 1
  %v1000 = vadd.f32 %v998, %v999
  %v1001 = vrot.slane %v987, 4
  %v1002 = vadd.f32 %v987, %v1001
  %v1003 = vrot.slane %v1002, 2
  %v1004 = vadd.f32 %v1002, %v1003
  %v1005 = vrot.slane %v1004, 1
  %v1006 = vadd.f32 %v1004, %v1005
  %v1007 = vrot.slane %v988, 4
  %v1008 = vadd.f32 %v988, %v1007
  %v1009 = vrot.slane %v1008, 2
  %v1010 = vadd.f32 %v1008, %v1009
  %v1011 = vrot.slane %v1010, 1
  %v1012 = vadd.f32 %v1010, %v1011
  %v1013 = vmul.f32 %v350, %v309
  %v1014 = vmul.f32 %v353, %v312
  %v1015 = vmul.f32 %v356, %v315
  %v1016 = vmul.f32 %v359, %v318
  %v1017 = vrot.slane %v1013, 4
  %v1018 = vadd.f32 %v1013, %v1017
  %v1019 = vrot.slane %v1018, 2
  %v1020 = vadd.f32 %v1018, %v1019
  %v1021 = vrot.slane %v1020, 1
  %v1022 = vadd.f32 %v1020, %v1021
  %v1023 = vrot.slane %v1014, 4
  %v1024 = vadd.f32 %v1014, %v1023
  %v1025 = vrot.slane %v1024, 2
  %v1026 = vadd.f32 %v1024, %v1025
  %v1027 = vrot.slane %v1026, 1
  %v1028 = vadd.f32 %v1026, %v1027
  %v1029 = vrot.slane %v1015, 4
  %v1030 = vadd.f32 %v1015, %v1029
  %v1031 = vrot.slane %v1030, 2
  %v1032 = vadd.f32 %v1030, %v1031
  %v1033 = vrot.slane %v1032, 1
  %v1034 = vadd.f32 %v1032, %v1033
  %v1035 = vrot.slane %v1016, 4
  %v1036 = vadd.f32 %v1016, %v1035
  %v1037 = vrot.slane %v1036, 2
  %v1038 = vadd.f32 %v1036, %v1037
  %v1039 = vrot.slane %v1038, 1
  %v1040 = vadd.f32 %v1038, %v1039
  %v1041 = vmul.f32 %v350, %v362
  %v1042 = vmul.f32 %v353, %v365
  %v1043 = vmul.f32 %v356, %v368
  %v1044 = vmul.f32 %v359, %v371
  %v1045 = vrot.slane %v1041, 4
  %v1046 = vadd.f32 %v1041, %v1045
  %v1047 = vrot.slane %v1046, 2
  %v1048 = vadd.f32 %v1046, %v1047
  %v1049 = vrot.slane %v1048, 1
  %v1050 = vadd.f32 %v1048, %v1049
  %v1051 = vrot.slane %v1042, 4
  %v1052 = vadd.f32 %v1042, %v1051
  %v1053 = vrot.slane %v1052, 2
  %v1054 = vadd.f32 %v1052, %v1053
  %v1055 = vrot.slane %v1054, 1
  %v1056 = vadd.f32 %v1054, %v1055
  %v1057 = vrot.slane %v1043, 4
  %v1058 = vadd.f32 %v1043, %v1057
  %v1059 = vrot.slane %v1058, 2
  %v1060 = vadd.f32 %v1058, %v1059
  %v1061 = vrot.slane %v1060, 1
  %v1062 = vadd.f32 %v1060, %v1061
  %v1063 = vrot.slane %v1044, 4
  %v1064 = vadd.f32 %v1044, %v1063
  %v1065 = vrot.slane %v1064, 2
  %v1066 = vadd.f32 %v1064, %v1065
  %v1067 = vrot.slane %v1066, 1
  %v1068 = vadd.f32 %v1066, %v1067
  %v1069 = vmax.f32 %v966, %v994
  %v1070 = vmax.f32 %v972, %v1000
  %v1071 = vmax.f32 %v978, %v1006
  %v1072 = vmax.f32 %v984, %v1012
  %v1073 = vmax.f32 %v1069, %v1022
  %v1074 = vmax.f32 %v1070, %v1028
  %v1075 = vmax.f32 %v1071, %v1034
  %v1076 = vmax.f32 %v1072, %v1040
  %v1077 = vmax.f32 %v1073, %v1050
  %v1078 = vmax.f32 %v1074, %v1056
  %v1079 = vmax.f32 %v1075, %v1062
  %v1080 = vmax.f32 %v1076, %v1068
  %v1081 = vsub.f32 %v966, %v1077
  %v1082 = vsub.f32 %v972, %v1078
  %v1083 = vsub.f32 %v978, %v1079
  %v1084 = vsub.f32 %v984, %v1080
  %v1085 = vmul.f32 %v1081, 1.442695
  %v1086 = vpow.pop %v1085
  %v1087 = vmul.f32 %v1082, 1.442695
  %v1088 = vpow.pop %v1087
  %v1089 = vmul.f32 %v1083, 1.442695
  %v1090 = vpow.pop %v1089
  %v1091 = vmul.f32 %v1084, 1.442695
  %v1092 = vpow.pop %v1091
  %v1093 = vsub.f32 %v994, %v1077
  %v1094 = vsub.f32 %v1000, %v1078
  %v1095 = vsub.f32 %v1006, %v1079
  %v1096 = vsub.f32 %v1012, %v1080
  %v1097 = vmul.f32 %v1093, 1.442695
  %v1098 = vpow.pop %v1097
  %v1099 = vmul.f32 %v1094, 1.442695
  %v1100 = vpow.pop %v1099
  %v1101 = vmul.f32 %v1095, 1.442695
  %v1102 = vpow.pop %v1101
  %v1103 = vmul.f32 %v1096, 1.442695
  %v1104 = vpow.pop %v1103
  %v1105 = vsub.f32 %v1022, %v1077
  %v1106 = vsub.f32 %v1028, %v1078
  %v1107 = vsub.f32 %v1034, %v1079
  %v1108 = vsub.f32 %v1040, %v1080
  %v1109 = vmul.f32 %v1105, 1.442695
  %v1110 = vpow.pop %v1109
  %v1111 = vmul.f32 %v1106, 1.442695
  %v1112 = vpow.pop %v1111
  %v1113 = vmul.f32 %v1107, 1.442695
  %v1114 = vpow.pop %v1113
  %v1115 = vmul.f32 %v1108, 1.442695
  %v1116 = vpow.pop %v1115
  %v1117 = vsub.f32 %v1050, %v1077
  %v1118 = vsub.f32 %v1056, %v1078
  %v1119 = vsub.f32 %v1062, %v1079
  %v1120 = vsub.f32 %v1068, %v1080
  %v1121 = vmul.f32 %v1117, 1.442695
  %v1122 = vpow.pop %v1121
  %v1123 = vmul.f32 %v1118, 1.442695
  %v1124 = vpow.pop %v1123
  %v1125 = vmul.f32 %v1119, 1.442695
  %v1126 = vpow.pop %v1125
  %v1127 = vmul.f32 %v1120, 1.442695
  %v1128 = vpow.pop %v1127
  %v1129 = vadd.f32 %v1086, %v1098
  %v1130 = vadd.f32 %v1088, %v1100
  %v1131 = vadd.f32 %v1090, %v1102
  %v1132 = vadd.f32 %v1092, %v1104
  %v1133 = vadd.f32 %v1129, %v1110
  %v1134 = vadd.f32 %v1130, %v1112
  %v1135 = vadd.f32 %v1131, %v1114
  %v1136 = vadd.f32 %v1132, %v1116
  %v1137 = vadd.f32 %v1133, %v1122
  %v1138 = vadd.f32 %v1134, %v1124
  %v1139 = vadd.f32 %v1135, %v1126
  %v1140 = vadd.f32 %v1136, %v1128
  %v1141 = vrcp.pop %v1137
  %v1142 = vrcp.pop %v1138
  %v1143 = vrcp.pop %v1139
  %v1144 = vrcp.pop %v1140
  %v1145 = vmul.f32 %v1086, %v1141
  %v1146 = vmul.f32 %v1088, %v1142
  %v1147 = vmul.f32 %v1090, %v1143
  %v1148 = vmul.f32 %v1092, %v1144
  %v1149 = vmul.f32 %v1145, %v215
  %v1150 = vmul.f32 %v1146, %v218
  %v1151 = vmul.f32 %v1147, %v221
  %v1152 = vmul.f32 %v1148, %v224
  %v1153 = vadd.f32 %v1149, 0.0
  %v1154 = vadd.f32 %v1150, 0.0
  %v1155 = vadd.f32 %v1151, 0.0
  %v1156 = vadd.f32 %v1152, 0.0
  %v1157 = vmul.f32 %v1098, %v1141
  %v1158 = vmul.f32 %v1100, %v1142
  %v1159 = vmul.f32 %v1102, %v1143
  %v1160 = vmul.f32 %v1104, %v1144
  %v1161 = vmul.f32 %v1157, %v268
  %v1162 = vmul.f32 %v1158, %v271
  %v1163 = vmul.f32 %v1159, %v274
  %v1164 = vmul.f32 %v1160, %v277
  %v1165 = vadd.f32 %v1153, %v1161
  %v1166 = vadd.f32 %v1154, %v1162
  %v1167 = vadd.f32 %v1155, %v1163
  %v1168 = vadd.f32 %v1156, %v1164
  %v1169 = vmul.f32 %v1110, %v1141
  %v1170 = vmul.f32 %v1112, %v1142
  %v1171 = vmul.f32 %v1114, %v1143
  %v1172 = vmul.f32 %v1116, %v1144
  %v1173 = vmul.f32 %v1169, %v321
  %v1174 = vmul.f32 %v1170, %v324
  %v1175 = vmul.f32 %v1171, %v327
  %v1176 = vmul.f32 %v1172, %v330
  %v1177 = vadd.f32 %v1165, %v1173
  %v1178 = vadd.f32 %v1166, %v1174
  %v1179 = vadd.f32 %v1167, %v1175
  %v1180 = vadd.f32 %v1168, %v1176
  %v1181 = vmul.f32 %v1122, %v1141
  %v1182 = vmul.f32 %v1124, %v1142
  %v1183 = vmul.f32 %v1126, %v1143
  %v1184 = vmul.f32 %v1128, %v1144
  %v1185 = vmul.f32 %v1181, %v374
  %v1186 = vmul.f32 %v1182, %v377
  %v1187 = vmul.f32 %v1183, %v380
  %v1188 = vmul.f32 %v1184, %v383
  %v1189 = vadd.f32 %v1177, %v1185
  %v1190 = vadd.f32 %v1178, %v1186
  %v1191 = vadd.f32 %v1179, %v1187
  %v1192 = vadd.f32 %v1180, %v1188
  %1193 = vst [vmem:[#allocation2 + $0x18] sm:$0xff] %v1189
  %1194 = vst [vmem:[#allocation2 + $0x58] sm:$0xff] %v1190
  %1195 = vst [vmem:[#allocation2 + $0x98] sm:$0xff] %v1191
  %1196 = vst [vmem:[#allocation2 + $0xd8] sm:$0xff] %v1192
  %v1197 = vmul.f32 %v403, %v203
  %v1198 = vmul.f32 %v406, %v206
  %v1199 = vmul.f32 %v409, %v209
  %v1200 = vmul.f32 %v412, %v212
  %v1201 = vrot.slane %v1197, 4
  %v1202 = vadd.f32 %v1197, %v1201
  %v1203 = vrot.slane %v1202, 2
  %v1204 = vadd.f32 %v1202, %v1203
  %v1205 = vrot.slane %v1204, 1
  %v1206 = vadd.f32 %v1204, %v1205
  %v1207 = vrot.slane %v1198, 4
  %v1208 = vadd.f32 %v1198, %v1207
  %v1209 = vrot.slane %v1208, 2
  %v1210 = vadd.f32 %v1208, %v1209
  %v1211 = vrot.slane %v1210, 1
  %v1212 = vadd.f32 %v1210, %v1211
  %v1213 = vrot.slane %v1199, 4
  %v1214 = vadd.f32 %v1199, %v1213
  %v1215 = vrot.slane %v1214, 2
  %v1216 = vadd.f32 %v1214, %v1215
  %v1217 = vrot.slane %v1216, 1
  %v1218 = vadd.f32 %v1216, %v1217
  %v1219 = vrot.slane %v1200, 4
  %v1220 = vadd.f32 %v1200, %v1219
  %v1221 = vrot.slane %v1220, 2
  %v1222 = vadd.f32 %v1220, %v1221
  %v1223 = vrot.slane %v1222, 1
  %v1224 = vadd.f32 %v1222, %v1223
  %v1225 = vmul.f32 %v403, %v256
  %v1226 = vmul.f32 %v406, %v259
  %v1227 = vmul.f32 %v409, %v262
  %v1228 = vmul.f32 %v412, %v265
  %v1229 = vrot.slane %v1225, 4
  %v1230 = vadd.f32 %v1225, %v1229
  %v1231 = vrot.slane %v1230, 2
  %v1232 = vadd.f32 %v1230, %v1231
  %v1233 = vrot.slane %v1232, 1
  %v1234 = vadd.f32 %v1232, %v1233
  %v1235 = vrot.slane %v1226, 4
  %v1236 = vadd.f32 %v1226, %v1235
  %v1237 = vrot.slane %v1236, 2
  %v1238 = vadd.f32 %v1236, %v1237
  %v1239 = vrot.slane %v1238, 1
  %v1240 = vadd.f32 %v1238, %v1239
  %v1241 = vrot.slane %v1227, 4
  %v1242 = vadd.f32 %v1227, %v1241
  %v1243 = vrot.slane %v1242, 2
  %v1244 = vadd.f32 %v1242, %v1243
  %v1245 = vrot.slane %v1244, 1
  %v1246 = vadd.f32 %v1244, %v1245
  %v1247 = vrot.slane %v1228, 4
  %v1248 = vadd.f32 %v1228, %v1247
  %v1249 = vrot.slane %v1248, 2
  %v1250 = vadd.f32 %v1248, %v1249
  %v1251 = vrot.slane %v1250, 1
  %v1252 = vadd.f32 %v1250, %v1251
  %v1253 = vmul.f32 %v403, %v309
  %v1254 = vmul.f32 %v406, %v312
  %v1255 = vmul.f32 %v409, %v315
  %v1256 = vmul.f32 %v412, %v318
  %v1257 = vrot.slane %v1253, 4
  %v1258 = vadd.f32 %v1253, %v1257
  %v1259 = vrot.slane %v1258, 2
  %v1260 = vadd.f32 %v1258, %v1259
  %v1261 = vrot.slane %v1260, 1
  %v1262 = vadd.f32 %v1260, %v1261
  %v1263 = vrot.slane %v1254, 4
  %v1264 = vadd.f32 %v1254, %v1263
  %v1265 = vrot.slane %v1264, 2
  %v1266 = vadd.f32 %v1264, %v1265
  %v1267 = vrot.slane %v1266, 1
  %v1268 = vadd.f32 %v1266, %v1267
  %v1269 = vrot.slane %v1255, 4
  %v1270 = vadd.f32 %v1255, %v1269
  %v1271 = vrot.slane %v1270, 2
  %v1272 = vadd.f32 %v1270, %v1271
  %v1273 = vrot.slane %v1272, 1
  %v1274 = vadd.f32 %v1272, %v1273
  %v1275 = vrot.slane %v1256, 4
  %v1276 = vadd.f32 %v1256, %v1275
  %v1277 = vrot.slane %v1276, 2
  %v1278 = vadd.f32 %v1276, %v1277
  %v1279 = vrot.slane %v1278, 1
  %v1280 = vadd.f32 %v1278, %v1279
  %v1281 = vmul.f32 %v403, %v362
  %v1282 = vmul.f32 %v406, %v365
  %v1283 = vmul.f32 %v409, %v368
  %v1284 = vmul.f32 %v412, %v371
  %v1285 = vrot.slane %v1281, 4
  %v1286 = vadd.f32 %v1281, %v1285
  %v1287 = vrot.slane %v1286, 2
  %v1288 = vadd.f32 %v1286, %v1287
  %v1289 = vrot.slane %v1288, 1
  %v1290 = vadd.f32 %v1288, %v1289
  %v1291 = vrot.slane %v1282, 4
  %v1292 = vadd.f32 %v1282, %v1291
  %v1293 = vrot.slane %v1292, 2
  %v1294 = vadd.f32 %v1292, %v1293
  %v1295 = vrot.slane %v1294, 1
  %v1296 = vadd.f32 %v1294, %v1295
  %v1297 = vrot.slane %v1283, 4
  %v1298 = vadd.f32 %v1283, %v1297
  %v1299 = vrot.slane %v1298, 2
  %v1300 = vadd.f32 %v1298, %v1299
  %v1301 = vrot.slane %v1300, 1
  %v1302 = vadd.f32 %v1300, %v1301
  %v1303 = vrot.slane %v1284, 4
  %v1304 = vadd.f32 %v1284, %v1303
  %v1305 = vrot.slane %v1304, 2
  %v1306 = vadd.f32 %v1304, %v1305
  %v1307 = vrot.slane %v1306, 1
  %v1308 = vadd.f32 %v1306, %v1307
  %v1309 = vmul.f32 %v403, %v415
  %v1310 = vmul.f32 %v406, %v418
  %v1311 = vmul.f32 %v409, %v421
  %v1312 = vmul.f32 %v412, %v424
  %v1313 = vrot.slane %v1309, 4
  %v1314 = vadd.f32 %v1309, %v1313
  %v1315 = vrot.slane %v1314, 2
  %v1316 = vadd.f32 %v1314, %v1315
  %v1317 = vrot.slane %v1316, 1
  %v1318 = vadd.f32 %v1316, %v1317
  %v1319 = vrot.slane %v1310, 4
  %v1320 = vadd.f32 %v1310, %v1319
  %v1321 = vrot.slane %v1320, 2
  %v1322 = vadd.f32 %v1320, %v1321
  %v1323 = vrot.slane %v1322, 1
  %v1324 = vadd.f32 %v1322, %v1323
  %v1325 = vrot.slane %v1311, 4
  %v1326 = vadd.f32 %v1311, %v1325
  %v1327 = vrot.slane %v1326, 2
  %v1328 = vadd.f32 %v1326, %v1327
  %v1329 = vrot.slane %v1328, 1
  %v1330 = vadd.f32 %v1328, %v1329
  %v1331 = vrot.slane %v1312, 4
  %v1332 = vadd.f32 %v1312, %v1331
  %v1333 = vrot.slane %v1332, 2
  %v1334 = vadd.f32 %v1332, %v1333
  %v1335 = vrot.slane %v1334, 1
  %v1336 = vadd.f32 %v1334, %v1335
  %v1337 = vmax.f32 %v1206, %v1234
  %v1338 = vmax.f32 %v1212, %v1240
  %v1339 = vmax.f32 %v1218, %v1246
  %v1340 = vmax.f32 %v1224, %v1252
  %v1341 = vmax.f32 %v1337, %v1262
  %v1342 = vmax.f32 %v1338, %v1268
  %v1343 = vmax.f32 %v1339, %v1274
  %v1344 = vmax.f32 %v1340, %v1280
  %v1345 = vmax.f32 %v1341, %v1290
  %v1346 = vmax.f32 %v1342, %v1296
  %v1347 = vmax.f32 %v1343, %v1302
  %v1348 = vmax.f32 %v1344, %v1308
  %v1349 = vmax.f32 %v1345, %v1318
  %v1350 = vmax.f32 %v1346, %v1324
  %v1351 = vmax.f32 %v1347, %v1330
  %v1352 = vmax.f32 %v1348, %v1336
  %v1353 = vsub.f32 %v1206, %v1349
  %v1354 = vsub.f32 %v1212, %v1350
  %v1355 = vsub.f32 %v1218, %v1351
  %v1356 = vsub.f32 %v1224, %v1352
  %v1357 = vmul.f32 %v1353, 1.442695
  %v1358 = vpow.pop %v1357
  %v1359 = vmul.f32 %v1354, 1.442695
  %v1360 = vpow.pop %v1359
  %v1361 = vmul.f32 %v1355, 1.442695
  %v1362 = vpow.pop %v1361
  %v1363 = vmul.f32 %v1356, 1.442695
  %v1364 = vpow.pop %v1363
  %v1365 = vsub.f32 %v1234, %v1349
  %v1366 = vsub.f32 %v1240, %v1350
  %v1367 = vsub.f32 %v1246, %v1351
  %v1368 = vsub.f32 %v1252, %v1352
  %v1369 = vmul.f32 %v1365, 1.442695
  %v1370 = vpow.pop %v1369
  %v1371 = vmul.f32 %v1366, 1.442695
  %v1372 = vpow.pop %v1371
  %v1373 = vmul.f32 %v1367, 1.442695
  %v1374 = vpow.pop %v1373
  %v1375 = vmul.f32 %v1368, 1.442695
  %v1376 = vpow.pop %v1375
  %v1377 = vsub.f32 %v1262, %v1349
  %v1378 = vsub.f32 %v1268, %v1350
  %v1379 = vsub.f32 %v1274, %v1351
  %v1380 = vsub.f32 %v1280, %v1352
  %v1381 = vmul.f32 %v1377, 1.442695
  %v1382 = vpow.pop %v1381
  %v1383 = vmul.f32 %v1378, 1.442695
  %v1384 = vpow.pop %v1383
  %v1385 = vmul.f32 %v1379, 1.442695
  %v1386 = vpow.pop %v1385
  %v1387 = vmul.f32 %v1380, 1.442695
  %v1388 = vpow.pop %v1387
  %v1389 = vsub.f32 %v1290, %v1349
  %v1390 = vsub.f32 %v1296, %v1350
  %v1391 = vsub.f32 %v1302, %v1351
  %v1392 = vsub.f32 %v1308, %v1352
  %v1393 = vmul.f32 %v1389, 1.442695
  %v1394 = vpow.pop %v1393
  %v1395 = vmul.f32 %v1390, 1.442695
  %v1396 = vpow.pop %v1395
  %v1397 = vmul.f32 %v1391, 1.442695
  %v1398 = vpow.pop %v1397
  %v1399 = vmul.f32 %v1392, 1.442695
  %v1400 = vpow.pop %v1399
  %v1401 = vsub.f32 %v1318, %v1349
  %v1402 = vsub.f32 %v1324, %v1350
  %v1403 = vsub.f32 %v1330, %v1351
  %v1404 = vsub.f32 %v1336, %v1352
  %v1405 = vmul.f32 %v1401, 1.442695
  %v1406 = vpow.pop %v1405
  %v1407 = vmul.f32 %v1402, 1.442695
  %v1408 = vpow.pop %v1407
  %v1409 = vmul.f32 %v1403, 1.442695
  %v1410 = vpow.pop %v1409
  %v1411 = vmul.f32 %v1404, 1.442695
  %v1412 = vpow.pop %v1411
  %v1413 = vadd.f32 %v1358, %v1370
  %v1414 = vadd.f32 %v1360, %v1372
  %v1415 = vadd.f32 %v1362, %v1374
  %v1416 = vadd.f32 %v1364, %v1376
  %v1417 = vadd.f32 %v1413, %v1382
  %v1418 = vadd.f32 %v1414, %v1384
  %v1419 = vadd.f32 %v1415, %v1386
  %v1420 = vadd.f32 %v1416, %v1388
  %v1421 = vadd.f32 %v1417, %v1394
  %v1422 = vadd.f32 %v1418, %v1396
  %v1423 = vadd.f32 %v1419, %v1398
  %v1424 = vadd.f32 %v1420, %v1400
  %v1425 = vadd.f32 %v1421, %v1406
  %v1426 = vadd.f32 %v1422, %v1408
  %v1427 = vadd.f32 %v1423, %v1410
  %v1428 = vadd.f32 %v1424, %v1412
  %v1429 = vrcp.pop %v1425
  %v1430 = vrcp.pop %v1426
  %v1431 = vrcp.pop %v1427
  %v1432 = vrcp.pop %v1428
  %v1433 = vmul.f32 %v1358, %v1429
  %v1434 = vmul.f32 %v1360, %v1430
  %v1435 = vmul.f32 %v1362, %v1431
  %v1436 = vmul.f32 %v1364, %v1432
  %v1437 = vmul.f32 %v1433, %v215
  %v1438 = vmul.f32 %v1434, %v218
  %v1439 = vmul.f32 %v1435, %v221
  %v1440 = vmul.f32 %v1436, %v224
  %v1441 = vadd.f32 %v1437, 0.0
  %v1442 = vadd.f32 %v1438, 0.0
  %v1443 = vadd.f32 %v1439, 0.0
  %v1444 = vadd.f32 %v1440, 0.0
  %v1445 = vmul.f32 %v1370, %v1429
  %v1446 = vmul.f32 %v1372, %v1430
  %v1447 = vmul.f32 %v1374, %v1431
  %v1448 = vmul.f32 %v1376, %v1432
  %v1449 = vmul.f32 %v1445, %v268
  %v1450 = vmul.f32 %v1446, %v271
  %v1451 = vmul.f32 %v1447, %v274
  %v1452 = vmul.f32 %v1448, %v277
  %v1453 = vadd.f32 %v1441, %v1449
  %v1454 = vadd.f32 %v1442, %v1450
  %v1455 = vadd.f32 %v1443, %v1451
  %v1456 = vadd.f32 %v1444, %v1452
  %v1457 = vmul.f32 %v1382, %v1429
  %v1458 = vmul.f32 %v1384, %v1430
  %v1459 = vmul.f32 %v1386, %v1431
  %v1460 = vmul.f32 %v1388, %v1432
  %v1461 = vmul.f32 %v1457, %v321
  %v1462 = vmul.f32 %v1458, %v324
  %v1463 = vmul.f32 %v1459, %v327
  %v1464 = vmul.f32 %v1460, %v330
  %v1465 = vadd.f32 %v1453, %v1461
  %v1466 = vadd.f32 %v1454, %v1462
  %v1467 = vadd.f32 %v1455, %v1463
  %v1468 = vadd.f32 %v1456, %v1464
  %v1469 = vmul.f32 %v1394, %v1429
  %v1470 = vmul.f32 %v1396, %v1430
  %v1471 = vmul.f32 %v1398, %v1431
  %v1472 = vmul.f32 %v1400, %v1432
  %v1473 = vmul.f32 %v1469, %v374
  %v1474 = vmul.f32 %v1470, %v377
  %v1475 = vmul.f32 %v1471, %v380
  %v1476 = vmul.f32 %v1472, %v383
  %v1477 = vadd.f32 %v1465, %v1473
  %v1478 = vadd.f32 %v1466, %v1474
  %v1479 = vadd.f32 %v1467, %v1475
  %v1480 = vadd.f32 %v1468, %v1476
  %v1481 = vmul.f32 %v1406, %v1429
  %v1482 = vmul.f32 %v1408, %v1430
  %v1483 = vmul.f32 %v1410, %v1431
  %v1484 = vmul.f32 %v1412, %v1432
  %v1485 = vmul.f32 %v1481, %v427
  %v1486 = vmul.f32 %v1482, %v430
  %v1487 = vmul.f32 %v1483, %v433
  %v1488 = vmul.f32 %v1484, %v436
  %v1489 = vadd.f32 %v1477, %v1485
  %v1490 = vadd.f32 %v1478, %v1486
  %v1491 = vadd.f32 %v1479, %v1487
  %v1492 = vadd.f32 %v1480, %v1488
  %1493 = vst [vmem:[#allocation2 + $0x20] sm:$0xff] %v1489
  %1494 = vst [vmem:[#allocation2 + $0x60] sm:$0xff] %v1490
  %1495 = vst [vmem:[#allocation2 + $0xa0] sm:$0xff] %v1491
  %1496 = vst [vmem:[#allocation2 + $0xe0] sm:$0xff] %v1492
  %v1497 = vmul.f32 %v456, %v203
  %v1498 = vmul.f32 %v459, %v206
  %v1499 = vmul.f32 %v462, %v209
  %v1500 = vmul.f32 %v465, %v212
  %v1501 = vrot.slane %v1497, 4
  %v1502 = vadd.f32 %v1497, %v1501
  %v1503 = vrot.slane %v1502, 2
  %v1504 = vadd.f32 %v1502, %v1503
  %v1505 = vrot.slane %v1504, 1
  %v1506 = vadd.f32 %v1504, %v1505
  %v1507 = vrot.slane %v1498, 4
  %v1508 = vadd.f32 %v1498, %v1507
  %v1509 = vrot.slane %v1508, 2
  %v1510 = vadd.f32 %v1508, %v1509
  %v1511 = vrot.slane %v1510, 1
  %v1512 = vadd.f32 %v1510, %v1511
  %v1513 = vrot.slane %v1499, 4
  %v1514 = vadd.f32 %v1499, %v1513
  %v1515 = vrot.slane %v1514, 2
  %v1516 = vadd.f32 %v1514, %v1515
  %v1517 = vrot.slane %v1516, 1
  %v1518 = vadd.f32 %v1516, %v1517
  %v1519 = vrot.slane %v1500, 4
  %v1520 = vadd.f32 %v1500, %v1519
  %v1521 = vrot.slane %v1520, 2
  %v1522 = vadd.f32 %v1520, %v1521
  %v1523 = vrot.slane %v1522, 1
  %v1524 = vadd.f32 %v1522, %v1523
  %v1525 = vmul.f32 %v456, %v256
  %v1526 = vmul.f32 %v459, %v259
  %v1527 = vmul.f32 %v462, %v262
  %v1528 = vmul.f32 %v465, %v265
  %v1529 = vrot.slane %v1525, 4
  %v1530 = vadd.f32 %v1525, %v1529
  %v1531 = vrot.slane %v1530, 2
  %v1532 = vadd.f32 %v1530, %v1531
  %v1533 = vrot.slane %v1532, 1
  %v1534 = vadd.f32 %v1532, %v1533
  %v1535 = vrot.slane %v1526, 4
  %v1536 = vadd.f32 %v1526, %v1535
  %v1537 = vrot.slane %v1536, 2
  %v1538 = vadd.f32 %v1536, %v1537
  %v1539 = vrot.slane %v1538, 1
  %v1540 = vadd.f32 %v1538, %v1539
  %v1541 = vrot.slane %v1527, 4
  %v1542 = vadd.f32 %v1527, %v1541
  %v1543 = vrot.slane %v1542, 2
  %v1544 = vadd.f32 %v1542, %v1543
  %v1545 = vrot.slane %v1544, 1
  %v1546 = vadd.f32 %v1544, %v1545
  %v1547 = vrot.slane %v1528, 4
  %v1548 = vadd.f32 %v1528, %v1547
  %v1549 = vrot.slane %v1548, 2
  %v1550 = vadd.f32 %v1548, %v1549
  %v1551 = vrot.slane %v1550, 1
  %v1552 = vadd.f32 %v1550, %v1551
  %v1553 = vmul.f32 %v456, %v309
  %v1554 = vmul.f32 %v459, %v312
  %v1555 = vmul.f32 %v462, %v315
  %v1556 = vmul.f32 %v465, %v318
  %v1557 = vrot.slane %v1553, 4
  %v1558 = vadd.f32 %v1553, %v1557
  %v1559 = vrot.slane %v1558, 2
  %v1560 = vadd.f32 %v1558, %v1559
  %v1561 = vrot.slane %v1560, 1
  %v1562 = vadd.f32 %v1560, %v1561
  %v1563 = vrot.slane %v1554, 4
  %v1564 = vadd.f32 %v1554, %v1563
  %v1565 = vrot.slane %v1564, 2
  %v1566 = vadd.f32 %v1564, %v1565
  %v1567 = vrot.slane %v1566, 1
  %v1568 = vadd.f32 %v1566, %v1567
  %v1569 = vrot.slane %v1555, 4
  %v1570 = vadd.f32 %v1555, %v1569
  %v1571 = vrot.slane %v1570, 2
  %v1572 = vadd.f32 %v1570, %v1571
  %v1573 = vrot.slane %v1572, 1
  %v1574 = vadd.f32 %v1572, %v1573
  %v1575 = vrot.slane %v1556, 4
  %v1576 = vadd.f32 %v1556, %v1575
  %v1577 = vrot.slane %v1576, 2
  %v1578 = vadd.f32 %v1576, %v1577
  %v1579 = vrot.slane %v1578, 1
  %v1580 = vadd.f32 %v1578, %v1579
  %v1581 = vmul.f32 %v456, %v362
  %v1582 = vmul.f32 %v459, %v365
  %v1583 = vmul.f32 %v462, %v368
  %v1584 = vmul.f32 %v465, %v371
  %v1585 = vrot.slane %v1581, 4
  %v1586 = vadd.f32 %v1581, %v1585
  %v1587 = vrot.slane %v1586, 2
  %v1588 = vadd.f32 %v1586, %v1587
  %v1589 = vrot.slane %v1588, 1
  %v1590 = vadd.f32 %v1588, %v1589
  %v1591 = vrot.slane %v1582, 4
  %v1592 = vadd.f32 %v1582, %v1591
  %v1593 = vrot.slane %v1592, 2
  %v1594 = vadd.f32 %v1592, %v1593
  %v1595 = vrot.slane %v1594, 1
  %v1596 = vadd.f32 %v1594, %v1595
  %v1597 = vrot.slane %v1583, 4
  %v1598 = vadd.f32 %v1583, %v1597
  %v1599 = vrot.slane %v1598, 2
  %v1600 = vadd.f32 %v1598, %v1599
  %v1601 = vrot.slane %v1600, 1
  %v1602 = vadd.f32 %v1600, %v1601
  %v1603 = vrot.slane %v1584, 4
  %v1604 = vadd.f32 %v1584, %v1603
  %v1605 = vrot.slane %v1604, 2
  %v1606 = vadd.f32 %v1604, %v1605
  %v1607 = vrot.slane %v1606, 1
  %v1608 = vadd.f32 %v1606, %v1607
  %v1609 = vmul.f32 %v456, %v415
  %v1610 = vmul.f32 %v459, %v418
  %v1611 = vmul.f32 %v462, %v421
  %v1612 = vmul.f32 %v465, %v424
  %v1613 = vrot.slane %v1609, 4
  %v1614 = vadd.f32 %v1609, %v1613
  %v1615 = vrot.slane %v1614, 2
  %v1616 = vadd.f32 %v1614, %v1615
  %v1617 = vrot.slane %v1616, 1
  %v1618 = vadd.f32 %v1616, %v1617
  %v1619 = vrot.slane %v1610, 4
  %v1620 = vadd.f32 %v1610, %v1619
  %v1621 = vrot.slane %v1620, 2
  %v1622 = vadd.f32 %v1620, %v1621
  %v1623 = vrot.slane %v1622, 1
  %v1624 = vadd.f32 %v1622, %v1623
  %v1625 = vrot.slane %v1611, 4
  %v1626 = vadd.f32 %v1611, %v1625
  %v1627 = vrot.slane %v1626, 2
  %v1628 = vadd.f32 %v1626, %v1627
  %v1629 = vrot.slane %v1628, 1
  %v1630 = vadd.f32 %v1628, %v1629
  %v1631 = vrot.slane %v1612, 4
  %v1632 = vadd.f32 %v1612, %v1631
  %v1633 = vrot.slane %v1632, 2
  %v1634 = vadd.f32 %v1632, %v1633
  %v1635 = vrot.slane %v1634, 1
  %v1636 = vadd.f32 %v1634, %v1635
  %v1637 = vmul.f32 %v456, %v468
  %v1638 = vmul.f32 %v459, %v471
  %v1639 = vmul.f32 %v462, %v474
  %v1640 = vmul.f32 %v465, %v477
  %v1641 = vrot.slane %v1637, 4
  %v1642 = vadd.f32 %v1637, %v1641
  %v1643 = vrot.slane %v1642, 2
  %v1644 = vadd.f32 %v1642, %v1643
  %v1645 = vrot.slane %v1644, 1
  %v1646 = vadd.f32 %v1644, %v1645
  %v1647 = vrot.slane %v1638, 4
  %v1648 = vadd.f32 %v1638, %v1647
  %v1649 = vrot.slane %v1648, 2
  %v1650 = vadd.f32 %v1648, %v1649
  %v1651 = vrot.slane %v1650, 1
  %v1652 = vadd.f32 %v1650, %v1651
  %v1653 = vrot.slane %v1639, 4
  %v1654 = vadd.f32 %v1639, %v1653
  %v1655 = vrot.slane %v1654, 2
  %v1656 = vadd.f32 %v1654, %v1655
  %v1657 = vrot.slane %v1656, 1
  %v1658 = vadd.f32 %v1656, %v1657
  %v1659 = vrot.slane %v1640, 4
  %v1660 = vadd.f32 %v1640, %v1659
  %v1661 = vrot.slane %v1660, 2
  %v1662 = vadd.f32 %v1660, %v1661
  %v1663 = vrot.slane %v1662, 1
  %v1664 = vadd.f32 %v1662, %v1663
  %v1665 = vmax.f32 %v1506, %v1534
  %v1666 = vmax.f32 %v1512, %v1540
  %v1667 = vmax.f32 %v1518, %v1546
  %v1668 = vmax.f32 %v1524, %v1552
  %v1669 = vmax.f32 %v1665, %v1562
  %v1670 = vmax.f32 %v1666, %v1568
  %v1671 = vmax.f32 %v1667, %v1574
  %v1672 = vmax.f32 %v1668, %v1580
  %v1673 = vmax.f32 %v1669, %v1590
  %v1674 = vmax.f32 %v1670, %v1596
  %v1675 = vmax.f32 %v1671, %v1602
  %v1676 = vmax.f32 %v1672, %v1608
  %v1677 = vmax.f32 %v1673, %v1618
  %v1678 = vmax.f32 %v1674, %v1624
  %v1679 = vmax.f32 %v1675, %v1630
  %v1680 = vmax.f32 %v1676, %v1636
  %v1681 = vmax.f32 %v1677, %v1646
  %v1682 = vmax.f32 %v1678, %v1652
  %v1683 = vmax.f32 %v1679, %v1658
  %v1684 = vmax.f32 %v1680, %v1664
  %v1685 = vsub.f32 %v1506, %v1681
  %v1686 = vsub.f32 %v1512, %v1682
  %v1687 = vsub.f32 %v1518, %v1683
  %v1688 = vsub.f32 %v1524, %v1684
  %v1689 = vmul.f32 %v1685, 1.442695
  %v1690 = vpow.pop %v1689
  %v1691 = vmul.f32 %v1686, 1.442695
  %v1692 = vpow.pop %v1691
  %v1693 = vmul.f32 %v1687, 1.442695
  %v1694 = vpow.pop %v1693
  %v1695 = vmul.f32 %v1688, 1.442695
  %v1696 = vpow.pop %v1695
  %v1697 = vsub.f32 %v1534, %v1681
  %v1698 = vsub.f32 %v1540, %v1682
  %v1699 = vsub.f32 %v1546, %v1683
  %v1700 = vsub.f32 %v1552, %v1684
  %v1701 = vmul.f32 %v1697, 1.442695
  %v1702 = vpow.pop %v1701
  %v1703 = vmul.f32 %v1698, 1.442695
  %v1704 = vpow.pop %v1703
  %v1705 = vmul.f32 %v1699, 1.442695
  %v1706 = vpow.pop %v1705
  %v1707 = vmul.f32 %v1700, 1.442695
  %v1708 = vpow.pop %v1707
  %v1709 = vsub.f32 %v1562, %v1681
  %v1710 = vsub.f32 %v1568, %v1682
  %v1711 = vsub.f32 %v1574, %v1683
  %v1712 = vsub.f32 %v1580, %v1684
  %v1713 = vmul.f32 %v1709, 1.442695
  %v1714 = vpow.pop %v1713
  %v1715 = vmul.f32 %v1710, 1.442695
  %v1716 = vpow.pop %v1715
  %v1717 = vmul.f32 %v1711, 1.442695
  %v1718 = vpow.pop %v1717
  %v1719 = vmul.f32 %v1712, 1.442695
  %v1720 = vpow.pop %v1719
  %v1721 = vsub.f32 %v1590, %v1681
  %v1722 = vsub.f32 %v1596, %v1682
  %v1723 = vsub.f32 %v1602, %v1683
  %v1724 = vsub.f32 %v1608, %v1684
  %v1725 = vmul.f32 %v1721, 1.442695
  %v1726 = vpow.pop %v1725
  %v1727 = vmul.f32 %v1722, 1.442695
  %v1728 = vpow.pop %v1727
  %v1729 = vmul.f32 %v1723, 1.442695
  %v1730 = vpow.pop %v1729
  %v1731 = vmul.f32 %v1724, 1.442695
  %v1732 = vpow.pop %v1731
  %v1733 = vsub.f32 %v1618, %v1681
  %v1734 = vsub.f32 %v1624, %v1682
  %v1735 = vsub.f32 %v1630, %v1683
  %v1736 = vsub.f32 %v1636, %v1684
  %v1737 = vmul.f32 %v1733, 1.442695
  %v1738 = vpow.pop %v1737
  %v1739 = vmul.f32 %v1734, 1.442695
  %v1740 = vpow.pop %v1739
  %v1741 = vmul.f32 %v1735, 1.442695
  %v1742 = vpow.pop %v1741
  %v1743 = vmul.f32 %v1736, 1.442695
  %v1744 = vpow.pop %v1743
  %v1745 = vsub.f32 %v1646, %v1681
  %v1746 = vsub.f32 %v1652, %v1682
  %v1747 = vsub.f32 %v1658, %v1683
  %v1748 = vsub.f32 %v1664, %v1684
  %v1749 = vmul.f32 %v1745, 1.442695
  %v1750 = vpow.pop %v1749
  %v1751 = vmul.f32 %v1746, 1.442695
  %v1752 = vpow.pop %v1751
  %v1753 = vmul.f32 %v1747, 1.442695
  %v1754 = vpow.pop %v1753
  %v1755 = vmul.f32 %v1748, 1.442695
  %v1756 = vpow.pop %v1755
  %v1757 = vadd.f32 %v1690, %v1702
  %v1758 = vadd.f32 %v1692, %v1704
  %v1759 = vadd.f32 %v1694, %v1706
  %v1760 = vadd.f32 %v1696, %v1708
  %v1761 = vadd.f32 %v1757, %v1714
  %v1762 = vadd.f32 %v1758, %v1716
  %v1763 = vadd.f32 %v1759, %v1718
  %v1764 = vadd.f32 %v1760, %v1720
  %v1765 = vadd.f32 %v1761, %v1726
  %v1766 = vadd.f32 %v1762, %v1728
  %v1767 = vadd.f32 %v1763, %v1730
  %v1768 = vadd.f32 %v1764, %v1732
  %v1769 = vadd.f32 %v1765, %v1738
  %v1770 = vadd.f32 %v1766, %v1740
  %v1771 = vadd.f32 %v1767, %v1742
  %v1772 = vadd.f32 %v1768, %v1744
  %v1773 = vadd.f32 %v1769, %v1750
  %v1774 = vadd.f32 %v1770, %v1752
  %v1775 = vadd.f32 %v1771, %v1754
  %v1776 = vadd.f32 %v1772, %v1756
  %v1777 = vrcp.pop %v1773
  %v1778 = vrcp.pop %v1774
  %v1779 = vrcp.pop %v1775
  %v1780 = vrcp.pop %v1776
  %v1781 = vmul.f32 %v1690, %v1777
  %v1782 = vmul.f32 %v1692, %v1778
  %v1783 = vmul.f32 %v1694, %v1779
  %v1784 = vmul.f32 %v1696, %v1780
  %v1785 = vmul.f32 %v1781, %v215
  %v1786 = vmul.f32 %v1782, %v218
  %v1787 = vmul.f32 %v1783, %v221
  %v1788 = vmul.f32 %v1784, %v224
  %v1789 = vadd.f32 %v1785, 0.0
  %v1790 = vadd.f32 %v1786, 0.0
  %v1791 = vadd.f32 %v1787, 0.0
  %v1792 = vadd.f32 %v1788, 0.0
  %v1793 = vmul.f32 %v1702, %v1777
  %v1794 = vmul.f32 %v1704, %v1778
  %v1795 = vmul.f32 %v1706, %v1779
  %v1796 = vmul.f32 %v1708, %v1780
  %v1797 = vmul.f32 %v1793, %v268
  %v1798 = vmul.f32 %v1794, %v271
  %v1799 = vmul.f32 %v1795, %v274
  %v1800 = vmul.f32 %v1796, %v277
  %v1801 = vadd.f32 %v1789, %v1797
  %v1802 = vadd.f32 %v1790, %v1798
  %v1803 = vadd.f32 %v1791, %v1799
  %v1804 = vadd.f32 %v1792, %v1800
  %v1805 = vmul.f32 %v1714, %v1777
  %v1806 = vmul.f32 %v1716, %v1778
  %v1807 = vmul.f32 %v1718, %v1779
  %v1808 = vmul.f32 %v1720, %v1780
  %v1809 = vmul.f32 %v1805, %v321
  %v1810 = vmul.f32 %v1806, %v324
  %v1811 = vmul.f32 %v1807, %v327
  %v1812 = vmul.f32 %v1808, %v330
  %v1813 = vadd.f32 %v1801, %v1809
  %v1814 = vadd.f32 %v1802, %v1810
  %v1815 = vadd.f32 %v1803, %v1811
  %v1816 = vadd.f32 %v1804, %v1812
  %v1817 = vmul.f32 %v1726, %v1777
  %v1818 = vmul.f32 %v1728, %v1778
  %v1819 = vmul.f32 %v1730, %v1779
  %v1820 = vmul.f32 %v1732, %v1780
  %v1821 = vmul.f32 %v1817, %v374
  %v1822 = vmul.f32 %v1818, %v377
  %v1823 = vmul.f32 %v1819, %v380
  %v1824 = vmul.f32 %v1820, %v383
  %v1825 = vadd.f32 %v1813, %v1821
  %v1826 = vadd.f32 %v1814, %v1822
  %v1827 = vadd.f32 %v1815, %v1823
  %v1828 = vadd.f32 %v1816, %v1824
  %v1829 = vmul.f32 %v1738, %v1777
  %v1830 = vmul.f32 %v1740, %v1778
  %v1831 = vmul.f32 %v1742, %v1779
  %v1832 = vmul.f32 %v1744, %v1780
  %v1833 = vmul.f32 %v1829, %v427
  %v1834 = vmul.f32 %v1830, %v430
  %v1835 = vmul.f32 %v1831, %v433
  %v1836 = vmul.f32 %v1832, %v436
  %v1837 = vadd.f32 %v1825, %v1833
  %v1838 = vadd.f32 %v1826, %v1834
  %v1839 = vadd.f32 %v1827, %v1835
  %v1840 = vadd.f32 %v1828, %v1836
  %v1841 = vmul.f32 %v1750, %v1777
  %v1842 = vmul.f32 %v1752, %v1778
  %v1843 = vmul.f32 %v1754, %v1779
  %v1844 = vmul.f32 %v1756, %v1780
  %v1845 = vmul.f32 %v1841, %v480
  %v1846 = vmul.f32 %v1842, %v483
  %v1847 = vmul.f32 %v1843, %v486
  %v1848 = vmul.f32 %v1844, %v489
  %v1849 = vadd.f32 %v1837, %v1845
  %v1850 = vadd.f32 %v1838, %v1846
  %v1851 = vadd.f32 %v1839, %v1847
  %v1852 = vadd.f32 %v1840, %v1848
  %1853 = vst [vmem:[#allocation2 + $0x28] sm:$0xff] %v1849
  %1854 = vst [vmem:[#allocation2 + $0x68] sm:$0xff] %v1850
  %1855 = vst [vmem:[#allocation2 + $0xa8] sm:$0xff] %v1851
  %1856 = vst [vmem:[#allocation2 + $0xe8] sm:$0xff] %v1852
  %v1857 = vmul.f32 %v509, %v203
  %v1858 = vmul.f32 %v512, %v206
  %v1859 = vmul.f32 %v515, %v209
  %v1860 = vmul.f32 %v518, %v212
  %v1861 = vrot.slane %v1857, 4
  %v1862 = vadd.f32 %v1857, %v1861
  %v1863 = vrot.slane %v1862, 2
  %v1864 = vadd.f32 %v1862, %v1863
  %v1865 = vrot.slane %v1864, 1
  %v1866 = vadd.f32 %v1864, %v1865
  %v1867 = vrot.slane %v1858, 4
  %v1868 = vadd.f32 %v1858, %v1867
  %v1869 = vrot.slane %v1868, 2
  %v1870 = vadd.f32 %v1868, %v1869
  %v1871 = vrot.slane %v1870, 1
  %v1872 = vadd.f32 %v1870, %v1871
  %v1873 = vrot.slane %v1859, 4
  %v1874 = vadd.f32 %v1859, %v1873
  %v1875 = vrot.slane %v1874, 2
  %v1876 = vadd.f32 %v1874, %v1875
  %v1877 = vrot.slane %v1876, 1
  %v1878 = vadd.f32 %v1876, %v1877
  %v1879 = vrot.slane %v1860, 4
  %v1880 = vadd.f32 %v1860, %v1879
  %v1881 = vrot.slane %v1880, 2
  %v1882 = vadd.f32 %v1880, %v1881
  %v1883 = vrot.slane %v1882, 1
  %v1884 = vadd.f32 %v1882, %v1883
  %v1885 = vmul.f32 %v509, %v256
  %v1886 = vmul.f32 %v512, %v259
  %v1887 = vmul.f32 %v515, %v262
  %v1888 = vmul.f32 %v518, %v265
  %v1889 = vrot.slane %v1885, 4
  %v1890 = vadd.f32 %v1885, %v1889
  %v1891 = vrot.slane %v1890, 2
  %v1892 = vadd.f32 %v1890, %v1891
  %v1893 = vrot.slane %v1892, 1
  %v1894 = vadd.f32 %v1892, %v1893
  %v1895 = vrot.slane %v1886, 4
  %v1896 = vadd.f32 %v1886, %v1895
  %v1897 = vrot.slane %v1896, 2
  %v1898 = vadd.f32 %v1896, %v1897
  %v1899 = vrot.slane %v1898, 1
  %v1900 = vadd.f32 %v1898, %v1899
  %v1901 = vrot.slane %v1887, 4
  %v1902 = vadd.f32 %v1887, %v1901
  %v1903 = vrot.slane %v1902, 2
  %v1904 = vadd.f32 %v1902, %v1903
  %v1905 = vrot.slane %v1904, 1
  %v1906 = vadd.f32 %v1904, %v1905
  %v1907 = vrot.slane %v1888, 4
  %v1908 = vadd.f32 %v1888, %v1907
  %v1909 = vrot.slane %v1908, 2
  %v1910 = vadd.f32 %v1908, %v1909
  %v1911 = vrot.slane %v1910, 1
  %v1912 = vadd.f32 %v1910, %v1911
  %v1913 = vmul.f32 %v509, %v309
  %v1914 = vmul.f32 %v512, %v312
  %v1915 = vmul.f32 %v515, %v315
  %v1916 = vmul.f32 %v518, %v318
  %v1917 = vrot.slane %v1913, 4
  %v1918 = vadd.f32 %v1913, %v1917
  %v1919 = vrot.slane %v1918, 2
  %v1920 = vadd.f32 %v1918, %v1919
  %v1921 = vrot.slane %v1920, 1
  %v1922 = vadd.f32 %v1920, %v1921
  %v1923 = vrot.slane %v1914, 4
  %v1924 = vadd.f32 %v1914, %v1923
  %v1925 = vrot.slane %v1924, 2
  %v1926 = vadd.f32 %v1924, %v1925
  %v1927 = vrot.slane %v1926, 1
  %v1928 = vadd.f32 %v1926, %v1927
  %v1929 = vrot.slane %v1915, 4
  %v1930 = vadd.f32 %v1915, %v1929
  %v1931 = vrot.slane %v1930, 2
  %v1932 = vadd.f32 %v1930, %v1931
  %v1933 = vrot.slane %v1932, 1
  %v1934 = vadd.f32 %v1932, %v1933
  %v1935 = vrot.slane %v1916, 4
  %v1936 = vadd.f32 %v1916, %v1935
  %v1937 = vrot.slane %v1936, 2
  %v1938 = vadd.f32 %v1936, %v1937
  %v1939 = vrot.slane %v1938, 1
  %v1940 = vadd.f32 %v1938, %v1939
  %v1941 = vmul.f32 %v509, %v362
  %v1942 = vmul.f32 %v512, %v365
  %v1943 = vmul.f32 %v515, %v368
  %v1944 = vmul.f32 %v518, %v371
  %v1945 = vrot.slane %v1941, 4
  %v1946 = vadd.f32 %v1941, %v1945
  %v1947 = vrot.slane %v1946, 2
  %v1948 = vadd.f32 %v1946, %v1947
  %v1949 = vrot.slane %v1948, 1
  %v1950 = vadd.f32 %v1948, %v1949
  %v1951 = vrot.slane %v1942, 4
  %v1952 = vadd.f32 %v1942, %v1951
  %v1953 = vrot.slane %v1952, 2
  %v1954 = vadd.f32 %v1952, %v1953
  %v1955 = vrot.slane %v1954, 1
  %v1956 = vadd.f32 %v1954, %v1955
  %v1957 = vrot.slane %v1943, 4
  %v1958 = vadd.f32 %v1943, %v1957
  %v1959 = vrot.slane %v1958, 2
  %v1960 = vadd.f32 %v1958, %v1959
  %v1961 = vrot.slane %v1960, 1
  %v1962 = vadd.f32 %v1960, %v1961
  %v1963 = vrot.slane %v1944, 4
  %v1964 = vadd.f32 %v1944, %v1963
  %v1965 = vrot.slane %v1964, 2
  %v1966 = vadd.f32 %v1964, %v1965
  %v1967 = vrot.slane %v1966, 1
  %v1968 = vadd.f32 %v1966, %v1967
  %v1969 = vmul.f32 %v509, %v415
  %v1970 = vmul.f32 %v512, %v418
  %v1971 = vmul.f32 %v515, %v421
  %v1972 = vmul.f32 %v518, %v424
  %v1973 = vrot.slane %v1969, 4
  %v1974 = vadd.f32 %v1969, %v1973
  %v1975 = vrot.slane %v1974, 2
  %v1976 = vadd.f32 %v1974, %v1975
  %v1977 = vrot.slane %v1976, 1
  %v1978 = vadd.f32 %v1976, %v1977
  %v1979 = vrot.slane %v1970, 4
  %v1980 = vadd.f32 %v1970, %v1979
  %v1981 = vrot.slane %v1980, 2
  %v1982 = vadd.f32 %v1980, %v1981
  %v1983 = vrot.slane %v1982, 1
  %v1984 = vadd.f32 %v1982, %v1983
  %v1985 = vrot.slane %v1971, 4
  %v1986 = vadd.f32 %v1971, %v1985
  %v1987 = vrot.slane %v1986, 2
  %v1988 = vadd.f32 %v1986, %v1987
  %v1989 = vrot.slane %v1988, 1
  %v1990 = vadd.f32 %v1988, %v1989
  %v1991 = vrot.slane %v1972, 4
  %v1992 = vadd.f32 %v1972, %v1991
  %v1993 = vrot.slane %v1992, 2
  %v1994 = vadd.f32 %v1992, %v1993
  %v1995 = vrot.slane %v1994, 1
  %v1996 = vadd.f32 %v1994, %v1995
  %v1997 = vmul.f32 %v509, %v468
  %v1998 = vmul.f32 %v512, %v471
  %v1999 = vmul.f32 %v515, %v474
  %v2000 = vmul.f32 %v518, %v477
  %v2001 = vrot.slane %v1997, 4
  %v2002 = vadd.f32 %v1997, %v2001
  %v2003 = vrot.slane %v2002, 2
  %v2004 = vadd.f32 %v2002, %v2003
  %v2005 = vrot.slane %v2004, 1
  %v2006 = vadd.f32 %v2004, %v2005
  %v2007 = vrot.slane %v1998, 4
  %v2008 = vadd.f32 %v1998, %v2007
  %v2009 = vrot.slane %v2008, 2
  %v2010 = vadd.f32 %v2008, %v2009
  %v2011 = vrot.slane %v2010, 1
  %v2012 = vadd.f32 %v2010, %v2011
  %v2013 = vrot.slane %v1999, 4
  %v2014 = vadd.f32 %v1999, %v2013
  %v2015 = vrot.slane %v2014, 2
  %v2016 = vadd.f32 %v2014, %v2015
  %v2017 = vrot.slane %v2016, 1
  %v2018 = vadd.f32 %v2016, %v2017
  %v2019 = vrot.slane %v2000, 4
  %v2020 = vadd.f32 %v2000, %v2019
  %v2021 = vrot.slane %v2020, 2
  %v2022 = vadd.f32 %v2020, %v2021
  %v2023 = vrot.slane %v2022, 1
  %v2024 = vadd.f32 %v2022, %v2023
  %v2025 = vmul.f32 %v509, %v521
  %v2026 = vmul.f32 %v512, %v524
  %v2027 = vmul.f32 %v515, %v527
  %v2028 = vmul.f32 %v518, %v530
  %v2029 = vrot.slane %v2025, 4
  %v2030 = vadd.f32 %v2025, %v2029
  %v2031 = vrot.slane %v2030, 2
  %v2032 = vadd.f32 %v2030, %v2031
  %v2033 = vrot.slane %v2032, 1
  %v2034 = vadd.f32 %v2032, %v2033
  %v2035 = vrot.slane %v2026, 4
  %v2036 = vadd.f32 %v2026, %v2035
  %v2037 = vrot.slane %v2036, 2
  %v2038 = vadd.f32 %v2036, %v2037
  %v2039 = vrot.slane %v2038, 1
  %v2040 = vadd.f32 %v2038, %v2039
  %v2041 = vrot.slane %v2027, 4
  %v2042 = vadd.f32 %v2027, %v2041
  %v2043 = vrot.slane %v2042, 2
  %v2044 = vadd.f32 %v2042, %v2043
  %v2045 = vrot.slane %v2044, 1
  %v2046 = vadd.f32 %v2044, %v2045
  %v2047 = vrot.slane %v2028, 4
  %v2048 = vadd.f32 %v2028, %v2047
  %v2049 = vrot.slane %v2048, 2
  %v2050 = vadd.f32 %v2048, %v2049
  %v2051 = vrot.slane %v2050, 1
  %v2052 = vadd.f32 %v2050, %v2051
  %v2053 = vmax.f32 %v1866, %v1894
  %v2054 = vmax.f32 %v1872, %v1900
  %v2055 = vmax.f32 %v1878, %v1906
  %v2056 = vmax.f32 %v1884, %v1912
  %v2057 = vmax.f32 %v2053, %v1922
  %v2058 = vmax.f32 %v2054, %v1928
  %v2059 = vmax.f32 %v2055, %v1934
  %v2060 = vmax.f32 %v2056, %v1940
  %v2061 = vmax.f32 %v2057, %v1950
  %v2062 = vmax.f32 %v2058, %v1956
  %v2063 = vmax.f32 %v2059, %v1962
  %v2064 = vmax.f32 %v2060, %v1968
  %v2065 = vmax.f32 %v2061, %v1978
  %v2066 = vmax.f32 %v2062, %v1984
  %v2067 = vmax.f32 %v2063, %v1990
  %v2068 = vmax.f32 %v2064, %v1996
  %v2069 = vmax.f32 %v2065, %v2006
  %v2070 = vmax.f32 %v2066, %v2012
  %v2071 = vmax.f32 %v2067, %v2018
  %v2072 = vmax.f32 %v2068, %v2024
  %v2073 = vmax.f32 %v2069, %v2034
  %v2074 = vmax.f32 %v2070, %v2040
  %v2075 = vmax.f32 %v2071, %v2046
  %v2076 = vmax.f32 %v2072, %v2052
  %v2077 = vsub.f32 %v1866, %v2073
  %v2078 = vsub.f32 %v1872, %v2074
  %v2079 = vsub.f32 %v1878, %v2075
  %v2080 = vsub.f32 %v1884, %v2076
  %v2081 = vmul.f32 %v2077, 1.442695
  %v2082 = vpow.pop %v2081
  %v2083 = vmul.f32 %v2078, 1.442695
  %v2084 = vpow.pop %v2083
  %v2085 = vmul.f32 %v2079, 1.442695
  %v2086 = vpow.pop %v2085
  %v2087 = vmul.f32 %v2080, 1.442695
  %v2088 = vpow.pop %v2087
  %v2089 = vsub.f32 %v1894, %v2073
  %v2090 = vsub.f32 %v1900, %v2074
  %v2091 = vsub.f32 %v1906, %v2075
  %v2092 = vsub.f32 %v1912, %v2076
  %v2093 = vmul.f32 %v2089, 1.442695
  %v2094 = vpow.pop %v2093
  %v2095 = vmul.f32 %v2090, 1.442695
  %v2096 = vpow.pop %v2095
  %v2097 = vmul.f32 %v2091, 1.442695
  %v2098 = vpow.pop %v2097
  %v2099 = vmul.f32 %v2092, 1.442695
  %v2100 = vpow.pop %v2099
  %v2101 = vsub.f32 %v1922, %v2073
  %v2102 = vsub.f32 %v1928, %v2074
  %v2103 = vsub.f32 %v1934, %v2075
  %v2104 = vsub.f32 %v1940, %v2076
  %v2105 = vmul.f32 %v2101, 1.442695
  %v2106 = vpow.pop %v2105
  %v2107 = vmul.f32 %v2102, 1.442695
  %v2108 = vpow.pop %v2107
  %v2109 = vmul.f32 %v2103, 1.442695
  %v2110 = vpow.pop %v2109
  %v2111 = vmul.f32 %v2104, 1.442695
  %v2112 = vpow.pop %v2111
  %v2113 = vsub.f32 %v1950, %v2073
  %v2114 = vsub.f32 %v1956, %v2074
  %v2115 = vsub.f32 %v1962, %v2075
  %v2116 = vsub.f32 %v1968, %v2076
  %v2117 = vmul.f32 %v2113, 1.442695
  %v2118 = vpow.pop %v2117
  %v2119 = vmul.f32 %v2114, 1.442695
  %v2120 = vpow.pop %v2119
  %v2121 = vmul.f32 %v2115, 1.442695
  %v2122 = vpow.pop %v2121
  %v2123 = vmul.f32 %v2116, 1.442695
  %v2124 = vpow.pop %v2123
  %v2125 = vsub.f32 %v1978, %v2073
  %v2126 = vsub.f32 %v1984, %v2074
  %v2127 = vsub.f32 %v1990, %v2075
  %v2128 = vsub.f32 %v1996, %v2076
  %v2129 = vmul.f32 %v2125, 1.442695
  %v2130 = vpow.pop %v2129
  %v2131 = vmul.f32 %v2126, 1.442695
  %v2132 = vpow.pop %v2131
  %v2133 = vmul.f32 %v2127, 1.442695
  %v2134 = vpow.pop %v2133
  %v2135 = vmul.f32 %v2128, 1.442695
  %v2136 = vpow.pop %v2135
  %v2137 = vsub.f32 %v2006, %v2073
  %v2138 = vsub.f32 %v2012, %v2074
  %v2139 = vsub.f32 %v2018, %v2075
  %v2140 = vsub.f32 %v2024, %v2076
  %v2141 = vmul.f32 %v2137, 1.442695
  %v2142 = vpow.pop %v2141
  %v2143 = vmul.f32 %v2138, 1.442695
  %v2144 = vpow.pop %v2143
  %v2145 = vmul.f32 %v2139, 1.442695
  %v2146 = vpow.pop %v2145
  %v2147 = vmul.f32 %v2140, 1.442695
  %v2148 = vpow.pop %v2147
  %v2149 = vsub.f32 %v2034, %v2073
  %v2150 = vsub.f32 %v2040, %v2074
  %v2151 = vsub.f32 %v2046, %v2075
  %v2152 = vsub.f32 %v2052, %v2076
  %v2153 = vmul.f32 %v2149, 1.442695
  %v2154 = vpow.pop %v2153
  %v2155 = vmul.f32 %v2150, 1.442695
  %v2156 = vpow.pop %v2155
  %v2157 = vmul.f32 %v2151, 1.442695
  %v2158 = vpow.pop %v2157
  %v2159 = vmul.f32 %v2152, 1.442695
  %v2160 = vpow.pop %v2159
  %v2161 = vadd.f32 %v2082, %v2094
  %v2162 = vadd.f32 %v2084, %v2096
  %v2163 = vadd.f32 %v2086, %v2098
  %v2164 = vadd.f32 %v2088, %v2100
  %v2165 = vadd.f32 %v2161, %v2106
  %v2166 = vadd.f32 %v2162, %v2108
  %v2167 = vadd.f32 %v2163, %v2110
  %v2168 = vadd.f32 %v2164, %v2112
  %v2169 = vadd.f32 %v2165, %v2118
  %v2170 = vadd.f32 %v2166, %v2120
  %v2171 = vadd.f32 %v2167, %v2122
  %v2172 = vadd.f32 %v2168, %v2124
  %v2173 = vadd.f32 %v2169, %v2130
  %v2174 = vadd.f32 %v2170, %v2132
  %v2175 = vadd.f32 %v2171, %v2134
  %v2176 = vadd.f32 %v2172, %v2136
  %v2177 = vadd.f32 %v2173, %v2142
  %v2178 = vadd.f32 %v2174, %v2144
  %v2179 = vadd.f32 %v2175, %v2146
  %v2180 = vadd.f32 %v2176, %v2148
  %v2181 = vadd.f32 %v2177, %v2154
  %v2182 = vadd.f32 %v2178, %v2156
  %v2183 = vadd.f32 %v2179, %v2158
  %v2184 = vadd.f32 %v2180, %v2160
  %v2185 = vrcp.pop %v2181
  %v2186 = vrcp.pop %v2182
  %v2187 = vrcp.pop %v2183
  %v2188 = vrcp.pop %v2184
  %v2189 = vmul.f32 %v2082, %v2185
  %v2190 = vmul.f32 %v2084, %v2186
  %v2191 = vmul.f32 %v2086, %v2187
  %v2192 = vmul.f32 %v2088, %v2188
  %v2193 = vmul.f32 %v2189, %v215
  %v2194 = vmul.f32 %v2190, %v218
  %v2195 = vmul.f32 %v2191, %v221
  %v2196 = vmul.f32 %v2192, %v224
  %v2197 = vadd.f32 %v2193, 0.0
  %v2198 = vadd.f32 %v2194, 0.0
  %v2199 = vadd.f32 %v2195, 0.0
  %v2200 = vadd.f32 %v2196, 0.0
  %v2201 = vmul.f32 %v2094, %v2185
  %v2202 = vmul.f32 %v2096, %v2186
  %v2203 = vmul.f32 %v2098, %v2187
  %v2204 = vmul.f32 %v2100, %v2188
  %v2205 = vmul.f32 %v2201, %v268
  %v2206 = vmul.f32 %v2202, %v271
  %v2207 = vmul.f32 %v2203, %v274
  %v2208 = vmul.f32 %v2204, %v277
  %v2209 = vadd.f32 %v2197, %v2205
  %v2210 = vadd.f32 %v2198, %v2206
  %v2211 = vadd.f32 %v2199, %v2207
  %v2212 = vadd.f32 %v2200, %v2208
  %v2213 = vmul.f32 %v2106, %v2185
  %v2214 = vmul.f32 %v2108, %v2186
  %v2215 = vmul.f32 %v2110, %v2187
  %v2216 = vmul.f32 %v2112, %v2188
  %v2217 = vmul.f32 %v2213, %v321
  %v2218 = vmul.f32 %v2214, %v324
  %v2219 = vmul.f32 %v2215, %v327
  %v2220 = vmul.f32 %v2216, %v330
  %v2221 = vadd.f32 %v2209, %v2217
  %v2222 = vadd.f32 %v2210, %v2218
  %v2223 = vadd.f32 %v2211, %v2219
  %v2224 = vadd.f32 %v2212, %v2220
  %v2225 = vmul.f32 %v2118, %v2185
  %v2226 = vmul.f32 %v2120, %v2186
  %v2227 = vmul.f32 %v2122, %v2187
  %v2228 = vmul.f32 %v2124, %v2188
  %v2229 = vmul.f32 %v2225, %v374
  %v2230 = vmul.f32 %v2226, %v377
  %v2231 = vmul.f32 %v2227, %v380
  %v2232 = vmul.f32 %v2228, %v383
  %v2233 = vadd.f32 %v2221, %v2229
  %v2234 = vadd.f32 %v2222, %v2230
  %v2235 = vadd.f32 %v2223, %v2231
  %v2236 = vadd.f32 %v2224, %v2232
  %v2237 = vmul.f32 %v2130, %v2185
  %v2238 = vmul.f32 %v2132, %v2186
  %v2239 = vmul.f32 %v2134, %v2187
  %v2240 = vmul.f32 %v2136, %v2188
  %v2241 = vmul.f32 %v2237, %v427
  %v2242 = vmul.f32 %v2238, %v430
  %v2243 = vmul.f32 %v2239, %v433
  %v2244 = vmul.f32 %v2240, %v436
  %v2245 = vadd.f32 %v2233, %v2241
  %v2246 = vadd.f32 %v2234, %v2242
  %v2247 = vadd.f32 %v2235, %v2243
  %v2248 = vadd.f32 %v2236, %v2244
  %v2249 = vmul.f32 %v2142, %v2185
  %v2250 = vmul.f32 %v2144, %v2186
  %v2251 = vmul.f32 %v2146, %v2187
  %v2252 = vmul.f32 %v2148, %v2188
  %v2253 = vmul.f32 %v2249, %v480
  %v2254 = vmul.f32 %v2250, %v483
  %v2255 = vmul.f32 %v2251, %v486
  %v2256 = vmul.f32 %v2252, %v489
  %v2257 = vadd.f32 %v2245, %v2253
  %v2258 = vadd.f32 %v2246, %v2254
  %v2259 = vadd.f32 %v2247, %v2255
  %v2260 = vadd.f32 %v2248, %v2256
  %v2261 = vmul.f32 %v2154, %v2185
  %v2262 = vmul.f32 %v2156, %v2186
  %v2263 = vmul.f32 %v2158, %v2187
  %v2264 = vmul.f32 %v2160, %v2188
  %v2265 = vmul.f32 %v2261, %v533
  %v2266 = vmul.f32 %v2262, %v536
  %v2267 = vmul.f32 %v2263, %v539
  %v2268 = vmul.f32 %v2264, %v542
  %v2269 = vadd.f32 %v2257, %v2265
  %v2270 = vadd.f32 %v2258, %v2266
  %v2271 = vadd.f32 %v2259, %v2267
  %v2272 = vadd.f32 %v2260, %v2268
  %2273 = vst [vmem:[#allocation2 + $0x30] sm:$0xff] %v2269
  %2274 = vst [vmem:[#allocation2 + $0x70] sm:$0xff] %v2270
  %2275 = vst [vmem:[#allocation2 + $0xb0] sm:$0xff] %v2271
  %2276 = vst [vmem:[#allocation2 + $0xf0] sm:$0xff] %v2272
  %v2277 = vmul.f32 %v562, %v203
  %v2278 = vmul.f32 %v565, %v206
  %v2279 = vmul.f32 %v568, %v209
  %v2280 = vmul.f32 %v571, %v212
  %v2281 = vrot.slane %v2277, 4
  %v2282 = vadd.f32 %v2277, %v2281
  %v2283 = vrot.slane %v2282, 2
  %v2284 = vadd.f32 %v2282, %v2283
  %v2285 = vrot.slane %v2284, 1
  %v2286 = vadd.f32 %v2284, %v2285
  %v2287 = vrot.slane %v2278, 4
  %v2288 = vadd.f32 %v2278, %v2287
  %v2289 = vrot.slane %v2288, 2
  %v2290 = vadd.f32 %v2288, %v2289
  %v2291 = vrot.slane %v2290, 1
  %v2292 = vadd.f32 %v2290, %v2291
  %v2293 = vrot.slane %v2279, 4
  %v2294 = vadd.f32 %v2279, %v2293
  %v2295 = vrot.slane %v2294, 2
  %v2296 = vadd.f32 %v2294, %v2295
  %v2297 = vrot.slane %v2296, 1
  %v2298 = vadd.f32 %v2296, %v2297
  %v2299 = vrot.slane %v2280, 4
  %v2300 = vadd.f32 %v2280, %v2299
  %v2301 = vrot.slane %v2300, 2
  %v2302 = vadd.f32 %v2300, %v2301
  %v2303 = vrot.slane %v2302, 1
  %v2304 = vadd.f32 %v2302, %v2303
  %v2305 = vmul.f32 %v562, %v256
  %v2306 = vmul.f32 %v565, %v259
  %v2307 = vmul.f32 %v568, %v262
  %v2308 = vmul.f32 %v571, %v265
  %v2309 = vrot.slane %v2305, 4
  %v2310 = vadd.f32 %v2305, %v2309
  %v2311 = vrot.slane %v2310, 2
  %v2312 = vadd.f32 %v2310, %v2311
  %v2313 = vrot.slane %v2312, 1
  %v2314 = vadd.f32 %v2312, %v2313
  %v2315 = vrot.slane %v2306, 4
  %v2316 = vadd.f32 %v2306, %v2315
  %v2317 = vrot.slane %v2316, 2
  %v2318 = vadd.f32 %v2316, %v2317
  %v2319 = vrot.slane %v2318, 1
  %v2320 = vadd.f32 %v2318, %v2319
  %v2321 = vrot.slane %v2307, 4
  %v2322 = vadd.f32 %v2307, %v2321
  %v2323 = vrot.slane %v2322, 2
  %v2324 = vadd.f32 %v2322, %v2323
  %v2325 = vrot.slane %v2324, 1
  %v2326 = vadd.f32 %v2324, %v2325
  %v2327 = vrot.slane %v2308, 4
  %v2328 = vadd.f32 %v2308, %v2327
  %v2329 = vrot.slane %v2328, 2
  %v2330 = vadd.f32 %v2328, %v2329
  %v2331 = vrot.slane %v2330, 1
  %v2332 = vadd.f32 %v2330, %v2331
  %v2333 = vmul.f32 %v562, %v309
  %v2334 = vmul.f32 %v565, %v312
  %v2335 = vmul.f32 %v568, %v315
  %v2336 = vmul.f32 %v571, %v318
  %v2337 = vrot.slane %v2333, 4
  %v2338 = vadd.f32 %v2333, %v2337
  %v2339 = vrot.slane %v2338, 2
  %v2340 = vadd.f32 %v2338, %v2339
  %v2341 = vrot.slane %v2340, 1
  %v2342 = vadd.f32 %v2340, %v2341
  %v2343 = vrot.slane %v2334, 4
  %v2344 = vadd.f32 %v2334, %v2343
  %v2345 = vrot.slane %v2344, 2
  %v2346 = vadd.f32 %v2344, %v2345
  %v2347 = vrot.slane %v2346, 1
  %v2348 = vadd.f32 %v2346, %v2347
  %v2349 = vrot.slane %v2335, 4
  %v2350 = vadd.f32 %v2335, %v2349
  %v2351 = vrot.slane %v2350, 2
  %v2352 = vadd.f32 %v2350, %v2351
  %v2353 = vrot.slane %v2352, 1
  %v2354 = vadd.f32 %v2352, %v2353
  %v2355 = vrot.slane %v2336, 4
  %v2356 = vadd.f32 %v2336, %v2355
  %v2357 = vrot.slane %v2356, 2
  %v2358 = vadd.f32 %v2356, %v2357
  %v2359 = vrot.slane %v2358, 1
  %v2360 = vadd.f32 %v2358, %v2359
  %v2361 = vmul.f32 %v562, %v362
  %v2362 = vmul.f32 %v565, %v365
  %v2363 = vmul.f32 %v568, %v368
  %v2364 = vmul.f32 %v571, %v371
  %v2365 = vrot.slane %v2361, 4
  %v2366 = vadd.f32 %v2361, %v2365
  %v2367 = vrot.slane %v2366, 2
  %v2368 = vadd.f32 %v2366, %v2367
  %v2369 = vrot.slane %v2368, 1
  %v2370 = vadd.f32 %v2368, %v2369
  %v2371 = vrot.slane %v2362, 4
  %v2372 = vadd.f32 %v2362, %v2371
  %v2373 = vrot.slane %v2372, 2
  %v2374 = vadd.f32 %v2372, %v2373
  %v2375 = vrot.slane %v2374, 1
  %v2376 = vadd.f32 %v2374, %v2375
  %v2377 = vrot.slane %v2363, 4
  %v2378 = vadd.f32 %v2363, %v2377
  %v2379 = vrot.slane %v2378, 2
  %v2380 = vadd.f32 %v2378, %v2379
  %v2381 = vrot.slane %v2380, 1
  %v2382 = vadd.f32 %v2380, %v2381
  %v2383 = vrot.slane %v2364, 4
  %v2384 = vadd.f32 %v2364, %v2383
  %v2385 = vrot.slane %v2384, 2
  %v2386 = vadd.f32 %v2384, %v2385
  %v2387 = vrot.slane %v2386, 1
  %v2388 = vadd.f32 %v2386, %v2387
  %v2389 = vmul.f32 %v562, %v415
  %v2390 = vmul.f32 %v565, %v418
  %v2391 = vmul.f32 %v568, %v421
  %v2392 = vmul.f32 %v571, %v424
  %v2393 = vrot.slane %v2389, 4
  %v2394 = vadd.f32 %v2389, %v2393
  %v2395 = vrot.slane %v2394, 2
  %v2396 = vadd.f32 %v2394, %v2395
  %v2397 = vrot.slane %v2396, 1
  %v2398 = vadd.f32 %v2396, %v2397
  %v2399 = vrot.slane %v2390, 4
  %v2400 = vadd.f32 %v2390, %v2399
  %v2401 = vrot.slane %v2400, 2
  %v2402 = vadd.f32 %v2400, %v2401
  %v2403 = vrot.slane %v2402, 1
  %v2404 = vadd.f32 %v2402, %v2403
  %v2405 = vrot.slane %v2391, 4
  %v2406 = vadd.f32 %v2391, %v2405
  %v2407 = vrot.slane %v2406, 2
  %v2408 = vadd.f32 %v2406, %v2407
  %v2409 = vrot.slane %v2408, 1
  %v2410 = vadd.f32 %v2408, %v2409
  %v2411 = vrot.slane %v2392, 4
  %v2412 = vadd.f32 %v2392, %v2411
  %v2413 = vrot.slane %v2412, 2
  %v2414 = vadd.f32 %v2412, %v2413
  %v2415 = vrot.slane %v2414, 1
  %v2416 = vadd.f32 %v2414, %v2415
  %v2417 = vmul.f32 %v562, %v468
  %v2418 = vmul.f32 %v565, %v471
  %v2419 = vmul.f32 %v568, %v474
  %v2420 = vmul.f32 %v571, %v477
  %v2421 = vrot.slane %v2417, 4
  %v2422 = vadd.f32 %v2417, %v2421
  %v2423 = vrot.slane %v2422, 2
  %v2424 = vadd.f32 %v2422, %v2423
  %v2425 = vrot.slane %v2424, 1
  %v2426 = vadd.f32 %v2424, %v2425
  %v2427 = vrot.slane %v2418, 4
  %v2428 = vadd.f32 %v2418, %v2427
  %v2429 = vrot.slane %v2428, 2
  %v2430 = vadd.f32 %v2428, %v2429
  %v2431 = vrot.slane %v2430, 1
  %v2432 = vadd.f32 %v2430, %v2431
  %v2433 = vrot.slane %v2419, 4
  %v2434 = vadd.f32 %v2419, %v2433
  %v2435 = vrot.slane %v2434, 2
  %v2436 = vadd.f32 %v2434, %v2435
  %v2437 = vrot.slane %v2436, 1
  %v2438 = vadd.f32 %v2436, %v2437
  %v2439 = vrot.slane %v2420, 4
  %v2440 = vadd.f32 %v2420, %v2439
  %v2441 = vrot.slane %v2440, 2
  %v2442 = vadd.f32 %v2440, %v2441
  %v2443 = vrot.slane %v2442, 1
  %v2444 = vadd.f32 %v2442, %v2443
  %v2445 = vmul.f32 %v562, %v521
  %v2446 = vmul.f32 %v565, %v524
  %v2447 = vmul.f32 %v568, %v527
  %v2448 = vmul.f32 %v571, %v530
  %v2449 = vrot.slane %v2445, 4
  %v2450 = vadd.f32 %v2445, %v2449
  %v2451 = vrot.slane %v2450, 2
  %v2452 = vadd.f32 %v2450, %v2451
  %v2453 = vrot.slane %v2452, 1
  %v2454 = vadd.f32 %v2452, %v2453
  %v2455 = vrot.slane %v2446, 4
  %v2456 = vadd.f32 %v2446, %v2455
  %v2457 = vrot.slane %v2456, 2
  %v2458 = vadd.f32 %v2456, %v2457
  %v2459 = vrot.slane %v2458, 1
  %v2460 = vadd.f32 %v2458, %v2459
  %v2461 = vrot.slane %v2447, 4
  %v2462 = vadd.f32 %v2447, %v2461
  %v2463 = vrot.slane %v2462, 2
  %v2464 = vadd.f32 %v2462, %v2463
  %v2465 = vrot.slane %v2464, 1
  %v2466 = vadd.f32 %v2464, %v2465
  %v2467 = vrot.slane %v2448, 4
  %v2468 = vadd.f32 %v2448, %v2467
  %v2469 = vrot.slane %v2468, 2
  %v2470 = vadd.f32 %v2468, %v2469
  %v2471 = vrot.slane %v2470, 1
  %v2472 = vadd.f32 %v2470, %v2471
  %v2473 = vmul.f32 %v562, %v574
  %v2474 = vmul.f32 %v565, %v577
  %v2475 = vmul.f32 %v568, %v580
  %v2476 = vmul.f32 %v571, %v583
  %v2477 = vrot.slane %v2473, 4
  %v2478 = vadd.f32 %v2473, %v2477
  %v2479 = vrot.slane %v2478, 2
  %v2480 = vadd.f32 %v2478, %v2479
  %v2481 = vrot.slane %v2480, 1
  %v2482 = vadd.f32 %v2480, %v2481
  %v2483 = vrot.slane %v2474, 4
  %v2484 = vadd.f32 %v2474, %v2483
  %v2485 = vrot.slane %v2484, 2
  %v2486 = vadd.f32 %v2484, %v2485
  %v2487 = vrot.slane %v2486, 1
  %v2488 = vadd.f32 %v2486, %v2487
  %v2489 = vrot.slane %v2475, 4
  %v2490 = vadd.f32 %v2475, %v2489
  %v2491 = vrot.slane %v2490, 2
  %v2492 = vadd.f32 %v2490, %v2491
  %v2493 = vrot.slane %v2492, 1
  %v2494 = vadd.f32 %v2492, %v2493
  %v2495 = vrot.slane %v2476, 4
  %v2496 = vadd.f32 %v2476, %v2495
  %v2497 = vrot.slane %v2496, 2
  %v2498 = vadd.f32 %v2496, %v2497
  %v2499 = vrot.slane %v2498, 1
  %v2500 = vadd.f32 %v2498, %v2499
  %v2501 = vmax.f32 %v2286, %v2314
  %v2502 = vmax.f32 %v2292, %v2320
  %v2503 = vmax.f32 %v2298, %v2326
  %v2504 = vmax.f32 %v2304, %v2332
  %v2505 = vmax.f32 %v2501, %v2342
  %v2506 = vmax.f32 %v2502, %v2348
  %v2507 = vmax.f32 %v2503, %v2354
  %v2508 = vmax.f32 %v2504, %v2360
  %v2509 = vmax.f32 %v2505, %v2370
  %v2510 = vmax.f32 %v2506, %v2376
  %v2511 = vmax.f32 %v2507, %v2382
  %v2512 = vmax.f32 %v2508, %v2388
  %v2513 = vmax.f32 %v2509, %v2398
  %v2514 = vmax.f32 %v2510, %v2404
  %v2515 = vmax.f32 %v2511, %v2410
  %v2516 = vmax.f32 %v2512, %v2416
  %v2517 = vmax.f32 %v2513, %v2426
  %v2518 = vmax.f32 %v2514, %v2432
  %v2519 = vmax.f32 %v2515, %v2438
  %v2520 = vmax.f32 %v2516, %v2444
  %v2521 = vmax.f32 %v2517, %v2454
  %v2522 = vmax.f32 %v2518, %v2460
  %v2523 = vmax.f32 %v2519, %v2466
  %v2524 = vmax.f32 %v2520, %v2472
  %v2525 = vmax.f32 %v2521, %v2482
  %v2526 = vmax.f32 %v2522, %v2488
  %v2527 = vmax.f32 %v2523, %v2494
  %v2528 = vmax.f32 %v2524, %v2500
  %v2529 = vsub.f32 %v2286, %v2525
  %v2530 = vsub.f32 %v2292, %v2526
  %v2531 = vsub.f32 %v2298, %v2527
  %v2532 = vsub.f32 %v2304, %v2528
  %v2533 = vmul.f32 %v2529, 1.442695
  %v2534 = vpow.pop %v2533
  %v2535 = vmul.f32 %v2530, 1.442695
  %v2536 = vpow.pop %v2535
  %v2537 = vmul.f32 %v2531, 1.442695
  %v2538 = vpow.pop %v2537
  %v2539 = vmul.f32 %v2532, 1.442695
  %v2540 = vpow.pop %v2539
  %v2541 = vsub.f32 %v2314, %v2525
  %v2542 = vsub.f32 %v2320, %v2526
  %v2543 = vsub.f32 %v2326, %v2527
  %v2544 = vsub.f32 %v2332, %v2528
  %v2545 = vmul.f32 %v2541, 1.442695
  %v2546 = vpow.pop %v2545
  %v2547 = vmul.f32 %v2542, 1.442695
  %v2548 = vpow.pop %v2547
  %v2549 = vmul.f32 %v2543, 1.442695
  %v2550 = vpow.pop %v2549
  %v2551 = vmul.f32 %v2544, 1.442695
  %v2552 = vpow.pop %v2551
  %v2553 = vsub.f32 %v2342, %v2525
  %v2554 = vsub.f32 %v2348, %v2526
  %v2555 = vsub.f32 %v2354, %v2527
  %v2556 = vsub.f32 %v2360, %v2528
  %v2557 = vmul.f32 %v2553, 1.442695
  %v2558 = vpow.pop %v2557
  %v2559 = vmul.f32 %v2554, 1.442695
  %v2560 = vpow.pop %v2559
  %v2561 = vmul.f32 %v2555, 1.442695
  %v2562 = vpow.pop %v2561
  %v2563 = vmul.f32 %v2556, 1.442695
  %v2564 = vpow.pop %v2563
  %v2565 = vsub.f32 %v2370, %v2525
  %v2566 = vsub.f32 %v2376, %v2526
  %v2567 = vsub.f32 %v2382, %v2527
  %v2568 = vsub.f32 %v2388, %v2528
  %v2569 = vmul.f32 %v2565, 1.442695
  %v2570 = vpow.pop %v2569
  %v2571 = vmul.f32 %v2566, 1.442695
  %v2572 = vpow.pop %v2571
  %v2573 = vmul.f32 %v2567, 1.442695
  %v2574 = vpow.pop %v2573
  %v2575 = vmul.f32 %v2568, 1.442695
  %v2576 = vpow.pop %v2575
  %v2577 = vsub.f32 %v2398, %v2525
  %v2578 = vsub.f32 %v2404, %v2526
  %v2579 = vsub.f32 %v2410, %v2527
  %v2580 = vsub.f32 %v2416, %v2528
  %v2581 = vmul.f32 %v2577, 1.442695
  %v2582 = vpow.pop %v2581
  %v2583 = vmul.f32 %v2578, 1.442695
  %v2584 = vpow.pop %v2583
  %v2585 = vmul.f32 %v2579, 1.442695
  %v2586 = vpow.pop %v2585
  %v2587 = vmul.f32 %v2580, 1.442695
  %v2588 = vpow.pop %v2587
  %v2589 = vsub.f32 %v2426, %v2525
  %v2590 = vsub.f32 %v2432, %v2526
  %v2591 = vsub.f32 %v2438, %v2527
  %v2592 = vsub.f32 %v2444, %v2528
  %v2593 = vmul.f32 %v2589, 1.442695
  %v2594 = vpow.pop %v2593
  %v2595 = vmul.f32 %v2590, 1.442695
  %v2596 = vpow.pop %v2595
  %v2597 = vmul.f32 %v2591, 1.442695
  %v2598 = vpow.pop %v2597
  %v2599 = vmul.f32 %v2592, 1.442695
  %v2600 = vpow.pop %v2599
  %v2601 = vsub.f32 %v2454, %v2525
  %v2602 = vsub.f32 %v2460, %v2526
  %v2603 = vsub.f32 %v2466, %v2527
  %v2604 = vsub.f32 %v2472, %v2528
  %v2605 = vmul.f32 %v2601, 1.442695
  %v2606 = vpow.pop %v2605
  %v2607 = vmul.f32 %v2602, 1.442695
  %v2608 = vpow.pop %v2607
  %v2609 = vmul.f32 %v2603, 1.442695
  %v2610 = vpow.pop %v2609
  %v2611 = vmul.f32 %v2604, 1.442695
  %v2612 = vpow.pop %v2611
  %v2613 = vsub.f32 %v2482, %v2525
  %v2614 = vsub.f32 %v2488, %v2526
  %v2615 = vsub.f32 %v2494, %v2527
  %v2616 = vsub.f32 %v2500, %v2528
  %v2617 = vmul.f32 %v2613, 1.442695
  %v2618 = vpow.pop %v2617
  %v2619 = vmul.f32 %v2614, 1.442695
  %v2620 = vpow.pop %v2619
  %v2621 = vmul.f32 %v2615, 1.442695
  %v2622 = vpow.pop %v2621
  %v2623 = vmul.f32 %v2616, 1.442695
  %v2624 = vpow.pop %v2623
  %v2625 = vadd.f32 %v2534, %v2546
  %v2626 = vadd.f32 %v2536, %v2548
  %v2627 = vadd.f32 %v2538, %v2550
  %v2628 = vadd.f32 %v2540, %v2552
  %v2629 = vadd.f32 %v2625, %v2558
  %v2630 = vadd.f32 %v2626, %v2560
  %v2631 = vadd.f32 %v2627, %v2562
  %v2632 = vadd.f32 %v2628, %v2564
  %v2633 = vadd.f32 %v2629, %v2570
  %v2634 = vadd.f32 %v2630, %v2572
  %v2635 = vadd.f32 %v2631, %v2574
  %v2636 = vadd.f32 %v2632, %v2576
  %v2637 = vadd.f32 %v2633, %v2582
  %v2638 = vadd.f32 %v2634, %v2584
  %v2639 = vadd.f32 %v2635, %v2586
  %v2640 = vadd.f32 %v2636, %v2588
  %v2641 = vadd.f32 %v2637, %v2594
  %v2642 = vadd.f32 %v2638, %v2596
  %v2643 = vadd.f32 %v2639, %v2598
  %v2644 = vadd.f32 %v2640, %v2600
  %v2645 = vadd.f32 %v2641, %v2606
  %v2646 = vadd.f32 %v2642, %v2608
  %v2647 = vadd.f32 %v2643, %v2610
  %v2648 = vadd.f32 %v2644, %v2612
  %v2649 = vadd.f32 %v2645, %v2618
  %v2650 = vadd.f32 %v2646, %v2620
  %v2651 = vadd.f32 %v2647, %v2622
  %v2652 = vadd.f32 %v2648, %v2624
  %v2653 = vrcp.pop %v2649
  %v2654 = vrcp.pop %v2650
  %v2655 = vrcp.pop %v2651
  %v2656 = vrcp.pop %v2652
  %v2657 = vmul.f32 %v2534, %v2653
  %v2658 = vmul.f32 %v2536, %v2654
  %v2659 = vmul.f32 %v2538, %v2655
  %v2660 = vmul.f32 %v2540, %v2656
  %v2661 = vmul.f32 %v2657, %v215
  %v2662 = vmul.f32 %v2658, %v218
  %v2663 = vmul.f32 %v2659, %v221
  %v2664 = vmul.f32 %v2660, %v224
  %v2665 = vadd.f32 %v2661, 0.0
  %v2666 = vadd.f32 %v2662, 0.0
  %v2667 = vadd.f32 %v2663, 0.0
  %v2668 = vadd.f32 %v2664, 0.0
  %v2669 = vmul.f32 %v2546, %v2653
  %v2670 = vmul.f32 %v2548, %v2654
  %v2671 = vmul.f32 %v2550, %v2655
  %v2672 = vmul.f32 %v2552, %v2656
  %v2673 = vmul.f32 %v2669, %v268
  %v2674 = vmul.f32 %v2670, %v271
  %v2675 = vmul.f32 %v2671, %v274
  %v2676 = vmul.f32 %v2672, %v277
  %v2677 = vadd.f32 %v2665, %v2673
  %v2678 = vadd.f32 %v2666, %v2674
  %v2679 = vadd.f32 %v2667, %v2675
  %v2680 = vadd.f32 %v2668, %v2676
  %v2681 = vmul.f32 %v2558, %v2653
  %v2682 = vmul.f32 %v2560, %v2654
  %v2683 = vmul.f32 %v2562, %v2655
  %v2684 = vmul.f32 %v2564, %v2656
  %v2685 = vmul.f32 %v2681, %v321
  %v2686 = vmul.f32 %v2682, %v324
  %v2687 = vmul.f32 %v2683, %v327
  %v2688 = vmul.f32 %v2684, %v330
  %v2689 = vadd.f32 %v2677, %v2685
  %v2690 = vadd.f32 %v2678, %v2686
  %v2691 = vadd.f32 %v2679, %v2687
  %v2692 = vadd.f32 %v2680, %v2688
  %v2693 = vmul.f32 %v2570, %v2653
  %v2694 = vmul.f32 %v2572, %v2654
  %v2695 = vmul.f32 %v2574, %v2655
  %v2696 = vmul.f32 %v2576, %v2656
  %v2697 = vmul.f32 %v2693, %v374
  %v2698 = vmul.f32 %v2694, %v377
  %v2699 = vmul.f32 %v2695, %v380
  %v2700 = vmul.f32 %v2696, %v383
  %v2701 = vadd.f32 %v2689, %v2697
  %v2702 = vadd.f32 %v2690, %v2698
  %v2703 = vadd.f32 %v2691, %v2699
  %v2704 = vadd.f32 %v2692, %v2700
  %v2705 = vmul.f32 %v2582, %v2653
  %v2706 = vmul.f32 %v2584, %v2654
  %v2707 = vmul.f32 %v2586, %v2655
  %v2708 = vmul.f32 %v2588, %v2656
  %v2709 = vmul.f32 %v2705, %v427
  %v2710 = vmul.f32 %v2706, %v430
  %v2711 = vmul.f32 %v2707, %v433
  %v2712 = vmul.f32 %v2708, %v436
  %v2713 = vadd.f32 %v2701, %v2709
  %v2714 = vadd.f32 %v2702, %v2710
  %v2715 = vadd.f32 %v2703, %v2711
  %v2716 = vadd.f32 %v2704, %v2712
  %v2717 = vmul.f32 %v2594, %v2653
  %v2718 = vmul.f32 %v2596, %v2654
  %v2719 = vmul.f32 %v2598, %v2655
  %v2720 = vmul.f32 %v2600, %v2656
  %v2721 = vmul.f32 %v2717, %v480
  %v2722 = vmul.f32 %v2718, %v483
  %v2723 = vmul.f32 %v2719, %v486
  %v2724 = vmul.f32 %v2720, %v489
  %v2725 = vadd.f32 %v2713, %v2721
  %v2726 = vadd.f32 %v2714, %v2722
  %v2727 = vadd.f32 %v2715, %v2723
  %v2728 = vadd.f32 %v2716, %v2724
  %v2729 = vmul.f32 %v2606, %v2653
  %v2730 = vmul.f32 %v2608, %v2654
  %v2731 = vmul.f32 %v2610, %v2655
  %v2732 = vmul.f32 %v2612, %v2656
  %v2733 = vmul.f32 %v2729, %v533
  %v2734 = vmul.f32 %v2730, %v536
  %v2735 = vmul.f32 %v2731, %v539
  %v2736 = vmul.f32 %v2732, %v542
  %v2737 = vadd.f32 %v2725, %v2733
  %v2738 = vadd.f32 %v2726, %v2734
  %v2739 = vadd.f32 %v2727, %v2735
  %v2740 = vadd.f32 %v2728, %v2736
  %v2741 = vmul.f32 %v2618, %v2653
  %v2742 = vmul.f32 %v2620, %v2654
  %v2743 = vmul.f32 %v2622, %v2655
  %v2744 = vmul.f32 %v2624, %v2656
  %v2745 = vmul.f32 %v2741, %v586
  %v2746 = vmul.f32 %v2742, %v589
  %v2747 = vmul.f32 %v2743, %v592
  %v2748 = vmul.f32 %v2744, %v595
  %v2749 = vadd.f32 %v2737, %v2745
  %v2750 = vadd.f32 %v2738, %v2746
  %v2751 = vadd.f32 %v2739, %v2747
  %v2752 = vadd.f32 %v2740, %v2748
  %2753 = vst [vmem:[#allocation2 + $0x38] sm:$0xff] %v2749
  %2754 = vst [vmem:[#allocation2 + $0x78] sm:$0xff] %v2750
  %2755 = vst [vmem:[#allocation2 + $0xb8] sm:$0xff] %v2751
  %2756 = vst [vmem:[#allocation2 + $0xf8] sm:$0xff] %v2752
  %v2757 = vld [vmem:[%s3] sm:$0xff]
  %v2758 = vld [vmem:[%s3 + $0x8] sm:$0xff]
  %v2759 = vld [vmem:[%s3 + $0x10] sm:$0xff]
  %v2760 = vld [vmem:[%s3 + $0x18] sm:$0xff]
  %v2761 = vld [vmem:[#allocation2] sm:$0xff]
  %v2762 = vld [vmem:[#allocation2 + $0x8] sm:$0xff]
  %v2763 = vld [vmem:[#allocation2 + $0x10] sm:$0xff]
  %v2764 = vld [vmem:[#allocation2 + $0x18] sm:$0xff]
  %v2765 = vld [vmem:[#allocation2 + $0x20] sm:$0xff]
  %v2766 = vld [vmem:[#allocation2 + $0x28] sm:$0xff]
  %v2767 = vld [vmem:[#allocation2 + $0x30] sm:$0xff]
  %v2768 = vld [vmem:[#allocation2 + $0x38] sm:$0xff]
  %v2769 = vld [vmem:[#allocation2 + $0x40] sm:$0xff]
  %v2770 = vld [vmem:[#allocation2 + $0x48] sm:$0xff]
  %v2771 = vld [vmem:[#allocation2 + $0x50] sm:$0xff]
  %v2772 = vld [vmem:[#allocation2 + $0x58] sm:$0xff]
  %v2773 = vld [vmem:[#allocation2 + $0x60] sm:$0xff]
  %v2774 = vld [vmem:[#allocation2 + $0x68] sm:$0xff]
  %v2775 = vld [vmem:[#allocation2 + $0x70] sm:$0xff]
  %v2776 = vld [vmem:[#allocation2 + $0x78] sm:$0xff]
  %v2777 = vld [vmem:[#allocation2 + $0x80] sm:$0xff]
  %v2778 = vld [vmem:[#allocation2 + $0x88] sm:$0xff]
  %v2779 = vld [vmem:[#allocation2 + $0x90] sm:$0xff]
  %v2780 = vld [vmem:[#allocation2 + $0x98] sm:$0xff]
  %v2781 = vld [vmem:[#allocation2 + $0xa0] sm:$0xff]
  %v2782 = vld [vmem:[#allocation2 + $0xa8] sm:$0xff]
  %v2783 = vld [vmem:[#allocation2 + $0xb0] sm:$0xff]
  %v2784 = vld [vmem:[#allocation2 + $0xb8] sm:$0xff]
  %v2785 = vld [vmem:[#allocation2 + $0xc0] sm:$0xff]
  %v2786 = vld [vmem:[#allocation2 + $0xc8] sm:$0xff]
  %v2787 = vld [vmem:[#allocation2 + $0xd0] sm:$0xff]
  %v2788 = vld [vmem:[#allocation2 + $0xd8] sm:$0xff]
  %v2789 = vld [vmem:[#allocation2 + $0xe0] sm:$0xff]
  %v2790 = vld [vmem:[#allocation2 + $0xe8] sm:$0xff]
  %v2791 = vld [vmem:[#allocation2 + $0xf0] sm:$0xff]
  %v2792 = vld [vmem:[#allocation2 + $0xf8] sm:$0xff]
  %v2793 = vld [vmem:[%s4] sm:$0xff]
  %v2794 = vld [vmem:[%s4 + $0x8] sm:$0xff]
  %v2795 = vld [vmem:[%s4 + $0x10] sm:$0xff]
  %v2796 = vld [vmem:[%s4 + $0x18] sm:$0xff]
  %2798 = vset.pattern.permute.xlu0 0
  %2799 = vperm.xlu0 %2798, %v2793
  %v2800 = vpop.permute.xlu0 %2799
  %2803 = vset.pattern.permute.xlu0 0
  %2804 = vperm.xlu0 %2803, %v2794
  %v2805 = vpop.permute.xlu0 %2804
  %2808 = vset.pattern.permute.xlu0 0
  %2809 = vperm.xlu0 %2808, %v2795
  %v2810 = vpop.permute.xlu0 %2809
  %2813 = vset.pattern.permute.xlu0 0
  %2814 = vperm.xlu0 %2813, %v2796
  %v2815 = vpop.permute.xlu0 %2814
  %v2818 = vsel %vm136, %v2757, 0
  %v2821 = vsel %vm136, %v2758, 0
  %v2824 = vsel %vm136, %v2759, 0
  %v2827 = vsel %vm136, %v2760, 0
  %2829 = vmatpush.msra.mxu0 0.0
  %2830 = vmatpush.msra.mxu0 0.0
  %2831 = vmatpush.msra.mxu0 0.0
  %2832 = vmatpush.msra.mxu0 0.0
  %2833 = vmatpush.msra.mxu0 0.0
  %2834 = vmatpush.msra.mxu0 0.0
  %2835 = vmatpush.msra.mxu0 0.0
  %2836 = vmatpush.msra.mxu0 0.0
  %2837 = vmatpush.msra.mxu0 0.0
  %2838 = vmatpush.msra.mxu0 0.0
  %2839 = vmatpush.msra.mxu0 0.0
  %2840 = vmatpush.msra.mxu0 0.0
  %2841 = vmatpush.msra.mxu0 %v2785
  %2842 = vmatpush.msra.mxu0 %v2777
  %2843 = vmatpush.msra.mxu0 %v2769
  %2844 = vmatpush.msra.mxu0 %v2761
  %2845 = vmatmul.f32.gmra.mxu0 %v2818
  %v2846 = vpop.f32.mrf.mxu0
  %v2847 = vadd.f32 %v2800, %v2846
  %2848 = vmatmul.f32.gmra.mxu0 %v2821
  %v2849 = vpop.f32.mrf.mxu0
  %v2850 = vadd.f32 %v2805, %v2849
  %2851 = vmatmul.f32.gmra.mxu0 %v2824
  %v2852 = vpop.f32.mrf.mxu0
  %v2853 = vadd.f32 %v2810, %v2852
  %2854 = vmatmul.f32.gmra.mxu0 %v2827
  %v2855 = vpop.f32.mrf.mxu0
  %v2856 = vadd.f32 %v2815, %v2855
  %2857 = vdwg.mxu0
  %2858 = vmatpush.msra.mxu0 0.0
  %2859 = vmatpush.msra.mxu0 0.0
  %2860 = vmatpush.msra.mxu0 0.0
  %2861 = vmatpush.msra.mxu0 0.0
  %2862 = vmatpush.msra.mxu0 0.0
  %2863 = vmatpush.msra.mxu0 0.0
  %2864 = vmatpush.msra.mxu0 0.0
  %2865 = vmatpush.msra.mxu0 0.0
  %2866 = vmatpush.msra.mxu0 0.0
  %2867 = vmatpush.msra.mxu0 0.0
  %2868 = vmatpush.msra.mxu0 0.0
  %2869 = vmatpush.msra.mxu0 0.0
  %2870 = vmatpush.msra.mxu0 %v2786
  %2871 = vmatpush.msra.mxu0 %v2778
  %2872 = vmatpush.msra.mxu0 %v2770
  %2873 = vmatpush.msra.mxu0 %v2762
  %2874 = vmatmul.f32.gmra.mxu0 %v2818
  %v2875 = vpop.f32.mrf.mxu0
  %v2876 = vadd.f32 %v2800, %v2875
  %2877 = vmatmul.f32.gmra.mxu0 %v2821
  %v2878 = vpop.f32.mrf.mxu0
  %v2879 = vadd.f32 %v2805, %v2878
  %2880 = vmatmul.f32.gmra.mxu0 %v2824
  %v2881 = vpop.f32.mrf.mxu0
  %v2882 = vadd.f32 %v2810, %v2881
  %2883 = vmatmul.f32.gmra.mxu0 %v2827
  %v2884 = vpop.f32.mrf.mxu0
  %v2885 = vadd.f32 %v2815, %v2884
  %2886 = vdwg.mxu0
  %2887 = vmatpush.msra.mxu0 0.0
  %2888 = vmatpush.msra.mxu0 0.0
  %2889 = vmatpush.msra.mxu0 0.0
  %2890 = vmatpush.msra.mxu0 0.0
  %2891 = vmatpush.msra.mxu0 0.0
  %2892 = vmatpush.msra.mxu0 0.0
  %2893 = vmatpush.msra.mxu0 0.0
  %2894 = vmatpush.msra.mxu0 0.0
  %2895 = vmatpush.msra.mxu0 0.0
  %2896 = vmatpush.msra.mxu0 0.0
  %2897 = vmatpush.msra.mxu0 0.0
  %2898 = vmatpush.msra.mxu0 0.0
  %2899 = vmatpush.msra.mxu0 %v2787
  %2900 = vmatpush.msra.mxu0 %v2779
  %2901 = vmatpush.msra.mxu0 %v2771
  %2902 = vmatpush.msra.mxu0 %v2763
  %2903 = vmatmul.f32.gmra.mxu0 %v2818
  %v2904 = vpop.f32.mrf.mxu0
  %v2905 = vadd.f32 %v2800, %v2904
  %2906 = vmatmul.f32.gmra.mxu0 %v2821
  %v2907 = vpop.f32.mrf.mxu0
  %v2908 = vadd.f32 %v2805, %v2907
  %2909 = vmatmul.f32.gmra.mxu0 %v2824
  %v2910 = vpop.f32.mrf.mxu0
  %v2911 = vadd.f32 %v2810, %v2910
  %2912 = vmatmul.f32.gmra.mxu0 %v2827
  %v2913 = vpop.f32.mrf.mxu0
  %v2914 = vadd.f32 %v2815, %v2913
  %2915 = vdwg.mxu0
  %2916 = vmatpush.msra.mxu0 0.0
  %2917 = vmatpush.msra.mxu0 0.0
  %2918 = vmatpush.msra.mxu0 0.0
  %2919 = vmatpush.msra.mxu0 0.0
  %2920 = vmatpush.msra.mxu0 0.0
  %2921 = vmatpush.msra.mxu0 0.0
  %2922 = vmatpush.msra.mxu0 0.0
  %2923 = vmatpush.msra.mxu0 0.0
  %2924 = vmatpush.msra.mxu0 0.0
  %2925 = vmatpush.msra.mxu0 0.0
  %2926 = vmatpush.msra.mxu0 0.0
  %2927 = vmatpush.msra.mxu0 0.0
  %2928 = vmatpush.msra.mxu0 %v2788
  %2929 = vmatpush.msra.mxu0 %v2780
  %2930 = vmatpush.msra.mxu0 %v2772
  %2931 = vmatpush.msra.mxu0 %v2764
  %2932 = vmatmul.f32.gmra.mxu0 %v2818
  %v2933 = vpop.f32.mrf.mxu0
  %v2934 = vadd.f32 %v2800, %v2933
  %2935 = vmatmul.f32.gmra.mxu0 %v2821
  %v2936 = vpop.f32.mrf.mxu0
  %v2937 = vadd.f32 %v2805, %v2936
  %2938 = vmatmul.f32.gmra.mxu0 %v2824
  %v2939 = vpop.f32.mrf.mxu0
  %v2940 = vadd.f32 %v2810, %v2939
  %2941 = vmatmul.f32.gmra.mxu0 %v2827
  %v2942 = vpop.f32.mrf.mxu0
  %v2943 = vadd.f32 %v2815, %v2942
  %2944 = vdwg.mxu0
  %2945 = vmatpush.msra.mxu0 0.0
  %2946 = vmatpush.msra.mxu0 0.0
  %2947 = vmatpush.msra.mxu0 0.0
  %2948 = vmatpush.msra.mxu0 0.0
  %2949 = vmatpush.msra.mxu0 0.0
  %2950 = vmatpush.msra.mxu0 0.0
  %2951 = vmatpush.msra.mxu0 0.0
  %2952 = vmatpush.msra.mxu0 0.0
  %2953 = vmatpush.msra.mxu0 0.0
  %2954 = vmatpush.msra.mxu0 0.0
  %2955 = vmatpush.msra.mxu0 0.0
  %2956 = vmatpush.msra.mxu0 0.0
  %2957 = vmatpush.msra.mxu0 %v2789
  %2958 = vmatpush.msra.mxu0 %v2781
  %2959 = vmatpush.msra.mxu0 %v2773
  %2960 = vmatpush.msra.mxu0 %v2765
  %2961 = vmatmul.f32.gmra.mxu0 %v2818
  %v2962 = vpop.f32.mrf.mxu0
  %v2963 = vadd.f32 %v2800, %v2962
  %2964 = vmatmul.f32.gmra.mxu0 %v2821
  %v2965 = vpop.f32.mrf.mxu0
  %v2966 = vadd.f32 %v2805, %v2965
  %2967 = vmatmul.f32.gmra.mxu0 %v2824
  %v2968 = vpop.f32.mrf.mxu0
  %v2969 = vadd.f32 %v2810, %v2968
  %2970 = vmatmul.f32.gmra.mxu0 %v2827
  %v2971 = vpop.f32.mrf.mxu0
  %v2972 = vadd.f32 %v2815, %v2971
  %2973 = vdwg.mxu0
  %2974 = vmatpush.msra.mxu0 0.0
  %2975 = vmatpush.msra.mxu0 0.0
  %2976 = vmatpush.msra.mxu0 0.0
  %2977 = vmatpush.msra.mxu0 0.0
  %2978 = vmatpush.msra.mxu0 0.0
  %2979 = vmatpush.msra.mxu0 0.0
  %2980 = vmatpush.msra.mxu0 0.0
  %2981 = vmatpush.msra.mxu0 0.0
  %2982 = vmatpush.msra.mxu0 0.0
  %2983 = vmatpush.msra.mxu0 0.0
  %2984 = vmatpush.msra.mxu0 0.0
  %2985 = vmatpush.msra.mxu0 0.0
  %2986 = vmatpush.msra.mxu0 %v2790
  %2987 = vmatpush.msra.mxu0 %v2782
  %2988 = vmatpush.msra.mxu0 %v2774
  %2989 = vmatpush.msra.mxu0 %v2766
  %2990 = vmatmul.f32.gmra.mxu0 %v2818
  %v2991 = vpop.f32.mrf.mxu0
  %v2992 = vadd.f32 %v2800, %v2991
  %2993 = vmatmul.f32.gmra.mxu0 %v2821
  %v2994 = vpop.f32.mrf.mxu0
  %v2995 = vadd.f32 %v2805, %v2994
  %2996 = vmatmul.f32.gmra.mxu0 %v2824
  %v2997 = vpop.f32.mrf.mxu0
  %v2998 = vadd.f32 %v2810, %v2997
  %2999 = vmatmul.f32.gmra.mxu0 %v2827
  %v3000 = vpop.f32.mrf.mxu0
  %v3001 = vadd.f32 %v2815, %v3000
  %3002 = vdwg.mxu0
  %3003 = vmatpush.msra.mxu0 0.0
  %3004 = vmatpush.msra.mxu0 0.0
  %3005 = vmatpush.msra.mxu0 0.0
  %3006 = vmatpush.msra.mxu0 0.0
  %3007 = vmatpush.msra.mxu0 0.0
  %3008 = vmatpush.msra.mxu0 0.0
  %3009 = vmatpush.msra.mxu0 0.0
  %3010 = vmatpush.msra.mxu0 0.0
  %3011 = vmatpush.msra.mxu0 0.0
  %3012 = vmatpush.msra.mxu0 0.0
  %3013 = vmatpush.msra.mxu0 0.0
  %3014 = vmatpush.msra.mxu0 0.0
  %3015 = vmatpush.msra.mxu0 %v2791
  %3016 = vmatpush.msra.mxu0 %v2783
  %3017 = vmatpush.msra.mxu0 %v2775
  %3018 = vmatpush.msra.mxu0 %v2767
  %3019 = vmatmul.f32.gmra.mxu0 %v2818
  %v3020 = vpop.f32.mrf.mxu0
  %v3021 = vadd.f32 %v2800, %v3020
  %3022 = vmatmul.f32.gmra.mxu0 %v2821
  %v3023 = vpop.f32.mrf.mxu0
  %v3024 = vadd.f32 %v2805, %v3023
  %3025 = vmatmul.f32.gmra.mxu0 %v2824
  %v3026 = vpop.f32.mrf.mxu0
  %v3027 = vadd.f32 %v2810, %v3026
  %3028 = vmatmul.f32.gmra.mxu0 %v2827
  %v3029 = vpop.f32.mrf.mxu0
  %v3030 = vadd.f32 %v2815, %v3029
  %3031 = vdwg.mxu0
  %3032 = vmatpush.msra.mxu0 0.0
  %3033 = vmatpush.msra.mxu0 0.0
  %3034 = vmatpush.msra.mxu0 0.0
  %3035 = vmatpush.msra.mxu0 0.0
  %3036 = vmatpush.msra.mxu0 0.0
  %3037 = vmatpush.msra.mxu0 0.0
  %3038 = vmatpush.msra.mxu0 0.0
  %3039 = vmatpush.msra.mxu0 0.0
  %3040 = vmatpush.msra.mxu0 0.0
  %3041 = vmatpush.msra.mxu0 0.0
  %3042 = vmatpush.msra.mxu0 0.0
  %3043 = vmatpush.msra.mxu0 0.0
  %3044 = vmatpush.msra.mxu0 %v2792
  %3045 = vmatpush.msra.mxu0 %v2784
  %3046 = vmatpush.msra.mxu0 %v2776
  %3047 = vmatpush.msra.mxu0 %v2768
  %3048 = vmatmul.f32.gmra.mxu0 %v2818
  %v3049 = vpop.f32.mrf.mxu0
  %v3050 = vadd.f32 %v2800, %v3049
  %3051 = vmatmul.f32.gmra.mxu0 %v2821
  %v3052 = vpop.f32.mrf.mxu0
  %v3053 = vadd.f32 %v2805, %v3052
  %3054 = vmatmul.f32.gmra.mxu0 %v2824
  %v3055 = vpop.f32.mrf.mxu0
  %v3056 = vadd.f32 %v2810, %v3055
  %3057 = vmatmul.f32.gmra.mxu0 %v2827
  %v3058 = vpop.f32.mrf.mxu0
  %v3059 = vadd.f32 %v2815, %v3058
  %3060 = vdwg.mxu0
  %3061 = vst [vmem:[%s5] sm:$0xff] %v2847
  %3062 = vst [vmem:[%s5 + $0x8] sm:$0xff] %v2876
  %3063 = vst [vmem:[%s5 + $0x10] sm:$0xff] %v2905
  %3064 = vst [vmem:[%s5 + $0x18] sm:$0xff] %v2934
  %3065 = vst [vmem:[%s5 + $0x20] sm:$0xff] %v2963
  %3066 = vst [vmem:[%s5 + $0x28] sm:$0xff] %v2992
  %3067 = vst [vmem:[%s5 + $0x30] sm:$0xff] %v3021
  %3068 = vst [vmem:[%s5 + $0x38] sm:$0xff] %v3050
  %3069 = vst [vmem:[%s5 + $0x40] sm:$0xff] %v2850
  %3070 = vst [vmem:[%s5 + $0x48] sm:$0xff] %v2879
  %3071 = vst [vmem:[%s5 + $0x50] sm:$0xff] %v2908
  %3072 = vst [vmem:[%s5 + $0x58] sm:$0xff] %v2937
  %3073 = vst [vmem:[%s5 + $0x60] sm:$0xff] %v2966
  %3074 = vst [vmem:[%s5 + $0x68] sm:$0xff] %v2995
  %3075 = vst [vmem:[%s5 + $0x70] sm:$0xff] %v3024
  %3076 = vst [vmem:[%s5 + $0x78] sm:$0xff] %v3053
  %3077 = vst [vmem:[%s5 + $0x80] sm:$0xff] %v2853
  %3078 = vst [vmem:[%s5 + $0x88] sm:$0xff] %v2882
  %3079 = vst [vmem:[%s5 + $0x90] sm:$0xff] %v2911
  %3080 = vst [vmem:[%s5 + $0x98] sm:$0xff] %v2940
  %3081 = vst [vmem:[%s5 + $0xa0] sm:$0xff] %v2969
  %3082 = vst [vmem:[%s5 + $0xa8] sm:$0xff] %v2998
  %3083 = vst [vmem:[%s5 + $0xb0] sm:$0xff] %v3027
  %3084 = vst [vmem:[%s5 + $0xb8] sm:$0xff] %v3056
  %3085 = vst [vmem:[%s5 + $0xc0] sm:$0xff] %v2856
  %3086 = vst [vmem:[%s5 + $0xc8] sm:$0xff] %v2885
  %3087 = vst [vmem:[%s5 + $0xd0] sm:$0xff] %v2914
  %3088 = vst [vmem:[%s5 + $0xd8] sm:$0xff] %v2943
  %3089 = vst [vmem:[%s5 + $0xe0] sm:$0xff] %v2972
  %3090 = vst [vmem:[%s5 + $0xe8] sm:$0xff] %v3001
  %3091 = vst [vmem:[%s5 + $0xf0] sm:$0xff] %v3030
  %3092 = vst [vmem:[%s5 + $0xf8] sm:$0xff] %v3059
  // Predicated region
  $region22: #{mhsa_forward.1} parent=0 // pred_check
    _
  $region23: #{mhsa_forward.1} parent=0 // pred_check_branch
    %3094 = sbr.rel (0) target = $region25
  $region24: #{mhsa_forward.1} parent=0 // pred_region
    _
  $region25: #{mhsa_forward.1} parent=0 // pred_fallthru
    _
  // Predicated region
  $region26: #{mhsa_forward.1} parent=0 // pred_check
    _
  $region27: #{mhsa_forward.1} parent=0 // pred_check_branch
    %3096 = sbr.rel (0) target = $region29
  $region28: #{mhsa_forward.1} parent=0 // pred_region
    _
  $region29: #{mhsa_forward.1} parent=0 // pred_fallthru
    _

</llo_original>
